<compile_context>
chip_gen: v5e
topology: v5e:2x2
jax: 0.10.0
libtpu: 0.0.40
codegen_flags: <defaults>
</compile_context>

<pallas_src>
import functools

import jax
import jax.numpy as jnp
from jax import lax
from jax.experimental import pallas as pl
from jax.experimental.pallas import tpu as pltpu

# dtype of the aggregation-matmul operands (softmax weights & projected features).
# bf16 halves vreg/VMEM pressure and uses the fast MXU path on v6e/v7x; accumulation
# stays f32.  Set to jnp.float32 for tight numerical parity with the PyTorch reference.
_AGG_DTYPE = jnp.bfloat16


def _gat3_kernel(x_ref, adj_ref,
                 w1_ref, es1_ref, ed1_ref, cm1_ref, b1_ref,
                 w2_ref, es2_ref, ed2_ref, cm2_ref, b2_ref,
                 w3_ref, es3_ref, ed3_ref, cm3_ref, b3_ref,
                 out_ref, *, heads, channels):
    n = adj_ref.shape[0]
    h_max = max(heads)

    # Additive edge mask, computed once and shared by every head of every layer:
    # 0 on edges (self loops guaranteed by the wrapper), -1e30 elsewhere.  Tiled once
    # across the largest head count; layers with fewer heads take a leading-row slice.
    mask = jnp.where(adj_ref[...] > 0.0, jnp.float32(0.0), jnp.float32(-1e30))   # [N, N]
    mask_big = jnp.tile(mask, (h_max, 1))                                        # [Hmax*N, N]

    def gat_layer(x, w_ref, esrc_ref, edst_ref, cmask_ref, bias_ref, h, c, relu):
        hc = h * c
        hn = h * n
        # One lane-dense projection for all heads: [N, Fin] @ [Fin, H*C].
        xw = jnp.dot(x, w_ref[...], preferred_element_type=jnp.float32)          # [N, H*C]

        # Source logits for all heads, heads folded into sublanes:
        #   s2[h*N+i, j] = sum_c att_src[h, c] * xw[j, h*C+c]
        s2 = lax.dot_general(esrc_ref[...], xw, (((1,), (1,)), ((), ())),
                             preferred_element_type=jnp.float32)                  # [H*N, N]

        # Target logits for all heads, directly in sublane-major column form:
        #   d2[h*N+i, 0] = sum_c xw[i, h*C+c] * att_dst[h, c]
        xwt = jnp.tile(xw, (h, 1))                                                # [H*N, H*C]
        d2 = jnp.sum(xwt * edst_ref[...], axis=-1, keepdims=True)                 # [H*N, 1]

        # One LeakyReLU / mask / max / exp / sum for ALL heads of the layer.
        e = d2 + s2                                                               # [H*N, N]
        e = jnp.where(e > 0.0, e, 0.2 * e)                                        # LeakyReLU(0.2)
        e = e + mask_big[:hn, :]                                                  # non-edges -> -1e30
        m = jnp.max(e, axis=-1, keepdims=True)                                    # [H*N, 1]
        p = jnp.exp(e - m)                                                        # exactly 0 off-edge
        den = jnp.sum(p, axis=-1, keepdims=True)                                  # >= 1 (self loops)
        p = p * pl.reciprocal(den, approx=True)                                   # EUP reciprocal

        # One aggregation matmul for all heads (bf16 operands, f32 accumulation).
        agg = jnp.dot(p.astype(_AGG_DTYPE), xw.astype(_AGG_DTYPE),
                      preferred_element_type=jnp.float32)                         # [H*N, H*C]

        # Head-block select + sum: out[i, h*C+c] = agg[h*N+i, h*C+c].
        cm = cmask_ref[...]                                                       # [H, H*C]
        out = agg[0:n, :] * cm[0:1, :]
        for hh in range(1, h):                     # <= 6 aligned-slice VPU mul-adds
            out = out + agg[hh * n:(hh + 1) * n, :] * cm[hh:hh + 1, :]
        out = out + bias_ref[...]
        if relu:
            out = jnp.maximum(out, 0.0)                                           # fused ReLU
        return out

    h1 = gat_layer(x_ref[...], w1_ref, es1_ref, ed1_ref, cm1_ref, b1_ref,
                   heads[0], channels[0], relu=True)
    h2 = gat_layer(h1, w2_ref, es2_ref, ed2_ref, cm2_ref, b2_ref,
                   heads[1], channels[1], relu=True)
    out_ref[...] = gat_layer(h2, w3_ref, es3_ref, ed3_ref, cm3_ref, b3_ref,
                             heads[2], channels[2], relu=False)


def _block_diag(att):
    # [H, C] -> [H, H*C]; row h carries att[h] at columns h*C:(h+1)*C.
    h, c = att.shape
    return (jnp.eye(h, dtype=att.dtype)[:, :, None] * att[:, None, :]).reshape(h, h * c)


def _prep_layer(p, n):
    h, c = p["att_src"].shape
    esrc = jnp.repeat(_block_diag(p["att_src"]), n, axis=0)        # [H*N, H*C]
    edst = jnp.repeat(_block_diag(p["att_dst"]), n, axis=0)        # [H*N, H*C]
    cmask = _block_diag(jnp.ones_like(p["att_src"]))               # [H, H*C] head-block selector
    return (p["w"], esrc, edst, cmask, p["bias"].reshape(1, h * c))


@jax.jit
def gat_forward(x, adj, params1, params2, params3):
    # F.dropout(p=0.1) is identity at inference time (training=False).
    n = x.shape[0]
    layers = (params1, params2, params3)
    heads = tuple(p["att_src"].shape[0] for p in layers)       # static (from shapes)
    channels = tuple(p["att_src"].shape[1] for p in layers)

    # PyG adds self loops; guarantee every row has an edge so the softmax denom > 0.
    adj = adj.at[jnp.arange(n), jnp.arange(n)].set(1.0)

    args = []
    for p in layers:
        args.extend(_prep_layer(p, n))
    inputs = (x, adj, *args)

    # Advisory cost estimate: projection + logits + aggregation matmuls + softmax.
    flops = 0
    transcendentals = 0
    fin = x.shape[1]
    for h, c in zip(heads, channels):
        hc, hn = h * c, h * n
        flops += (2 * n * fin * hc            # projection
                  + 2 * hn * hc * n           # source-logit matmul
                  + 2 * hn * hc               # target-logit reduce
                  + 2 * hn * n * hc           # aggregation matmul
                  + 8 * hn * n)               # leaky / mask / softmax elementwise
        transcendentals += hn * n              # exp
        fin = hc
    out_cols = heads[2] * channels[2]
    bytes_accessed = sum(int(a.size) * a.dtype.itemsize for a in inputs) + n * out_cols * 4

    vmem_spec = pl.BlockSpec(memory_space=pltpu.MemorySpace.VMEM)
    kernel = functools.partial(_gat3_kernel, heads=heads, channels=channels)
    return pl.pallas_call(
        kernel,
        out_shape=jax.ShapeDtypeStruct((n, out_cols), jnp.float32),
        in_specs=[vmem_spec] * len(inputs),
        out_specs=vmem_spec,
        compiler_params=pltpu.CompilerParams(vmem_limit_bytes=32 * 1024 * 1024),
        cost_estimate=pl.CostEstimate(flops=int(flops),
                                      transcendentals=int(transcendentals),
                                      bytes_accessed=int(bytes_accessed)),
    )(*inputs)


def make_gat_params(key, num_features, hidden, heads, num_classes):
    """Deterministic synthetic parameters mirroring the PyTorch module's shapes."""
    def layer(k, fin, c, h):
        k1, k2, k3 = jax.random.split(k, 3)
        scale = 1.0 / jnp.sqrt(jnp.float32(fin))
        return dict(
            w=jax.random.normal(k1, (fin, h * c), jnp.float32) * scale,
            att_src=jax.random.normal(k2, (h, c), jnp.float32) * 0.1,
            att_dst=jax.random.normal(k3, (h, c), jnp.float32) * 0.1,
            bias=jnp.zeros((h * c,), jnp.float32),
        )

    k1, k2, k3 = jax.random.split(key, 3)
    # conv1: in=num_features, out=hidden,      heads=config['heads'] (7)
    # conv2: in=hidden*7,     out=hidden,      heads=6
    # conv3: in=hidden*6,     out=num_classes, heads=6  (concat=True -> num_classes*6 cols)
    return [
        layer(k1, num_features, hidden, heads),
        layer(k2, hidden * 7, hidden, 6),
        layer(k3, hidden * 6, num_classes, 6),
    ]


if __name__ == "__main__":
    key = jax.random.PRNGKey(0)
    k_x, k_e, k_p = jax.random.split(key, 3)

    # Small synthetic graph consistent with the module's forward signature.
    N = 64                 # nodes
    NUM_FEATURES = 8       # data[0]['x'].shape[1] + 1
    HIDDEN = 8             # config['hidden_channels']
    HEADS = 7              # config['heads'] (implied by conv2's hidden*7 input)
    NUM_CLASSES = 5
    E = 256                # edges

    x = jax.random.normal(k_x, (N, NUM_FEATURES), jnp.float32)
    edge_index = jax.random.randint(k_e, (2, E), 0, N, dtype=jnp.int32)

    # Dense adjacency mask: adj[target, source] = 1, plus self loops (PyG default).
    adj = jnp.zeros((N, N), jnp.float32)
    adj = adj.at[edge_index[1], edge_index[0]].set(1.0)
    adj = adj.at[jnp.arange(N), jnp.arange(N)].set(1.0)

    p1, p2, p3 = make_gat_params(k_p, NUM_FEATURES, HIDDEN, HEADS, NUM_CLASSES)

    out = gat_forward(x, adj, p1, p2, p3)
    out = jax.block_until_ready(out)

    assert out.shape == (N, NUM_CLASSES * 6), out.shape  # conv3 concat=True -> 6*num_classes
    assert jnp.all(jnp.isfinite(out))
    print("KERNEL_OK")
</pallas_src>

<mosaic_0001>
module attributes {stable_mosaic.version = 11 : i64} {
  func.func @_gat3_kernel(%arg0: memref<64x8xf32, #tpu.memory_space<vmem>>, %arg1: memref<64x64xf32, #tpu.memory_space<vmem>>, %arg2: memref<8x56xf32, #tpu.memory_space<vmem>>, %arg3: memref<448x56xf32, #tpu.memory_space<vmem>>, %arg4: memref<448x56xf32, #tpu.memory_space<vmem>>, %arg5: memref<7x56xf32, #tpu.memory_space<vmem>>, %arg6: memref<1x56xf32, #tpu.memory_space<vmem>>, %arg7: memref<56x48xf32, #tpu.memory_space<vmem>>, %arg8: memref<384x48xf32, #tpu.memory_space<vmem>>, %arg9: memref<384x48xf32, #tpu.memory_space<vmem>>, %arg10: memref<6x48xf32, #tpu.memory_space<vmem>>, %arg11: memref<1x48xf32, #tpu.memory_space<vmem>>, %arg12: memref<48x30xf32, #tpu.memory_space<vmem>>, %arg13: memref<384x30xf32, #tpu.memory_space<vmem>>, %arg14: memref<384x30xf32, #tpu.memory_space<vmem>>, %arg15: memref<6x30xf32, #tpu.memory_space<vmem>>, %arg16: memref<1x30xf32, #tpu.memory_space<vmem>>, %arg17: memref<64x30xf32, #tpu.memory_space<vmem>>) attributes {dimension_semantics = [], scalar_prefetch = 0 : i64, scratch_operands = 0 : i64, tpu.core_type = #tpu.core_type<tc>} {
    %c0 = arith.constant 0 : index
    %c0_0 = arith.constant 0 : index
    %0 = vector.load %arg1[%c0, %c0_0] : memref<64x64xf32, #tpu.memory_space<vmem>>, vector<64x64xf32>
    %cst = arith.constant 0.000000e+00 : f32
    %1 = vector.broadcast %cst : f32 to vector<64x64xf32>
    %2 = arith.cmpf ogt, %0, %1 : vector<64x64xf32>
    %cst_1 = arith.constant 0.000000e+00 : f32
    %cst_2 = arith.constant -1.000000e+30 : f32
    %3 = vector.broadcast %cst_1 : f32 to vector<64x64xf32>
    %4 = vector.broadcast %cst_2 : f32 to vector<64x64xf32>
    %5 = arith.select %2, %3, %4 : vector<64x64xi1>, vector<64x64xf32>
    %6 = tpu.concatenate %5, %5, %5, %5, %5, %5, %5 in 0 : vector<64x64xf32>, vector<64x64xf32>, vector<64x64xf32>, vector<64x64xf32>, vector<64x64xf32>, vector<64x64xf32>, vector<64x64xf32> -> vector<448x64xf32>
    %c0_3 = arith.constant 0 : index
    %c0_4 = arith.constant 0 : index
    %7 = vector.load %arg0[%c0_3, %c0_4] : memref<64x8xf32, #tpu.memory_space<vmem>>, vector<64x8xf32>
    %c0_5 = arith.constant 0 : index
    %c0_6 = arith.constant 0 : index
    %8 = vector.load %arg2[%c0_5, %c0_6] : memref<8x56xf32, #tpu.memory_space<vmem>>, vector<8x56xf32>
    %cst_7 = arith.constant dense<0.000000e+00> : vector<64x56xf32>
    %9 = tpu.matmul %7, %8, %cst_7 {dimension_numbers = #tpu.dot_dimension_numbers<[1], [0], [0], [1], [0, 0, 1, 1], [], []>} : vector<64x8xf32>, vector<8x56xf32>, vector<64x56xf32> -> vector<64x56xf32>
    %c0_8 = arith.constant 0 : index
    %c0_9 = arith.constant 0 : index
    %10 = vector.load %arg3[%c0_8, %c0_9] : memref<448x56xf32, #tpu.memory_space<vmem>>, vector<448x56xf32>
    %cst_10 = arith.constant dense<0.000000e+00> : vector<448x64xf32>
    %11 = tpu.matmul %10, %9, %cst_10 {dimension_numbers = #tpu.dot_dimension_numbers<[1], [1], [0], [0], [0, 0, 1, 0], [], []>} : vector<448x56xf32>, vector<64x56xf32>, vector<448x64xf32> -> vector<448x64xf32>
    %12 = tpu.concatenate %9, %9, %9, %9, %9, %9, %9 in 0 : vector<64x56xf32>, vector<64x56xf32>, vector<64x56xf32>, vector<64x56xf32>, vector<64x56xf32>, vector<64x56xf32>, vector<64x56xf32> -> vector<448x56xf32>
    %c0_11 = arith.constant 0 : index
    %c0_12 = arith.constant 0 : index
    %13 = vector.load %arg4[%c0_11, %c0_12] : memref<448x56xf32, #tpu.memory_space<vmem>>, vector<448x56xf32>
    %14 = arith.mulf %12, %13 : vector<448x56xf32>
    %cst_13 = arith.constant dense<0.000000e+00> : vector<448xf32>
    %15 = vector.multi_reduction <add>, %14, %cst_13 [1] : vector<448x56xf32> to vector<448xf32>
    %16 = vector.shape_cast %15 : vector<448xf32> to vector<448x1xf32>
    %17 = vector.broadcast %16 : vector<448x1xf32> to vector<448x64xf32>
    %18 = arith.addf %17, %11 : vector<448x64xf32>
    %cst_14 = arith.constant 0.000000e+00 : f32
    %19 = vector.broadcast %cst_14 : f32 to vector<448x64xf32>
    %20 = arith.cmpf ogt, %18, %19 : vector<448x64xf32>
    %cst_15 = arith.constant 2.000000e-01 : f32
    %21 = vector.broadcast %cst_15 : f32 to vector<448x64xf32>
    %22 = arith.mulf %21, %18 : vector<448x64xf32>
    %23 = arith.select %20, %18, %22 : vector<448x64xi1>, vector<448x64xf32>
    %24 = arith.addf %23, %6 : vector<448x64xf32>
    %cst_16 = arith.constant dense<0xFF800000> : vector<448xf32>
    %25 = vector.multi_reduction <maximumf>, %24, %cst_16 [1] : vector<448x64xf32> to vector<448xf32>
    %26 = vector.shape_cast %25 : vector<448xf32> to vector<448x1xf32>
    %27 = vector.broadcast %26 : vector<448x1xf32> to vector<448x64xf32>
    %28 = arith.subf %24, %27 : vector<448x64xf32>
    %29 = math.exp %28 : vector<448x64xf32>
    %cst_17 = arith.constant dense<0.000000e+00> : vector<448xf32>
    %30 = vector.multi_reduction <add>, %29, %cst_17 [1] : vector<448x64xf32> to vector<448xf32>
    %31 = vector.shape_cast %30 : vector<448xf32> to vector<448x1xf32>
    %32 = tpu.reciprocal %31 {approx = true} : vector<448x1xf32> -> vector<448x1xf32>
    %33 = vector.broadcast %32 : vector<448x1xf32> to vector<448x64xf32>
    %34 = arith.mulf %29, %33 : vector<448x64xf32>
    %35 = arith.truncf %34 : vector<448x64xf32> to vector<448x64xbf16>
    %36 = arith.truncf %9 : vector<64x56xf32> to vector<64x56xbf16>
    %cst_18 = arith.constant dense<0.000000e+00> : vector<448x56xf32>
    %37 = tpu.matmul %35, %36, %cst_18 {dimension_numbers = #tpu.dot_dimension_numbers<[1], [0], [0], [1], [0, 0, 1, 1], [], []>} : vector<448x64xbf16>, vector<64x56xbf16>, vector<448x56xf32> -> vector<448x56xf32>
    %c0_19 = arith.constant 0 : index
    %c0_20 = arith.constant 0 : index
    %38 = vector.load %arg5[%c0_19, %c0_20] : memref<7x56xf32, #tpu.memory_space<vmem>>, vector<7x56xf32>
    %39 = vector.extract_strided_slice %37 {offsets = [0, 0], sizes = [64, 56], strides = [1, 1]} : vector<448x56xf32> to vector<64x56xf32>
    %40 = vector.extract_strided_slice %38 {offsets = [0, 0], sizes = [1, 56], strides = [1, 1]} : vector<7x56xf32> to vector<1x56xf32>
    %41 = vector.broadcast %40 : vector<1x56xf32> to vector<64x56xf32>
    %42 = arith.mulf %39, %41 : vector<64x56xf32>
    %43 = vector.extract_strided_slice %37 {offsets = [64, 0], sizes = [64, 56], strides = [1, 1]} : vector<448x56xf32> to vector<64x56xf32>
    %44 = vector.extract_strided_slice %38 {offsets = [1, 0], sizes = [1, 56], strides = [1, 1]} : vector<7x56xf32> to vector<1x56xf32>
    %45 = vector.broadcast %44 : vector<1x56xf32> to vector<64x56xf32>
    %46 = arith.mulf %43, %45 : vector<64x56xf32>
    %47 = arith.addf %42, %46 : vector<64x56xf32>
    %48 = vector.extract_strided_slice %37 {offsets = [128, 0], sizes = [64, 56], strides = [1, 1]} : vector<448x56xf32> to vector<64x56xf32>
    %49 = vector.extract_strided_slice %38 {offsets = [2, 0], sizes = [1, 56], strides = [1, 1]} : vector<7x56xf32> to vector<1x56xf32>
    %50 = vector.broadcast %49 : vector<1x56xf32> to vector<64x56xf32>
    %51 = arith.mulf %48, %50 : vector<64x56xf32>
    %52 = arith.addf %47, %51 : vector<64x56xf32>
    %53 = vector.extract_strided_slice %37 {offsets = [192, 0], sizes = [64, 56], strides = [1, 1]} : vector<448x56xf32> to vector<64x56xf32>
    %54 = vector.extract_strided_slice %38 {offsets = [3, 0], sizes = [1, 56], strides = [1, 1]} : vector<7x56xf32> to vector<1x56xf32>
    %55 = vector.broadcast %54 : vector<1x56xf32> to vector<64x56xf32>
    %56 = arith.mulf %53, %55 : vector<64x56xf32>
    %57 = arith.addf %52, %56 : vector<64x56xf32>
    %58 = vector.extract_strided_slice %37 {offsets = [256, 0], sizes = [64, 56], strides = [1, 1]} : vector<448x56xf32> to vector<64x56xf32>
    %59 = vector.extract_strided_slice %38 {offsets = [4, 0], sizes = [1, 56], strides = [1, 1]} : vector<7x56xf32> to vector<1x56xf32>
    %60 = vector.broadcast %59 : vector<1x56xf32> to vector<64x56xf32>
    %61 = arith.mulf %58, %60 : vector<64x56xf32>
    %62 = arith.addf %57, %61 : vector<64x56xf32>
    %63 = vector.extract_strided_slice %37 {offsets = [320, 0], sizes = [64, 56], strides = [1, 1]} : vector<448x56xf32> to vector<64x56xf32>
    %64 = vector.extract_strided_slice %38 {offsets = [5, 0], sizes = [1, 56], strides = [1, 1]} : vector<7x56xf32> to vector<1x56xf32>
    %65 = vector.broadcast %64 : vector<1x56xf32> to vector<64x56xf32>
    %66 = arith.mulf %63, %65 : vector<64x56xf32>
    %67 = arith.addf %62, %66 : vector<64x56xf32>
    %68 = vector.extract_strided_slice %37 {offsets = [384, 0], sizes = [64, 56], strides = [1, 1]} : vector<448x56xf32> to vector<64x56xf32>
    %69 = vector.extract_strided_slice %38 {offsets = [6, 0], sizes = [1, 56], strides = [1, 1]} : vector<7x56xf32> to vector<1x56xf32>
    %70 = vector.broadcast %69 : vector<1x56xf32> to vector<64x56xf32>
    %71 = arith.mulf %68, %70 : vector<64x56xf32>
    %72 = arith.addf %67, %71 : vector<64x56xf32>
    %c0_21 = arith.constant 0 : index
    %c0_22 = arith.constant 0 : index
    %73 = vector.load %arg6[%c0_21, %c0_22] : memref<1x56xf32, #tpu.memory_space<vmem>>, vector<1x56xf32>
    %74 = vector.broadcast %73 : vector<1x56xf32> to vector<64x56xf32>
    %75 = arith.addf %72, %74 : vector<64x56xf32>
    %cst_23 = arith.constant 0.000000e+00 : f32
    %76 = vector.broadcast %cst_23 : f32 to vector<64x56xf32>
    %77 = arith.maximumf %75, %76 : vector<64x56xf32>
    %c0_24 = arith.constant 0 : index
    %c0_25 = arith.constant 0 : index
    %78 = vector.load %arg7[%c0_24, %c0_25] : memref<56x48xf32, #tpu.memory_space<vmem>>, vector<56x48xf32>
    %cst_26 = arith.constant dense<0.000000e+00> : vector<64x48xf32>
    %79 = tpu.matmul %77, %78, %cst_26 {dimension_numbers = #tpu.dot_dimension_numbers<[1], [0], [0], [1], [0, 0, 1, 1], [], []>} : vector<64x56xf32>, vector<56x48xf32>, vector<64x48xf32> -> vector<64x48xf32>
    %c0_27 = arith.constant 0 : index
    %c0_28 = arith.constant 0 : index
    %80 = vector.load %arg8[%c0_27, %c0_28] : memref<384x48xf32, #tpu.memory_space<vmem>>, vector<384x48xf32>
    %cst_29 = arith.constant dense<0.000000e+00> : vector<384x64xf32>
    %81 = tpu.matmul %80, %79, %cst_29 {dimension_numbers = #tpu.dot_dimension_numbers<[1], [1], [0], [0], [0, 0, 1, 0], [], []>} : vector<384x48xf32>, vector<64x48xf32>, vector<384x64xf32> -> vector<384x64xf32>
    %82 = tpu.concatenate %79, %79, %79, %79, %79, %79 in 0 : vector<64x48xf32>, vector<64x48xf32>, vector<64x48xf32>, vector<64x48xf32>, vector<64x48xf32>, vector<64x48xf32> -> vector<384x48xf32>
    %c0_30 = arith.constant 0 : index
    %c0_31 = arith.constant 0 : index
    %83 = vector.load %arg9[%c0_30, %c0_31] : memref<384x48xf32, #tpu.memory_space<vmem>>, vector<384x48xf32>
    %84 = arith.mulf %82, %83 : vector<384x48xf32>
    %cst_32 = arith.constant dense<0.000000e+00> : vector<384xf32>
    %85 = vector.multi_reduction <add>, %84, %cst_32 [1] : vector<384x48xf32> to vector<384xf32>
    %86 = vector.shape_cast %85 : vector<384xf32> to vector<384x1xf32>
    %87 = vector.broadcast %86 : vector<384x1xf32> to vector<384x64xf32>
    %88 = arith.addf %87, %81 : vector<384x64xf32>
    %cst_33 = arith.constant 0.000000e+00 : f32
    %89 = vector.broadcast %cst_33 : f32 to vector<384x64xf32>
    %90 = arith.cmpf ogt, %88, %89 : vector<384x64xf32>
    %cst_34 = arith.constant 2.000000e-01 : f32
    %91 = vector.broadcast %cst_34 : f32 to vector<384x64xf32>
    %92 = arith.mulf %91, %88 : vector<384x64xf32>
    %93 = arith.select %90, %88, %92 : vector<384x64xi1>, vector<384x64xf32>
    %94 = vector.extract_strided_slice %6 {offsets = [0, 0], sizes = [384, 64], strides = [1, 1]} : vector<448x64xf32> to vector<384x64xf32>
    %95 = arith.addf %93, %94 : vector<384x64xf32>
    %cst_35 = arith.constant dense<0xFF800000> : vector<384xf32>
    %96 = vector.multi_reduction <maximumf>, %95, %cst_35 [1] : vector<384x64xf32> to vector<384xf32>
    %97 = vector.shape_cast %96 : vector<384xf32> to vector<384x1xf32>
    %98 = vector.broadcast %97 : vector<384x1xf32> to vector<384x64xf32>
    %99 = arith.subf %95, %98 : vector<384x64xf32>
    %100 = math.exp %99 : vector<384x64xf32>
    %cst_36 = arith.constant dense<0.000000e+00> : vector<384xf32>
    %101 = vector.multi_reduction <add>, %100, %cst_36 [1] : vector<384x64xf32> to vector<384xf32>
    %102 = vector.shape_cast %101 : vector<384xf32> to vector<384x1xf32>
    %103 = tpu.reciprocal %102 {approx = true} : vector<384x1xf32> -> vector<384x1xf32>
    %104 = vector.broadcast %103 : vector<384x1xf32> to vector<384x64xf32>
    %105 = arith.mulf %100, %104 : vector<384x64xf32>
    %106 = arith.truncf %105 : vector<384x64xf32> to vector<384x64xbf16>
    %107 = arith.truncf %79 : vector<64x48xf32> to vector<64x48xbf16>
    %cst_37 = arith.constant dense<0.000000e+00> : vector<384x48xf32>
    %108 = tpu.matmul %106, %107, %cst_37 {dimension_numbers = #tpu.dot_dimension_numbers<[1], [0], [0], [1], [0, 0, 1, 1], [], []>} : vector<384x64xbf16>, vector<64x48xbf16>, vector<384x48xf32> -> vector<384x48xf32>
    %c0_38 = arith.constant 0 : index
    %c0_39 = arith.constant 0 : index
    %109 = vector.load %arg10[%c0_38, %c0_39] : memref<6x48xf32, #tpu.memory_space<vmem>>, vector<6x48xf32>
    %110 = vector.extract_strided_slice %108 {offsets = [0, 0], sizes = [64, 48], strides = [1, 1]} : vector<384x48xf32> to vector<64x48xf32>
    %111 = vector.extract_strided_slice %109 {offsets = [0, 0], sizes = [1, 48], strides = [1, 1]} : vector<6x48xf32> to vector<1x48xf32>
    %112 = vector.broadcast %111 : vector<1x48xf32> to vector<64x48xf32>
    %113 = arith.mulf %110, %112 : vector<64x48xf32>
    %114 = vector.extract_strided_slice %108 {offsets = [64, 0], sizes = [64, 48], strides = [1, 1]} : vector<384x48xf32> to vector<64x48xf32>
    %115 = vector.extract_strided_slice %109 {offsets = [1, 0], sizes = [1, 48], strides = [1, 1]} : vector<6x48xf32> to vector<1x48xf32>
    %116 = vector.broadcast %115 : vector<1x48xf32> to vector<64x48xf32>
    %117 = arith.mulf %114, %116 : vector<64x48xf32>
    %118 = arith.addf %113, %117 : vector<64x48xf32>
    %119 = vector.extract_strided_slice %108 {offsets = [128, 0], sizes = [64, 48], strides = [1, 1]} : vector<384x48xf32> to vector<64x48xf32>
    %120 = vector.extract_strided_slice %109 {offsets = [2, 0], sizes = [1, 48], strides = [1, 1]} : vector<6x48xf32> to vector<1x48xf32>
    %121 = vector.broadcast %120 : vector<1x48xf32> to vector<64x48xf32>
    %122 = arith.mulf %119, %121 : vector<64x48xf32>
    %123 = arith.addf %118, %122 : vector<64x48xf32>
    %124 = vector.extract_strided_slice %108 {offsets = [192, 0], sizes = [64, 48], strides = [1, 1]} : vector<384x48xf32> to vector<64x48xf32>
    %125 = vector.extract_strided_slice %109 {offsets = [3, 0], sizes = [1, 48], strides = [1, 1]} : vector<6x48xf32> to vector<1x48xf32>
    %126 = vector.broadcast %125 : vector<1x48xf32> to vector<64x48xf32>
    %127 = arith.mulf %124, %126 : vector<64x48xf32>
    %128 = arith.addf %123, %127 : vector<64x48xf32>
    %129 = vector.extract_strided_slice %108 {offsets = [256, 0], sizes = [64, 48], strides = [1, 1]} : vector<384x48xf32> to vector<64x48xf32>
    %130 = vector.extract_strided_slice %109 {offsets = [4, 0], sizes = [1, 48], strides = [1, 1]} : vector<6x48xf32> to vector<1x48xf32>
    %131 = vector.broadcast %130 : vector<1x48xf32> to vector<64x48xf32>
    %132 = arith.mulf %129, %131 : vector<64x48xf32>
    %133 = arith.addf %128, %132 : vector<64x48xf32>
    %134 = vector.extract_strided_slice %108 {offsets = [320, 0], sizes = [64, 48], strides = [1, 1]} : vector<384x48xf32> to vector<64x48xf32>
    %135 = vector.extract_strided_slice %109 {offsets = [5, 0], sizes = [1, 48], strides = [1, 1]} : vector<6x48xf32> to vector<1x48xf32>
    %136 = vector.broadcast %135 : vector<1x48xf32> to vector<64x48xf32>
    %137 = arith.mulf %134, %136 : vector<64x48xf32>
    %138 = arith.addf %133, %137 : vector<64x48xf32>
    %c0_40 = arith.constant 0 : index
    %c0_41 = arith.constant 0 : index
    %139 = vector.load %arg11[%c0_40, %c0_41] : memref<1x48xf32, #tpu.memory_space<vmem>>, vector<1x48xf32>
    %140 = vector.broadcast %139 : vector<1x48xf32> to vector<64x48xf32>
    %141 = arith.addf %138, %140 : vector<64x48xf32>
    %cst_42 = arith.constant 0.000000e+00 : f32
    %142 = vector.broadcast %cst_42 : f32 to vector<64x48xf32>
    %143 = arith.maximumf %141, %142 : vector<64x48xf32>
    %c0_43 = arith.constant 0 : index
    %c0_44 = arith.constant 0 : index
    %144 = vector.load %arg12[%c0_43, %c0_44] : memref<48x30xf32, #tpu.memory_space<vmem>>, vector<48x30xf32>
    %cst_45 = arith.constant dense<0.000000e+00> : vector<64x30xf32>
    %145 = tpu.matmul %143, %144, %cst_45 {dimension_numbers = #tpu.dot_dimension_numbers<[1], [0], [0], [1], [0, 0, 1, 1], [], []>} : vector<64x48xf32>, vector<48x30xf32>, vector<64x30xf32> -> vector<64x30xf32>
    %c0_46 = arith.constant 0 : index
    %c0_47 = arith.constant 0 : index
    %146 = vector.load %arg13[%c0_46, %c0_47] : memref<384x30xf32, #tpu.memory_space<vmem>>, vector<384x30xf32>
    %cst_48 = arith.constant dense<0.000000e+00> : vector<384x64xf32>
    %147 = tpu.matmul %146, %145, %cst_48 {dimension_numbers = #tpu.dot_dimension_numbers<[1], [1], [0], [0], [0, 0, 1, 0], [], []>} : vector<384x30xf32>, vector<64x30xf32>, vector<384x64xf32> -> vector<384x64xf32>
    %148 = tpu.concatenate %145, %145, %145, %145, %145, %145 in 0 : vector<64x30xf32>, vector<64x30xf32>, vector<64x30xf32>, vector<64x30xf32>, vector<64x30xf32>, vector<64x30xf32> -> vector<384x30xf32>
    %c0_49 = arith.constant 0 : index
    %c0_50 = arith.constant 0 : index
    %149 = vector.load %arg14[%c0_49, %c0_50] : memref<384x30xf32, #tpu.memory_space<vmem>>, vector<384x30xf32>
    %150 = arith.mulf %148, %149 : vector<384x30xf32>
    %cst_51 = arith.constant dense<0.000000e+00> : vector<384xf32>
    %151 = vector.multi_reduction <add>, %150, %cst_51 [1] : vector<384x30xf32> to vector<384xf32>
    %152 = vector.shape_cast %151 : vector<384xf32> to vector<384x1xf32>
    %153 = vector.broadcast %152 : vector<384x1xf32> to vector<384x64xf32>
    %154 = arith.addf %153, %147 : vector<384x64xf32>
    %cst_52 = arith.constant 0.000000e+00 : f32
    %155 = vector.broadcast %cst_52 : f32 to vector<384x64xf32>
    %156 = arith.cmpf ogt, %154, %155 : vector<384x64xf32>
    %cst_53 = arith.constant 2.000000e-01 : f32
    %157 = vector.broadcast %cst_53 : f32 to vector<384x64xf32>
    %158 = arith.mulf %157, %154 : vector<384x64xf32>
    %159 = arith.select %156, %154, %158 : vector<384x64xi1>, vector<384x64xf32>
    %160 = vector.extract_strided_slice %6 {offsets = [0, 0], sizes = [384, 64], strides = [1, 1]} : vector<448x64xf32> to vector<384x64xf32>
    %161 = arith.addf %159, %160 : vector<384x64xf32>
    %cst_54 = arith.constant dense<0xFF800000> : vector<384xf32>
    %162 = vector.multi_reduction <maximumf>, %161, %cst_54 [1] : vector<384x64xf32> to vector<384xf32>
    %163 = vector.shape_cast %162 : vector<384xf32> to vector<384x1xf32>
    %164 = vector.broadcast %163 : vector<384x1xf32> to vector<384x64xf32>
    %165 = arith.subf %161, %164 : vector<384x64xf32>
    %166 = math.exp %165 : vector<384x64xf32>
    %cst_55 = arith.constant dense<0.000000e+00> : vector<384xf32>
    %167 = vector.multi_reduction <add>, %166, %cst_55 [1] : vector<384x64xf32> to vector<384xf32>
    %168 = vector.shape_cast %167 : vector<384xf32> to vector<384x1xf32>
    %169 = tpu.reciprocal %168 {approx = true} : vector<384x1xf32> -> vector<384x1xf32>
    %170 = vector.broadcast %169 : vector<384x1xf32> to vector<384x64xf32>
    %171 = arith.mulf %166, %170 : vector<384x64xf32>
    %172 = arith.truncf %171 : vector<384x64xf32> to vector<384x64xbf16>
    %173 = arith.truncf %145 : vector<64x30xf32> to vector<64x30xbf16>
    %cst_56 = arith.constant dense<0.000000e+00> : vector<384x30xf32>
    %174 = tpu.matmul %172, %173, %cst_56 {dimension_numbers = #tpu.dot_dimension_numbers<[1], [0], [0], [1], [0, 0, 1, 1], [], []>} : vector<384x64xbf16>, vector<64x30xbf16>, vector<384x30xf32> -> vector<384x30xf32>
    %c0_57 = arith.constant 0 : index
    %c0_58 = arith.constant 0 : index
    %175 = vector.load %arg15[%c0_57, %c0_58] : memref<6x30xf32, #tpu.memory_space<vmem>>, vector<6x30xf32>
    %176 = vector.extract_strided_slice %174 {offsets = [0, 0], sizes = [64, 30], strides = [1, 1]} : vector<384x30xf32> to vector<64x30xf32>
    %177 = vector.extract_strided_slice %175 {offsets = [0, 0], sizes = [1, 30], strides = [1, 1]} : vector<6x30xf32> to vector<1x30xf32>
    %178 = vector.broadcast %177 : vector<1x30xf32> to vector<64x30xf32>
    %179 = arith.mulf %176, %178 : vector<64x30xf32>
    %180 = vector.extract_strided_slice %174 {offsets = [64, 0], sizes = [64, 30], strides = [1, 1]} : vector<384x30xf32> to vector<64x30xf32>
    %181 = vector.extract_strided_slice %175 {offsets = [1, 0], sizes = [1, 30], strides = [1, 1]} : vector<6x30xf32> to vector<1x30xf32>
    %182 = vector.broadcast %181 : vector<1x30xf32> to vector<64x30xf32>
    %183 = arith.mulf %180, %182 : vector<64x30xf32>
    %184 = arith.addf %179, %183 : vector<64x30xf32>
    %185 = vector.extract_strided_slice %174 {offsets = [128, 0], sizes = [64, 30], strides = [1, 1]} : vector<384x30xf32> to vector<64x30xf32>
    %186 = vector.extract_strided_slice %175 {offsets = [2, 0], sizes = [1, 30], strides = [1, 1]} : vector<6x30xf32> to vector<1x30xf32>
    %187 = vector.broadcast %186 : vector<1x30xf32> to vector<64x30xf32>
    %188 = arith.mulf %185, %187 : vector<64x30xf32>
    %189 = arith.addf %184, %188 : vector<64x30xf32>
    %190 = vector.extract_strided_slice %174 {offsets = [192, 0], sizes = [64, 30], strides = [1, 1]} : vector<384x30xf32> to vector<64x30xf32>
    %191 = vector.extract_strided_slice %175 {offsets = [3, 0], sizes = [1, 30], strides = [1, 1]} : vector<6x30xf32> to vector<1x30xf32>
    %192 = vector.broadcast %191 : vector<1x30xf32> to vector<64x30xf32>
    %193 = arith.mulf %190, %192 : vector<64x30xf32>
    %194 = arith.addf %189, %193 : vector<64x30xf32>
    %195 = vector.extract_strided_slice %174 {offsets = [256, 0], sizes = [64, 30], strides = [1, 1]} : vector<384x30xf32> to vector<64x30xf32>
    %196 = vector.extract_strided_slice %175 {offsets = [4, 0], sizes = [1, 30], strides = [1, 1]} : vector<6x30xf32> to vector<1x30xf32>
    %197 = vector.broadcast %196 : vector<1x30xf32> to vector<64x30xf32>
    %198 = arith.mulf %195, %197 : vector<64x30xf32>
    %199 = arith.addf %194, %198 : vector<64x30xf32>
    %200 = vector.extract_strided_slice %174 {offsets = [320, 0], sizes = [64, 30], strides = [1, 1]} : vector<384x30xf32> to vector<64x30xf32>
    %201 = vector.extract_strided_slice %175 {offsets = [5, 0], sizes = [1, 30], strides = [1, 1]} : vector<6x30xf32> to vector<1x30xf32>
    %202 = vector.broadcast %201 : vector<1x30xf32> to vector<64x30xf32>
    %203 = arith.mulf %200, %202 : vector<64x30xf32>
    %204 = arith.addf %199, %203 : vector<64x30xf32>
    %c0_59 = arith.constant 0 : index
    %c0_60 = arith.constant 0 : index
    %205 = vector.load %arg16[%c0_59, %c0_60] : memref<1x30xf32, #tpu.memory_space<vmem>>, vector<1x30xf32>
    %206 = vector.broadcast %205 : vector<1x30xf32> to vector<64x30xf32>
    %207 = arith.addf %204, %206 : vector<64x30xf32>
    %c0_61 = arith.constant 0 : index
    %c0_62 = arith.constant 0 : index
    %208 = vector.load %arg17[%c0_61, %c0_62] : memref<64x30xf32, #tpu.memory_space<vmem>>, vector<64x30xf32>
    tpu.vector_store %arg17[%c0_61, %c0_62], %207 {strides = array<i32>} : memref<64x30xf32, #tpu.memory_space<vmem>>, vector<64x30xf32>,
    return
  }
}

</mosaic_0001>

<llo_original>
// kernel: gat_forward.1
$region0: #{gat_forward.1}
  #allocation0 [shape = 'u32[]', space=smem, size = 0x4, offset = 0x4, fixed_abs, tag = 'smem constant byte address 0x4 - core index']
  #allocation1 [shape = 'u32[72,128]{1,0:T(1,128)}', space=vmem, size = 0x9000, scoped, tag = 'internal scratch']
  %s0 = inlined_call_operand.vmem [shape: f32[64,8], index: 0, kind: input, shape index: {}]
  %s1 = inlined_call_operand.vmem [shape: f32[64,64], index: 1, kind: input, shape index: {}]
  %s2 = inlined_call_operand.vmem [shape: f32[8,56], index: 2, kind: input, shape index: {}]
  %s3 = inlined_call_operand.vmem [shape: f32[448,56], index: 3, kind: input, shape index: {}]
  %s4 = inlined_call_operand.vmem [shape: f32[448,56], index: 4, kind: input, shape index: {}]
  %s5 = inlined_call_operand.vmem [shape: f32[7,56], index: 5, kind: input, shape index: {}]
  %s6 = inlined_call_operand.vmem [shape: f32[1,56], index: 6, kind: input, shape index: {}]
  %s7 = inlined_call_operand.vmem [shape: f32[56,48], index: 7, kind: input, shape index: {}]
  %s8 = inlined_call_operand.vmem [shape: f32[384,48], index: 8, kind: input, shape index: {}]
  %s9 = inlined_call_operand.vmem [shape: f32[384,48], index: 9, kind: input, shape index: {}]
  %s10 = inlined_call_operand.vmem [shape: f32[6,48], index: 10, kind: input, shape index: {}]
  %s11 = inlined_call_operand.vmem [shape: f32[1,48], index: 11, kind: input, shape index: {}]
  %s12 = inlined_call_operand.vmem [shape: f32[48,30], index: 12, kind: input, shape index: {}]
  %s13 = inlined_call_operand.vmem [shape: f32[384,30], index: 13, kind: input, shape index: {}]
  %s14 = inlined_call_operand.vmem [shape: f32[384,30], index: 14, kind: input, shape index: {}]
  %s15 = inlined_call_operand.vmem [shape: f32[6,30], index: 15, kind: input, shape index: {}]
  %s16 = inlined_call_operand.vmem [shape: f32[1,30], index: 16, kind: input, shape index: {}]
  %s17 = inlined_call_operand.vmem [shape: f32[64,30], index: 17, kind: output, shape index: {}]
  %s18 = sld [smem:[#allocation0]]
  $region78: #{gat_forward.1} parent=0
    _
  %s20 = ssub.s32 1, %s18
  %s21 = scalar_select 0, %s20, %s18
  // Predicated region
  $region2: #{gat_forward.1} parent=0 // pred_check
    _
  $region3: #{gat_forward.1} parent=0 // pred_check_branch
    %23 = sbr.rel (0) target = $region5
  $region4: #{gat_forward.1} parent=0 // pred_region
    _
  $region5: #{gat_forward.1} parent=0 // pred_fallthru
    _
  // Predicated region
  $region6: #{gat_forward.1} parent=0 // pred_check
    _
  $region7: #{gat_forward.1} parent=0 // pred_check_branch
    %25 = sbr.rel (0) target = $region9
  $region8: #{gat_forward.1} parent=0 // pred_region
    _
  $region9: #{gat_forward.1} parent=0 // pred_fallthru
    _
  // Predicated region
  $region10: #{gat_forward.1} parent=0 // pred_check
    _
  $region11: #{gat_forward.1} parent=0 // pred_check_branch
    %27 = sbr.rel (0) target = $region13
  $region12: #{gat_forward.1} parent=0 // pred_region
    _
  $region13: #{gat_forward.1} parent=0 // pred_fallthru
    _
  // Predicated region
  $region14: #{gat_forward.1} parent=0 // pred_check
    _
  $region15: #{gat_forward.1} parent=0 // pred_check_branch
    %29 = sbr.rel (0) target = $region17
  $region16: #{gat_forward.1} parent=0 // pred_region
    _
  $region17: #{gat_forward.1} parent=0 // pred_fallthru
    _
  // Predicated region
  $region18: #{gat_forward.1} parent=0 // pred_check
    _
  $region19: #{gat_forward.1} parent=0 // pred_check_branch
    %31 = sbr.rel (0) target = $region21
  $region20: #{gat_forward.1} parent=0 // pred_region
    _
  $region21: #{gat_forward.1} parent=0 // pred_fallthru
    _
  // Predicated region
  $region22: #{gat_forward.1} parent=0 // pred_check
    _
  $region23: #{gat_forward.1} parent=0 // pred_check_branch
    %33 = sbr.rel (0) target = $region25
  $region24: #{gat_forward.1} parent=0 // pred_region
    _
  $region25: #{gat_forward.1} parent=0 // pred_fallthru
    _
  // Predicated region
  $region26: #{gat_forward.1} parent=0 // pred_check
    _
  $region27: #{gat_forward.1} parent=0 // pred_check_branch
    %35 = sbr.rel (0) target = $region29
  $region28: #{gat_forward.1} parent=0 // pred_region
    _
  $region29: #{gat_forward.1} parent=0 // pred_fallthru
    _
  // Predicated region
  $region30: #{gat_forward.1} parent=0 // pred_check
    _
  $region31: #{gat_forward.1} parent=0 // pred_check_branch
    %37 = sbr.rel (0) target = $region33
  $region32: #{gat_forward.1} parent=0 // pred_region
    _
  $region33: #{gat_forward.1} parent=0 // pred_fallthru
    _
  // Predicated region
  $region34: #{gat_forward.1} parent=0 // pred_check
    _
  $region35: #{gat_forward.1} parent=0 // pred_check_branch
    %39 = sbr.rel (0) target = $region37
  $region36: #{gat_forward.1} parent=0 // pred_region
    _
  $region37: #{gat_forward.1} parent=0 // pred_fallthru
    _
  // Predicated region
  $region38: #{gat_forward.1} parent=0 // pred_check
    _
  $region39: #{gat_forward.1} parent=0 // pred_check_branch
    %41 = sbr.rel (0) target = $region41
  $region40: #{gat_forward.1} parent=0 // pred_region
    _
  $region41: #{gat_forward.1} parent=0 // pred_fallthru
    _
  // Predicated region
  $region42: #{gat_forward.1} parent=0 // pred_check
    _
  $region43: #{gat_forward.1} parent=0 // pred_check_branch
    %43 = sbr.rel (0) target = $region45
  $region44: #{gat_forward.1} parent=0 // pred_region
    _
  $region45: #{gat_forward.1} parent=0 // pred_fallthru
    _
  // Predicated region
  $region46: #{gat_forward.1} parent=0 // pred_check
    _
  $region47: #{gat_forward.1} parent=0 // pred_check_branch
    %45 = sbr.rel (0) target = $region49
  $region48: #{gat_forward.1} parent=0 // pred_region
    _
  $region49: #{gat_forward.1} parent=0 // pred_fallthru
    _
  // Predicated region
  $region50: #{gat_forward.1} parent=0 // pred_check
    _
  $region51: #{gat_forward.1} parent=0 // pred_check_branch
    %47 = sbr.rel (0) target = $region53
  $region52: #{gat_forward.1} parent=0 // pred_region
    _
  $region53: #{gat_forward.1} parent=0 // pred_fallthru
    _
  // Predicated region
  $region54: #{gat_forward.1} parent=0 // pred_check
    _
  $region55: #{gat_forward.1} parent=0 // pred_check_branch
    %49 = sbr.rel (0) target = $region57
  $region56: #{gat_forward.1} parent=0 // pred_region
    _
  $region57: #{gat_forward.1} parent=0 // pred_fallthru
    _
  // Predicated region
  $region58: #{gat_forward.1} parent=0 // pred_check
    _
  $region59: #{gat_forward.1} parent=0 // pred_check_branch
    %51 = sbr.rel (0) target = $region61
  $region60: #{gat_forward.1} parent=0 // pred_region
    _
  $region61: #{gat_forward.1} parent=0 // pred_fallthru
    _
  // Predicated region
  $region62: #{gat_forward.1} parent=0 // pred_check
    _
  $region63: #{gat_forward.1} parent=0 // pred_check_branch
    %53 = sbr.rel (0) target = $region65
  $region64: #{gat_forward.1} parent=0 // pred_region
    _
  $region65: #{gat_forward.1} parent=0 // pred_fallthru
    _
  // Predicated region
  $region66: #{gat_forward.1} parent=0 // pred_check
    _
  $region67: #{gat_forward.1} parent=0 // pred_check_branch
    %55 = sbr.rel (0) target = $region69
  $region68: #{gat_forward.1} parent=0 // pred_region
    _
  $region69: #{gat_forward.1} parent=0 // pred_fallthru
    _
  %v57 = vld [vmem:[%s1] sm:$0xff]
  %v58 = vld [vmem:[%s1 + $0x8] sm:$0xff]
  %v59 = vld [vmem:[%s1 + $0x10] sm:$0xff]
  %v60 = vld [vmem:[%s1 + $0x18] sm:$0xff]
  %v61 = vld [vmem:[%s1 + $0x20] sm:$0xff]
  %v62 = vld [vmem:[%s1 + $0x28] sm:$0xff]
  %v63 = vld [vmem:[%s1 + $0x30] sm:$0xff]
  %v64 = vld [vmem:[%s1 + $0x38] sm:$0xff]
  %vm65 = vcmp.gt.f32.partialorder %v57, 0.0
  %vm66 = vcmp.gt.f32.partialorder %v58, 0.0
  %vm67 = vcmp.gt.f32.partialorder %v59, 0.0
  %vm68 = vcmp.gt.f32.partialorder %v60, 0.0
  %vm69 = vcmp.gt.f32.partialorder %v61, 0.0
  %vm70 = vcmp.gt.f32.partialorder %v62, 0.0
  %vm71 = vcmp.gt.f32.partialorder %v63, 0.0
  %vm72 = vcmp.gt.f32.partialorder %v64, 0.0
  %v73 = vsel %vm65, 0.0, -1e+30
  %v74 = vsel %vm66, 0.0, -1e+30
  %v75 = vsel %vm67, 0.0, -1e+30
  %v76 = vsel %vm68, 0.0, -1e+30
  %v77 = vsel %vm69, 0.0, -1e+30
  %v78 = vsel %vm70, 0.0, -1e+30
  %v79 = vsel %vm71, 0.0, -1e+30
  %v80 = vsel %vm72, 0.0, -1e+30
  %v81 = vld [vmem:[%s0] sm:$0xff]
  %v82 = vld [vmem:[%s0 + $0x8] sm:$0xff]
  %v83 = vld [vmem:[%s0 + $0x10] sm:$0xff]
  %v84 = vld [vmem:[%s0 + $0x18] sm:$0xff]
  %v85 = vld [vmem:[%s0 + $0x20] sm:$0xff]
  %v86 = vld [vmem:[%s0 + $0x28] sm:$0xff]
  %v87 = vld [vmem:[%s0 + $0x30] sm:$0xff]
  %v88 = vld [vmem:[%s0 + $0x38] sm:$0xff]
  %v89 = vld [vmem:[%s2] sm:$0xff]
  %vm90 = vcmask 64512
  %v92 = vsel %vm90, %v81, 0
  %v95 = vsel %vm90, %v82, 0
  %v98 = vsel %vm90, %v83, 0
  %v101 = vsel %vm90, %v84, 0
  %v104 = vsel %vm90, %v85, 0
  %v107 = vsel %vm90, %v86, 0
  %v110 = vsel %vm90, %v87, 0
  %v113 = vsel %vm90, %v88, 0
  %115 = vmatpush.msra.mxu0 0.0
  %116 = vmatpush.msra.mxu0 0.0
  %117 = vmatpush.msra.mxu0 0.0
  %118 = vmatpush.msra.mxu0 0.0
  %119 = vmatpush.msra.mxu0 0.0
  %120 = vmatpush.msra.mxu0 0.0
  %121 = vmatpush.msra.mxu0 0.0
  %122 = vmatpush.msra.mxu0 0.0
  %123 = vmatpush.msra.mxu0 0.0
  %124 = vmatpush.msra.mxu0 0.0
  %125 = vmatpush.msra.mxu0 0.0
  %126 = vmatpush.msra.mxu0 0.0
  %127 = vmatpush.msra.mxu0 0.0
  %128 = vmatpush.msra.mxu0 0.0
  %129 = vmatpush.msra.mxu0 0.0
  %130 = vmatpush.msra.mxu0 %v89
  %131 = vmatmul.f32.gmra.mxu0 %v92
  %v132 = vpop.f32.mrf.mxu0
  %v133 = vadd.f32 0.0, %v132
  %134 = vmatmul.f32.gmra.mxu0 %v95
  %v135 = vpop.f32.mrf.mxu0
  %v136 = vadd.f32 0.0, %v135
  %137 = vmatmul.f32.gmra.mxu0 %v98
  %v138 = vpop.f32.mrf.mxu0
  %v139 = vadd.f32 0.0, %v138
  %140 = vmatmul.f32.gmra.mxu0 %v101
  %v141 = vpop.f32.mrf.mxu0
  %v142 = vadd.f32 0.0, %v141
  %143 = vmatmul.f32.gmra.mxu0 %v104
  %v144 = vpop.f32.mrf.mxu0
  %v145 = vadd.f32 0.0, %v144
  %146 = vmatmul.f32.gmra.mxu0 %v107
  %v147 = vpop.f32.mrf.mxu0
  %v148 = vadd.f32 0.0, %v147
  %149 = vmatmul.f32.gmra.mxu0 %v110
  %v150 = vpop.f32.mrf.mxu0
  %v151 = vadd.f32 0.0, %v150
  %152 = vmatmul.f32.gmra.mxu0 %v113
  %v153 = vpop.f32.mrf.mxu0
  %v154 = vadd.f32 0.0, %v153
  %155 = vdwg.mxu0
  %v156 = vld [vmem:[%s3] sm:$0xff]
  %v157 = vld [vmem:[%s3 + $0x8] sm:$0xff]
  %v158 = vld [vmem:[%s3 + $0x10] sm:$0xff]
  %v159 = vld [vmem:[%s3 + $0x18] sm:$0xff]
  %v160 = vld [vmem:[%s3 + $0x20] sm:$0xff]
  %v161 = vld [vmem:[%s3 + $0x28] sm:$0xff]
  %v162 = vld [vmem:[%s3 + $0x30] sm:$0xff]
  %v163 = vld [vmem:[%s3 + $0x38] sm:$0xff]
  %v164 = vld [vmem:[%s3 + $0x40] sm:$0xff]
  %v165 = vld [vmem:[%s3 + $0x48] sm:$0xff]
  %v166 = vld [vmem:[%s3 + $0x50] sm:$0xff]
  %v167 = vld [vmem:[%s3 + $0x58] sm:$0xff]
  %v168 = vld [vmem:[%s3 + $0x60] sm:$0xff]
  %v169 = vld [vmem:[%s3 + $0x68] sm:$0xff]
  %v170 = vld [vmem:[%s3 + $0x70] sm:$0xff]
  %v171 = vld [vmem:[%s3 + $0x78] sm:$0xff]
  %v172 = vld [vmem:[%s3 + $0x80] sm:$0xff]
  %v173 = vld [vmem:[%s3 + $0x88] sm:$0xff]
  %v174 = vld [vmem:[%s3 + $0x90] sm:$0xff]
  %v175 = vld [vmem:[%s3 + $0x98] sm:$0xff]
  %v176 = vld [vmem:[%s3 + $0xa0] sm:$0xff]
  %v177 = vld [vmem:[%s3 + $0xa8] sm:$0xff]
  %v178 = vld [vmem:[%s3 + $0xb0] sm:$0xff]
  %v179 = vld [vmem:[%s3 + $0xb8] sm:$0xff]
  %v180 = vld [vmem:[%s3 + $0xc0] sm:$0xff]
  %v181 = vld [vmem:[%s3 + $0xc8] sm:$0xff]
  %v182 = vld [vmem:[%s3 + $0xd0] sm:$0xff]
  %v183 = vld [vmem:[%s3 + $0xd8] sm:$0xff]
  %v184 = vld [vmem:[%s3 + $0xe0] sm:$0xff]
  %v185 = vld [vmem:[%s3 + $0xe8] sm:$0xff]
  %v186 = vld [vmem:[%s3 + $0xf0] sm:$0xff]
  %v187 = vld [vmem:[%s3 + $0xf8] sm:$0xff]
  %v188 = vld [vmem:[%s3 + $0x100] sm:$0xff]
  %v189 = vld [vmem:[%s3 + $0x108] sm:$0xff]
  %v190 = vld [vmem:[%s3 + $0x110] sm:$0xff]
  %v191 = vld [vmem:[%s3 + $0x118] sm:$0xff]
  %v192 = vld [vmem:[%s3 + $0x120] sm:$0xff]
  %v193 = vld [vmem:[%s3 + $0x128] sm:$0xff]
  %v194 = vld [vmem:[%s3 + $0x130] sm:$0xff]
  %v195 = vld [vmem:[%s3 + $0x138] sm:$0xff]
  %v196 = vld [vmem:[%s3 + $0x140] sm:$0xff]
  %v197 = vld [vmem:[%s3 + $0x148] sm:$0xff]
  %v198 = vld [vmem:[%s3 + $0x150] sm:$0xff]
  %v199 = vld [vmem:[%s3 + $0x158] sm:$0xff]
  %v200 = vld [vmem:[%s3 + $0x160] sm:$0xff]
  %v201 = vld [vmem:[%s3 + $0x168] sm:$0xff]
  %v202 = vld [vmem:[%s3 + $0x170] sm:$0xff]
  %v203 = vld [vmem:[%s3 + $0x178] sm:$0xff]
  %v204 = vld [vmem:[%s3 + $0x180] sm:$0xff]
  %v205 = vld [vmem:[%s3 + $0x188] sm:$0xff]
  %v206 = vld [vmem:[%s3 + $0x190] sm:$0xff]
  %v207 = vld [vmem:[%s3 + $0x198] sm:$0xff]
  %v208 = vld [vmem:[%s3 + $0x1a0] sm:$0xff]
  %v209 = vld [vmem:[%s3 + $0x1a8] sm:$0xff]
  %v210 = vld [vmem:[%s3 + $0x1b0] sm:$0xff]
  %v211 = vld [vmem:[%s3 + $0x1b8] sm:$0xff]
  %vm212 = vcmask 457728
  %v214 = vsel %vm212, %v156, 0
  %v217 = vsel %vm212, %v157, 0
  %v220 = vsel %vm212, %v158, 0
  %v223 = vsel %vm212, %v159, 0
  %v226 = vsel %vm212, %v160, 0
  %v229 = vsel %vm212, %v161, 0
  %v232 = vsel %vm212, %v162, 0
  %v235 = vsel %vm212, %v163, 0
  %v238 = vsel %vm212, %v164, 0
  %v241 = vsel %vm212, %v165, 0
  %v244 = vsel %vm212, %v166, 0
  %v247 = vsel %vm212, %v167, 0
  %v250 = vsel %vm212, %v168, 0
  %v253 = vsel %vm212, %v169, 0
  %v256 = vsel %vm212, %v170, 0
  %v259 = vsel %vm212, %v171, 0
  %v262 = vsel %vm212, %v172, 0
  %v265 = vsel %vm212, %v173, 0
  %v268 = vsel %vm212, %v174, 0
  %v271 = vsel %vm212, %v175, 0
  %v274 = vsel %vm212, %v176, 0
  %v277 = vsel %vm212, %v177, 0
  %v280 = vsel %vm212, %v178, 0
  %v283 = vsel %vm212, %v179, 0
  %v286 = vsel %vm212, %v180, 0
  %v289 = vsel %vm212, %v181, 0
  %v292 = vsel %vm212, %v182, 0
  %v295 = vsel %vm212, %v183, 0
  %v298 = vsel %vm212, %v184, 0
  %v301 = vsel %vm212, %v185, 0
  %v304 = vsel %vm212, %v186, 0
  %v307 = vsel %vm212, %v187, 0
  %v310 = vsel %vm212, %v188, 0
  %v313 = vsel %vm212, %v189, 0
  %v316 = vsel %vm212, %v190, 0
  %v319 = vsel %vm212, %v191, 0
  %v322 = vsel %vm212, %v192, 0
  %v325 = vsel %vm212, %v193, 0
  %v328 = vsel %vm212, %v194, 0
  %v331 = vsel %vm212, %v195, 0
  %v334 = vsel %vm212, %v196, 0
  %v337 = vsel %vm212, %v197, 0
  %v340 = vsel %vm212, %v198, 0
  %v343 = vsel %vm212, %v199, 0
  %v346 = vsel %vm212, %v200, 0
  %v349 = vsel %vm212, %v201, 0
  %v352 = vsel %vm212, %v202, 0
  %v355 = vsel %vm212, %v203, 0
  %v358 = vsel %vm212, %v204, 0
  %v361 = vsel %vm212, %v205, 0
  %v364 = vsel %vm212, %v206, 0
  %v367 = vsel %vm212, %v207, 0
  %v370 = vsel %vm212, %v208, 0
  %v373 = vsel %vm212, %v209, 0
  %v376 = vsel %vm212, %v210, 0
  %v379 = vsel %vm212, %v211, 0
  %v382 = vsel %vm212, %v133, 0
  %v385 = vsel %vm212, %v136, 0
  %v388 = vsel %vm212, %v139, 0
  %v391 = vsel %vm212, %v142, 0
  %v394 = vsel %vm212, %v145, 0
  %v397 = vsel %vm212, %v148, 0
  %v400 = vsel %vm212, %v151, 0
  %v403 = vsel %vm212, %v154, 0
  %405 = vmatpush.xpose.msra.mxu0 0.0
  %406 = vmatpush.xpose.msra.mxu0 0.0
  %407 = vmatpush.xpose.msra.mxu0 0.0
  %408 = vmatpush.xpose.msra.mxu0 0.0
  %409 = vmatpush.xpose.msra.mxu0 0.0
  %410 = vmatpush.xpose.msra.mxu0 0.0
  %411 = vmatpush.xpose.msra.mxu0 0.0
  %412 = vmatpush.xpose.msra.mxu0 0.0
  %413 = vmatpush.xpose.msra.mxu0 %v403
  %414 = vmatpush.xpose.msra.mxu0 %v400
  %415 = vmatpush.xpose.msra.mxu0 %v397
  %416 = vmatpush.xpose.msra.mxu0 %v394
  %417 = vmatpush.xpose.msra.mxu0 %v391
  %418 = vmatpush.xpose.msra.mxu0 %v388
  %419 = vmatpush.xpose.msra.mxu0 %v385
  %420 = vmatpush.xpose.msra.mxu0 %v382
  %421 = vmatmul.f32.gmra.mxu0 %v214
  %v422 = vpop.f32.mrf.mxu0
  %v423 = vadd.f32 0.0, %v422
  %424 = vmatmul.f32.gmra.mxu0 %v217
  %v425 = vpop.f32.mrf.mxu0
  %v426 = vadd.f32 0.0, %v425
  %427 = vmatmul.f32.gmra.mxu0 %v220
  %v428 = vpop.f32.mrf.mxu0
  %v429 = vadd.f32 0.0, %v428
  %430 = vmatmul.f32.gmra.mxu0 %v223
  %v431 = vpop.f32.mrf.mxu0
  %v432 = vadd.f32 0.0, %v431
  %433 = vmatmul.f32.gmra.mxu0 %v226
  %v434 = vpop.f32.mrf.mxu0
  %v435 = vadd.f32 0.0, %v434
  %436 = vmatmul.f32.gmra.mxu0 %v229
  %v437 = vpop.f32.mrf.mxu0
  %v438 = vadd.f32 0.0, %v437
  %439 = vmatmul.f32.gmra.mxu0 %v232
  %v440 = vpop.f32.mrf.mxu0
  %v441 = vadd.f32 0.0, %v440
  %442 = vmatmul.f32.gmra.mxu0 %v235
  %v443 = vpop.f32.mrf.mxu0
  %v444 = vadd.f32 0.0, %v443
  %445 = vmatmul.f32.gmra.mxu0 %v238
  %v446 = vpop.f32.mrf.mxu0
  %v447 = vadd.f32 0.0, %v446
  %448 = vmatmul.f32.gmra.mxu0 %v241
  %v449 = vpop.f32.mrf.mxu0
  %v450 = vadd.f32 0.0, %v449
  %451 = vmatmul.f32.gmra.mxu0 %v244
  %v452 = vpop.f32.mrf.mxu0
  %v453 = vadd.f32 0.0, %v452
  %454 = vmatmul.f32.gmra.mxu0 %v247
  %v455 = vpop.f32.mrf.mxu0
  %v456 = vadd.f32 0.0, %v455
  %457 = vmatmul.f32.gmra.mxu0 %v250
  %v458 = vpop.f32.mrf.mxu0
  %v459 = vadd.f32 0.0, %v458
  %460 = vmatmul.f32.gmra.mxu0 %v253
  %v461 = vpop.f32.mrf.mxu0
  %v462 = vadd.f32 0.0, %v461
  %463 = vmatmul.f32.gmra.mxu0 %v256
  %v464 = vpop.f32.mrf.mxu0
  %v465 = vadd.f32 0.0, %v464
  %466 = vmatmul.f32.gmra.mxu0 %v259
  %v467 = vpop.f32.mrf.mxu0
  %v468 = vadd.f32 0.0, %v467
  %469 = vmatmul.f32.gmra.mxu0 %v262
  %v470 = vpop.f32.mrf.mxu0
  %v471 = vadd.f32 0.0, %v470
  %472 = vmatmul.f32.gmra.mxu0 %v265
  %v473 = vpop.f32.mrf.mxu0
  %v474 = vadd.f32 0.0, %v473
  %475 = vmatmul.f32.gmra.mxu0 %v268
  %v476 = vpop.f32.mrf.mxu0
  %v477 = vadd.f32 0.0, %v476
  %478 = vmatmul.f32.gmra.mxu0 %v271
  %v479 = vpop.f32.mrf.mxu0
  %v480 = vadd.f32 0.0, %v479
  %481 = vmatmul.f32.gmra.mxu0 %v274
  %v482 = vpop.f32.mrf.mxu0
  %v483 = vadd.f32 0.0, %v482
  %484 = vmatmul.f32.gmra.mxu0 %v277
  %v485 = vpop.f32.mrf.mxu0
  %v486 = vadd.f32 0.0, %v485
  %487 = vmatmul.f32.gmra.mxu0 %v280
  %v488 = vpop.f32.mrf.mxu0
  %v489 = vadd.f32 0.0, %v488
  %490 = vmatmul.f32.gmra.mxu0 %v283
  %v491 = vpop.f32.mrf.mxu0
  %v492 = vadd.f32 0.0, %v491
  %493 = vmatmul.f32.gmra.mxu0 %v286
  %v494 = vpop.f32.mrf.mxu0
  %v495 = vadd.f32 0.0, %v494
  %496 = vmatmul.f32.gmra.mxu0 %v289
  %v497 = vpop.f32.mrf.mxu0
  %v498 = vadd.f32 0.0, %v497
  %499 = vmatmul.f32.gmra.mxu0 %v292
  %v500 = vpop.f32.mrf.mxu0
  %v501 = vadd.f32 0.0, %v500
  %502 = vmatmul.f32.gmra.mxu0 %v295
  %v503 = vpop.f32.mrf.mxu0
  %v504 = vadd.f32 0.0, %v503
  %505 = vmatmul.f32.gmra.mxu0 %v298
  %v506 = vpop.f32.mrf.mxu0
  %v507 = vadd.f32 0.0, %v506
  %508 = vmatmul.f32.gmra.mxu0 %v301
  %v509 = vpop.f32.mrf.mxu0
  %v510 = vadd.f32 0.0, %v509
  %511 = vmatmul.f32.gmra.mxu0 %v304
  %v512 = vpop.f32.mrf.mxu0
  %v513 = vadd.f32 0.0, %v512
  %514 = vmatmul.f32.gmra.mxu0 %v307
  %v515 = vpop.f32.mrf.mxu0
  %v516 = vadd.f32 0.0, %v515
  %517 = vmatmul.f32.gmra.mxu0 %v310
  %v518 = vpop.f32.mrf.mxu0
  %v519 = vadd.f32 0.0, %v518
  %520 = vmatmul.f32.gmra.mxu0 %v313
  %v521 = vpop.f32.mrf.mxu0
  %v522 = vadd.f32 0.0, %v521
  %523 = vmatmul.f32.gmra.mxu0 %v316
  %v524 = vpop.f32.mrf.mxu0
  %v525 = vadd.f32 0.0, %v524
  %526 = vmatmul.f32.gmra.mxu0 %v319
  %v527 = vpop.f32.mrf.mxu0
  %v528 = vadd.f32 0.0, %v527
  %529 = vmatmul.f32.gmra.mxu0 %v322
  %v530 = vpop.f32.mrf.mxu0
  %v531 = vadd.f32 0.0, %v530
  %532 = vmatmul.f32.gmra.mxu0 %v325
  %v533 = vpop.f32.mrf.mxu0
  %v534 = vadd.f32 0.0, %v533
  %535 = vmatmul.f32.gmra.mxu0 %v328
  %v536 = vpop.f32.mrf.mxu0
  %v537 = vadd.f32 0.0, %v536
  %538 = vmatmul.f32.gmra.mxu0 %v331
  %v539 = vpop.f32.mrf.mxu0
  %v540 = vadd.f32 0.0, %v539
  %541 = vmatmul.f32.gmra.mxu0 %v334
  %v542 = vpop.f32.mrf.mxu0
  %v543 = vadd.f32 0.0, %v542
  %544 = vmatmul.f32.gmra.mxu0 %v337
  %v545 = vpop.f32.mrf.mxu0
  %v546 = vadd.f32 0.0, %v545
  %547 = vmatmul.f32.gmra.mxu0 %v340
  %v548 = vpop.f32.mrf.mxu0
  %v549 = vadd.f32 0.0, %v548
  %550 = vmatmul.f32.gmra.mxu0 %v343
  %v551 = vpop.f32.mrf.mxu0
  %v552 = vadd.f32 0.0, %v551
  %553 = vmatmul.f32.gmra.mxu0 %v346
  %v554 = vpop.f32.mrf.mxu0
  %v555 = vadd.f32 0.0, %v554
  %556 = vmatmul.f32.gmra.mxu0 %v349
  %v557 = vpop.f32.mrf.mxu0
  %v558 = vadd.f32 0.0, %v557
  %559 = vmatmul.f32.gmra.mxu0 %v352
  %v560 = vpop.f32.mrf.mxu0
  %v561 = vadd.f32 0.0, %v560
  %562 = vmatmul.f32.gmra.mxu0 %v355
  %v563 = vpop.f32.mrf.mxu0
  %v564 = vadd.f32 0.0, %v563
  %565 = vmatmul.f32.gmra.mxu0 %v358
  %v566 = vpop.f32.mrf.mxu0
  %v567 = vadd.f32 0.0, %v566
  %568 = vmatmul.f32.gmra.mxu0 %v361
  %v569 = vpop.f32.mrf.mxu0
  %v570 = vadd.f32 0.0, %v569
  %571 = vmatmul.f32.gmra.mxu0 %v364
  %v572 = vpop.f32.mrf.mxu0
  %v573 = vadd.f32 0.0, %v572
  %574 = vmatmul.f32.gmra.mxu0 %v367
  %v575 = vpop.f32.mrf.mxu0
  %v576 = vadd.f32 0.0, %v575
  %577 = vmatmul.f32.gmra.mxu0 %v370
  %v578 = vpop.f32.mrf.mxu0
  %v579 = vadd.f32 0.0, %v578
  %580 = vmatmul.f32.gmra.mxu0 %v373
  %v581 = vpop.f32.mrf.mxu0
  %v582 = vadd.f32 0.0, %v581
  %583 = vmatmul.f32.gmra.mxu0 %v376
  %v584 = vpop.f32.mrf.mxu0
  %v585 = vadd.f32 0.0, %v584
  %586 = vmatmul.f32.gmra.mxu0 %v379
  %v587 = vpop.f32.mrf.mxu0
  %v588 = vadd.f32 0.0, %v587
  %589 = vdwg.mxu0
  %v590 = vld [vmem:[%s4] sm:$0xff]
  %v591 = vld [vmem:[%s4 + $0x8] sm:$0xff]
  %v592 = vld [vmem:[%s4 + $0x10] sm:$0xff]
  %v593 = vld [vmem:[%s4 + $0x18] sm:$0xff]
  %v594 = vld [vmem:[%s4 + $0x20] sm:$0xff]
  %v595 = vld [vmem:[%s4 + $0x28] sm:$0xff]
  %v596 = vld [vmem:[%s4 + $0x30] sm:$0xff]
  %v597 = vld [vmem:[%s4 + $0x38] sm:$0xff]
  %v598 = vld [vmem:[%s4 + $0x40] sm:$0xff]
  %v599 = vld [vmem:[%s4 + $0x48] sm:$0xff]
  %v600 = vld [vmem:[%s4 + $0x50] sm:$0xff]
  %v601 = vld [vmem:[%s4 + $0x58] sm:$0xff]
  %v602 = vld [vmem:[%s4 + $0x60] sm:$0xff]
  %v603 = vld [vmem:[%s4 + $0x68] sm:$0xff]
  %v604 = vld [vmem:[%s4 + $0x70] sm:$0xff]
  %v605 = vld [vmem:[%s4 + $0x78] sm:$0xff]
  %v606 = vld [vmem:[%s4 + $0x80] sm:$0xff]
  %v607 = vld [vmem:[%s4 + $0x88] sm:$0xff]
  %v608 = vld [vmem:[%s4 + $0x90] sm:$0xff]
  %v609 = vld [vmem:[%s4 + $0x98] sm:$0xff]
  %v610 = vld [vmem:[%s4 + $0xa0] sm:$0xff]
  %v611 = vld [vmem:[%s4 + $0xa8] sm:$0xff]
  %v612 = vld [vmem:[%s4 + $0xb0] sm:$0xff]
  %v613 = vld [vmem:[%s4 + $0xb8] sm:$0xff]
  %v614 = vld [vmem:[%s4 + $0xc0] sm:$0xff]
  %v615 = vld [vmem:[%s4 + $0xc8] sm:$0xff]
  %v616 = vld [vmem:[%s4 + $0xd0] sm:$0xff]
  %v617 = vld [vmem:[%s4 + $0xd8] sm:$0xff]
  %v618 = vld [vmem:[%s4 + $0xe0] sm:$0xff]
  %v619 = vld [vmem:[%s4 + $0xe8] sm:$0xff]
  %v620 = vld [vmem:[%s4 + $0xf0] sm:$0xff]
  %v621 = vld [vmem:[%s4 + $0xf8] sm:$0xff]
  %v622 = vld [vmem:[%s4 + $0x100] sm:$0xff]
  %v623 = vld [vmem:[%s4 + $0x108] sm:$0xff]
  %v624 = vld [vmem:[%s4 + $0x110] sm:$0xff]
  %v625 = vld [vmem:[%s4 + $0x118] sm:$0xff]
  %v626 = vld [vmem:[%s4 + $0x120] sm:$0xff]
  %v627 = vld [vmem:[%s4 + $0x128] sm:$0xff]
  %v628 = vld [vmem:[%s4 + $0x130] sm:$0xff]
  %v629 = vld [vmem:[%s4 + $0x138] sm:$0xff]
  %v630 = vld [vmem:[%s4 + $0x140] sm:$0xff]
  %v631 = vld [vmem:[%s4 + $0x148] sm:$0xff]
  %v632 = vld [vmem:[%s4 + $0x150] sm:$0xff]
  %v633 = vld [vmem:[%s4 + $0x158] sm:$0xff]
  %v634 = vld [vmem:[%s4 + $0x160] sm:$0xff]
  %v635 = vld [vmem:[%s4 + $0x168] sm:$0xff]
  %v636 = vld [vmem:[%s4 + $0x170] sm:$0xff]
  %v637 = vld [vmem:[%s4 + $0x178] sm:$0xff]
  %v638 = vld [vmem:[%s4 + $0x180] sm:$0xff]
  %v639 = vld [vmem:[%s4 + $0x188] sm:$0xff]
  %v640 = vld [vmem:[%s4 + $0x190] sm:$0xff]
  %v641 = vld [vmem:[%s4 + $0x198] sm:$0xff]
  %v642 = vld [vmem:[%s4 + $0x1a0] sm:$0xff]
  %v643 = vld [vmem:[%s4 + $0x1a8] sm:$0xff]
  %v644 = vld [vmem:[%s4 + $0x1b0] sm:$0xff]
  %v645 = vld [vmem:[%s4 + $0x1b8] sm:$0xff]
  %v646 = vmul.f32 %v133, %v590
  %v647 = vmul.f32 %v136, %v591
  %v648 = vmul.f32 %v139, %v592
  %v649 = vmul.f32 %v142, %v593
  %v650 = vmul.f32 %v145, %v594
  %v651 = vmul.f32 %v148, %v595
  %v652 = vmul.f32 %v151, %v596
  %v653 = vmul.f32 %v154, %v597
  %v654 = vmul.f32 %v133, %v598
  %v655 = vmul.f32 %v136, %v599
  %v656 = vmul.f32 %v139, %v600
  %v657 = vmul.f32 %v142, %v601
  %v658 = vmul.f32 %v145, %v602
  %v659 = vmul.f32 %v148, %v603
  %v660 = vmul.f32 %v151, %v604
  %v661 = vmul.f32 %v154, %v605
  %v662 = vmul.f32 %v133, %v606
  %v663 = vmul.f32 %v136, %v607
  %v664 = vmul.f32 %v139, %v608
  %v665 = vmul.f32 %v142, %v609
  %v666 = vmul.f32 %v145, %v610
  %v667 = vmul.f32 %v148, %v611
  %v668 = vmul.f32 %v151, %v612
  %v669 = vmul.f32 %v154, %v613
  %v670 = vmul.f32 %v133, %v614
  %v671 = vmul.f32 %v136, %v615
  %v672 = vmul.f32 %v139, %v616
  %v673 = vmul.f32 %v142, %v617
  %v674 = vmul.f32 %v145, %v618
  %v675 = vmul.f32 %v148, %v619
  %v676 = vmul.f32 %v151, %v620
  %v677 = vmul.f32 %v154, %v621
  %v678 = vmul.f32 %v133, %v622
  %v679 = vmul.f32 %v136, %v623
  %v680 = vmul.f32 %v139, %v624
  %v681 = vmul.f32 %v142, %v625
  %v682 = vmul.f32 %v145, %v626
  %v683 = vmul.f32 %v148, %v627
  %v684 = vmul.f32 %v151, %v628
  %v685 = vmul.f32 %v154, %v629
  %v686 = vmul.f32 %v133, %v630
  %v687 = vmul.f32 %v136, %v631
  %v688 = vmul.f32 %v139, %v632
  %v689 = vmul.f32 %v142, %v633
  %v690 = vmul.f32 %v145, %v634
  %v691 = vmul.f32 %v148, %v635
  %v692 = vmul.f32 %v151, %v636
  %v693 = vmul.f32 %v154, %v637
  %v694 = vmul.f32 %v133, %v638
  %v695 = vmul.f32 %v136, %v639
  %v696 = vmul.f32 %v139, %v640
  %v697 = vmul.f32 %v142, %v641
  %v698 = vmul.f32 %v145, %v642
  %v699 = vmul.f32 %v148, %v643
  %v700 = vmul.f32 %v151, %v644
  %v701 = vmul.f32 %v154, %v645
  %v702 = vsel %vm212, %v646, 0.0
  %703 = vadd.xlane.f32.xlu0 %v702
  %v704 = vpop.xlane.xlu0 %703
  %v705 = vsel %vm212, %v647, 0.0
  %706 = vadd.xlane.f32.xlu0 %v705
  %v707 = vpop.xlane.xlu0 %706
  %v708 = vsel %vm212, %v648, 0.0
  %709 = vadd.xlane.f32.xlu0 %v708
  %v710 = vpop.xlane.xlu0 %709
  %v711 = vsel %vm212, %v649, 0.0
  %712 = vadd.xlane.f32.xlu0 %v711
  %v713 = vpop.xlane.xlu0 %712
  %v714 = vsel %vm212, %v650, 0.0
  %715 = vadd.xlane.f32.xlu0 %v714
  %v716 = vpop.xlane.xlu0 %715
  %v717 = vsel %vm212, %v651, 0.0
  %718 = vadd.xlane.f32.xlu0 %v717
  %v719 = vpop.xlane.xlu0 %718
  %v720 = vsel %vm212, %v652, 0.0
  %721 = vadd.xlane.f32.xlu0 %v720
  %v722 = vpop.xlane.xlu0 %721
  %v723 = vsel %vm212, %v653, 0.0
  %724 = vadd.xlane.f32.xlu0 %v723
  %v725 = vpop.xlane.xlu0 %724
  %v726 = vsel %vm212, %v654, 0.0
  %727 = vadd.xlane.f32.xlu0 %v726
  %v728 = vpop.xlane.xlu0 %727
  %v729 = vsel %vm212, %v655, 0.0
  %730 = vadd.xlane.f32.xlu0 %v729
  %v731 = vpop.xlane.xlu0 %730
  %v732 = vsel %vm212, %v656, 0.0
  %733 = vadd.xlane.f32.xlu0 %v732
  %v734 = vpop.xlane.xlu0 %733
  %v735 = vsel %vm212, %v657, 0.0
  %736 = vadd.xlane.f32.xlu0 %v735
  %v737 = vpop.xlane.xlu0 %736
  %v738 = vsel %vm212, %v658, 0.0
  %739 = vadd.xlane.f32.xlu0 %v738
  %v740 = vpop.xlane.xlu0 %739
  %v741 = vsel %vm212, %v659, 0.0
  %742 = vadd.xlane.f32.xlu0 %v741
  %v743 = vpop.xlane.xlu0 %742
  %v744 = vsel %vm212, %v660, 0.0
  %745 = vadd.xlane.f32.xlu0 %v744
  %v746 = vpop.xlane.xlu0 %745
  %v747 = vsel %vm212, %v661, 0.0
  %748 = vadd.xlane.f32.xlu0 %v747
  %v749 = vpop.xlane.xlu0 %748
  %v750 = vsel %vm212, %v662, 0.0
  %751 = vadd.xlane.f32.xlu0 %v750
  %v752 = vpop.xlane.xlu0 %751
  %v753 = vsel %vm212, %v663, 0.0
  %754 = vadd.xlane.f32.xlu0 %v753
  %v755 = vpop.xlane.xlu0 %754
  %v756 = vsel %vm212, %v664, 0.0
  %757 = vadd.xlane.f32.xlu0 %v756
  %v758 = vpop.xlane.xlu0 %757
  %v759 = vsel %vm212, %v665, 0.0
  %760 = vadd.xlane.f32.xlu0 %v759
  %v761 = vpop.xlane.xlu0 %760
  %v762 = vsel %vm212, %v666, 0.0
  %763 = vadd.xlane.f32.xlu0 %v762
  %v764 = vpop.xlane.xlu0 %763
  %v765 = vsel %vm212, %v667, 0.0
  %766 = vadd.xlane.f32.xlu0 %v765
  %v767 = vpop.xlane.xlu0 %766
  %v768 = vsel %vm212, %v668, 0.0
  %769 = vadd.xlane.f32.xlu0 %v768
  %v770 = vpop.xlane.xlu0 %769
  %v771 = vsel %vm212, %v669, 0.0
  %772 = vadd.xlane.f32.xlu0 %v771
  %v773 = vpop.xlane.xlu0 %772
  %v774 = vsel %vm212, %v670, 0.0
  %775 = vadd.xlane.f32.xlu0 %v774
  %v776 = vpop.xlane.xlu0 %775
  %v777 = vsel %vm212, %v671, 0.0
  %778 = vadd.xlane.f32.xlu0 %v777
  %v779 = vpop.xlane.xlu0 %778
  %v780 = vsel %vm212, %v672, 0.0
  %781 = vadd.xlane.f32.xlu0 %v780
  %v782 = vpop.xlane.xlu0 %781
  %v783 = vsel %vm212, %v673, 0.0
  %784 = vadd.xlane.f32.xlu0 %v783
  %v785 = vpop.xlane.xlu0 %784
  %v786 = vsel %vm212, %v674, 0.0
  %787 = vadd.xlane.f32.xlu0 %v786
  %v788 = vpop.xlane.xlu0 %787
  %v789 = vsel %vm212, %v675, 0.0
  %790 = vadd.xlane.f32.xlu0 %v789
  %v791 = vpop.xlane.xlu0 %790
  %v792 = vsel %vm212, %v676, 0.0
  %793 = vadd.xlane.f32.xlu0 %v792
  %v794 = vpop.xlane.xlu0 %793
  %v795 = vsel %vm212, %v677, 0.0
  %796 = vadd.xlane.f32.xlu0 %v795
  %v797 = vpop.xlane.xlu0 %796
  %v798 = vsel %vm212, %v678, 0.0
  %799 = vadd.xlane.f32.xlu0 %v798
  %v800 = vpop.xlane.xlu0 %799
  %v801 = vsel %vm212, %v679, 0.0
  %802 = vadd.xlane.f32.xlu0 %v801
  %v803 = vpop.xlane.xlu0 %802
  %v804 = vsel %vm212, %v680, 0.0
  %805 = vadd.xlane.f32.xlu0 %v804
  %v806 = vpop.xlane.xlu0 %805
  %v807 = vsel %vm212, %v681, 0.0
  %808 = vadd.xlane.f32.xlu0 %v807
  %v809 = vpop.xlane.xlu0 %808
  %v810 = vsel %vm212, %v682, 0.0
  %811 = vadd.xlane.f32.xlu0 %v810
  %v812 = vpop.xlane.xlu0 %811
  %v813 = vsel %vm212, %v683, 0.0
  %814 = vadd.xlane.f32.xlu0 %v813
  %v815 = vpop.xlane.xlu0 %814
  %v816 = vsel %vm212, %v684, 0.0
  %817 = vadd.xlane.f32.xlu0 %v816
  %v818 = vpop.xlane.xlu0 %817
  %v819 = vsel %vm212, %v685, 0.0
  %820 = vadd.xlane.f32.xlu0 %v819
  %v821 = vpop.xlane.xlu0 %820
  %v822 = vsel %vm212, %v686, 0.0
  %823 = vadd.xlane.f32.xlu0 %v822
  %v824 = vpop.xlane.xlu0 %823
  %v825 = vsel %vm212, %v687, 0.0
  %826 = vadd.xlane.f32.xlu0 %v825
  %v827 = vpop.xlane.xlu0 %826
  %v828 = vsel %vm212, %v688, 0.0
  %829 = vadd.xlane.f32.xlu0 %v828
  %v830 = vpop.xlane.xlu0 %829
  %v831 = vsel %vm212, %v689, 0.0
  %832 = vadd.xlane.f32.xlu0 %v831
  %v833 = vpop.xlane.xlu0 %832
  %v834 = vsel %vm212, %v690, 0.0
  %835 = vadd.xlane.f32.xlu0 %v834
  %v836 = vpop.xlane.xlu0 %835
  %v837 = vsel %vm212, %v691, 0.0
  %838 = vadd.xlane.f32.xlu0 %v837
  %v839 = vpop.xlane.xlu0 %838
  %v840 = vsel %vm212, %v692, 0.0
  %841 = vadd.xlane.f32.xlu0 %v840
  %v842 = vpop.xlane.xlu0 %841
  %v843 = vsel %vm212, %v693, 0.0
  %844 = vadd.xlane.f32.xlu0 %v843
  %v845 = vpop.xlane.xlu0 %844
  %v846 = vsel %vm212, %v694, 0.0
  %847 = vadd.xlane.f32.xlu0 %v846
  %v848 = vpop.xlane.xlu0 %847
  %v849 = vsel %vm212, %v695, 0.0
  %850 = vadd.xlane.f32.xlu0 %v849
  %v851 = vpop.xlane.xlu0 %850
  %v852 = vsel %vm212, %v696, 0.0
  %853 = vadd.xlane.f32.xlu0 %v852
  %v854 = vpop.xlane.xlu0 %853
  %v855 = vsel %vm212, %v697, 0.0
  %856 = vadd.xlane.f32.xlu0 %v855
  %v857 = vpop.xlane.xlu0 %856
  %v858 = vsel %vm212, %v698, 0.0
  %859 = vadd.xlane.f32.xlu0 %v858
  %v860 = vpop.xlane.xlu0 %859
  %v861 = vsel %vm212, %v699, 0.0
  %862 = vadd.xlane.f32.xlu0 %v861
  %v863 = vpop.xlane.xlu0 %862
  %v864 = vsel %vm212, %v700, 0.0
  %865 = vadd.xlane.f32.xlu0 %v864
  %v866 = vpop.xlane.xlu0 %865
  %v867 = vsel %vm212, %v701, 0.0
  %868 = vadd.xlane.f32.xlu0 %v867
  %v869 = vpop.xlane.xlu0 %868
  %v870 = vadd.f32 %v704, %v423
  %v871 = vadd.f32 %v707, %v426
  %v872 = vadd.f32 %v710, %v429
  %v873 = vadd.f32 %v713, %v432
  %v874 = vadd.f32 %v716, %v435
  %v875 = vadd.f32 %v719, %v438
  %v876 = vadd.f32 %v722, %v441
  %v877 = vadd.f32 %v725, %v444
  %v878 = vadd.f32 %v728, %v447
  %v879 = vadd.f32 %v731, %v450
  %v880 = vadd.f32 %v734, %v453
  %v881 = vadd.f32 %v737, %v456
  %v882 = vadd.f32 %v740, %v459
  %v883 = vadd.f32 %v743, %v462
  %v884 = vadd.f32 %v746, %v465
  %v885 = vadd.f32 %v749, %v468
  %v886 = vadd.f32 %v752, %v471
  %v887 = vadd.f32 %v755, %v474
  %v888 = vadd.f32 %v758, %v477
  %v889 = vadd.f32 %v761, %v480
  %v890 = vadd.f32 %v764, %v483
  %v891 = vadd.f32 %v767, %v486
  %v892 = vadd.f32 %v770, %v489
  %v893 = vadd.f32 %v773, %v492
  %v894 = vadd.f32 %v776, %v495
  %v895 = vadd.f32 %v779, %v498
  %v896 = vadd.f32 %v782, %v501
  %v897 = vadd.f32 %v785, %v504
  %v898 = vadd.f32 %v788, %v507
  %v899 = vadd.f32 %v791, %v510
  %v900 = vadd.f32 %v794, %v513
  %v901 = vadd.f32 %v797, %v516
  %v902 = vadd.f32 %v800, %v519
  %v903 = vadd.f32 %v803, %v522
  %v904 = vadd.f32 %v806, %v525
  %v905 = vadd.f32 %v809, %v528
  %v906 = vadd.f32 %v812, %v531
  %v907 = vadd.f32 %v815, %v534
  %v908 = vadd.f32 %v818, %v537
  %v909 = vadd.f32 %v821, %v540
  %v910 = vadd.f32 %v824, %v543
  %v911 = vadd.f32 %v827, %v546
  %v912 = vadd.f32 %v830, %v549
  %v913 = vadd.f32 %v833, %v552
  %v914 = vadd.f32 %v836, %v555
  %v915 = vadd.f32 %v839, %v558
  %v916 = vadd.f32 %v842, %v561
  %v917 = vadd.f32 %v845, %v564
  %v918 = vadd.f32 %v848, %v567
  %v919 = vadd.f32 %v851, %v570
  %v920 = vadd.f32 %v854, %v573
  %v921 = vadd.f32 %v857, %v576
  %v922 = vadd.f32 %v860, %v579
  %v923 = vadd.f32 %v863, %v582
  %v924 = vadd.f32 %v866, %v585
  %v925 = vadd.f32 %v869, %v588
  %vm926 = vcmp.gt.f32.partialorder %v870, 0.0
  %vm927 = vcmp.gt.f32.partialorder %v871, 0.0
  %vm928 = vcmp.gt.f32.partialorder %v872, 0.0
  %vm929 = vcmp.gt.f32.partialorder %v873, 0.0
  %vm930 = vcmp.gt.f32.partialorder %v874, 0.0
  %vm931 = vcmp.gt.f32.partialorder %v875, 0.0
  %vm932 = vcmp.gt.f32.partialorder %v876, 0.0
  %vm933 = vcmp.gt.f32.partialorder %v877, 0.0
  %vm934 = vcmp.gt.f32.partialorder %v878, 0.0
  %vm935 = vcmp.gt.f32.partialorder %v879, 0.0
  %vm936 = vcmp.gt.f32.partialorder %v880, 0.0
  %vm937 = vcmp.gt.f32.partialorder %v881, 0.0
  %vm938 = vcmp.gt.f32.partialorder %v882, 0.0
  %vm939 = vcmp.gt.f32.partialorder %v883, 0.0
  %vm940 = vcmp.gt.f32.partialorder %v884, 0.0
  %vm941 = vcmp.gt.f32.partialorder %v885, 0.0
  %vm942 = vcmp.gt.f32.partialorder %v886, 0.0
  %vm943 = vcmp.gt.f32.partialorder %v887, 0.0
  %vm944 = vcmp.gt.f32.partialorder %v888, 0.0
  %vm945 = vcmp.gt.f32.partialorder %v889, 0.0
  %vm946 = vcmp.gt.f32.partialorder %v890, 0.0
  %vm947 = vcmp.gt.f32.partialorder %v891, 0.0
  %vm948 = vcmp.gt.f32.partialorder %v892, 0.0
  %vm949 = vcmp.gt.f32.partialorder %v893, 0.0
  %vm950 = vcmp.gt.f32.partialorder %v894, 0.0
  %vm951 = vcmp.gt.f32.partialorder %v895, 0.0
  %vm952 = vcmp.gt.f32.partialorder %v896, 0.0
  %vm953 = vcmp.gt.f32.partialorder %v897, 0.0
  %vm954 = vcmp.gt.f32.partialorder %v898, 0.0
  %vm955 = vcmp.gt.f32.partialorder %v899, 0.0
  %vm956 = vcmp.gt.f32.partialorder %v900, 0.0
  %vm957 = vcmp.gt.f32.partialorder %v901, 0.0
  %vm958 = vcmp.gt.f32.partialorder %v902, 0.0
  %vm959 = vcmp.gt.f32.partialorder %v903, 0.0
  %vm960 = vcmp.gt.f32.partialorder %v904, 0.0
  %vm961 = vcmp.gt.f32.partialorder %v905, 0.0
  %vm962 = vcmp.gt.f32.partialorder %v906, 0.0
  %vm963 = vcmp.gt.f32.partialorder %v907, 0.0
  %vm964 = vcmp.gt.f32.partialorder %v908, 0.0
  %vm965 = vcmp.gt.f32.partialorder %v909, 0.0
  %vm966 = vcmp.gt.f32.partialorder %v910, 0.0
  %vm967 = vcmp.gt.f32.partialorder %v911, 0.0
  %vm968 = vcmp.gt.f32.partialorder %v912, 0.0
  %vm969 = vcmp.gt.f32.partialorder %v913, 0.0
  %vm970 = vcmp.gt.f32.partialorder %v914, 0.0
  %vm971 = vcmp.gt.f32.partialorder %v915, 0.0
  %vm972 = vcmp.gt.f32.partialorder %v916, 0.0
  %vm973 = vcmp.gt.f32.partialorder %v917, 0.0
  %vm974 = vcmp.gt.f32.partialorder %v918, 0.0
  %vm975 = vcmp.gt.f32.partialorder %v919, 0.0
  %vm976 = vcmp.gt.f32.partialorder %v920, 0.0
  %vm977 = vcmp.gt.f32.partialorder %v921, 0.0
  %vm978 = vcmp.gt.f32.partialorder %v922, 0.0
  %vm979 = vcmp.gt.f32.partialorder %v923, 0.0
  %vm980 = vcmp.gt.f32.partialorder %v924, 0.0
  %vm981 = vcmp.gt.f32.partialorder %v925, 0.0
  %v982 = vmul.f32 %v870, 0.2
  %v983 = vmul.f32 %v871, 0.2
  %v984 = vmul.f32 %v872, 0.2
  %v985 = vmul.f32 %v873, 0.2
  %v986 = vmul.f32 %v874, 0.2
  %v987 = vmul.f32 %v875, 0.2
  %v988 = vmul.f32 %v876, 0.2
  %v989 = vmul.f32 %v877, 0.2
  %v990 = vmul.f32 %v878, 0.2
  %v991 = vmul.f32 %v879, 0.2
  %v992 = vmul.f32 %v880, 0.2
  %v993 = vmul.f32 %v881, 0.2
  %v994 = vmul.f32 %v882, 0.2
  %v995 = vmul.f32 %v883, 0.2
  %v996 = vmul.f32 %v884, 0.2
  %v997 = vmul.f32 %v885, 0.2
  %v998 = vmul.f32 %v886, 0.2
  %v999 = vmul.f32 %v887, 0.2
  %v1000 = vmul.f32 %v888, 0.2
  %v1001 = vmul.f32 %v889, 0.2
  %v1002 = vmul.f32 %v890, 0.2
  %v1003 = vmul.f32 %v891, 0.2
  %v1004 = vmul.f32 %v892, 0.2
  %v1005 = vmul.f32 %v893, 0.2
  %v1006 = vmul.f32 %v894, 0.2
  %v1007 = vmul.f32 %v895, 0.2
  %v1008 = vmul.f32 %v896, 0.2
  %v1009 = vmul.f32 %v897, 0.2
  %v1010 = vmul.f32 %v898, 0.2
  %v1011 = vmul.f32 %v899, 0.2
  %v1012 = vmul.f32 %v900, 0.2
  %v1013 = vmul.f32 %v901, 0.2
  %v1014 = vmul.f32 %v902, 0.2
  %v1015 = vmul.f32 %v903, 0.2
  %v1016 = vmul.f32 %v904, 0.2
  %v1017 = vmul.f32 %v905, 0.2
  %v1018 = vmul.f32 %v906, 0.2
  %v1019 = vmul.f32 %v907, 0.2
  %v1020 = vmul.f32 %v908, 0.2
  %v1021 = vmul.f32 %v909, 0.2
  %v1022 = vmul.f32 %v910, 0.2
  %v1023 = vmul.f32 %v911, 0.2
  %v1024 = vmul.f32 %v912, 0.2
  %v1025 = vmul.f32 %v913, 0.2
  %v1026 = vmul.f32 %v914, 0.2
  %v1027 = vmul.f32 %v915, 0.2
  %v1028 = vmul.f32 %v916, 0.2
  %v1029 = vmul.f32 %v917, 0.2
  %v1030 = vmul.f32 %v918, 0.2
  %v1031 = vmul.f32 %v919, 0.2
  %v1032 = vmul.f32 %v920, 0.2
  %v1033 = vmul.f32 %v921, 0.2
  %v1034 = vmul.f32 %v922, 0.2
  %v1035 = vmul.f32 %v923, 0.2
  %v1036 = vmul.f32 %v924, 0.2
  %v1037 = vmul.f32 %v925, 0.2
  %v1038 = vsel %vm926, %v870, %v982
  %v1039 = vsel %vm927, %v871, %v983
  %v1040 = vsel %vm928, %v872, %v984
  %v1041 = vsel %vm929, %v873, %v985
  %v1042 = vsel %vm930, %v874, %v986
  %v1043 = vsel %vm931, %v875, %v987
  %v1044 = vsel %vm932, %v876, %v988
  %v1045 = vsel %vm933, %v877, %v989
  %v1046 = vsel %vm934, %v878, %v990
  %v1047 = vsel %vm935, %v879, %v991
  %v1048 = vsel %vm936, %v880, %v992
  %v1049 = vsel %vm937, %v881, %v993
  %v1050 = vsel %vm938, %v882, %v994
  %v1051 = vsel %vm939, %v883, %v995
  %v1052 = vsel %vm940, %v884, %v996
  %v1053 = vsel %vm941, %v885, %v997
  %v1054 = vsel %vm942, %v886, %v998
  %v1055 = vsel %vm943, %v887, %v999
  %v1056 = vsel %vm944, %v888, %v1000
  %v1057 = vsel %vm945, %v889, %v1001
  %v1058 = vsel %vm946, %v890, %v1002
  %v1059 = vsel %vm947, %v891, %v1003
  %v1060 = vsel %vm948, %v892, %v1004
  %v1061 = vsel %vm949, %v893, %v1005
  %v1062 = vsel %vm950, %v894, %v1006
  %v1063 = vsel %vm951, %v895, %v1007
  %v1064 = vsel %vm952, %v896, %v1008
  %v1065 = vsel %vm953, %v897, %v1009
  %v1066 = vsel %vm954, %v898, %v1010
  %v1067 = vsel %vm955, %v899, %v1011
  %v1068 = vsel %vm956, %v900, %v1012
  %v1069 = vsel %vm957, %v901, %v1013
  %v1070 = vsel %vm958, %v902, %v1014
  %v1071 = vsel %vm959, %v903, %v1015
  %v1072 = vsel %vm960, %v904, %v1016
  %v1073 = vsel %vm961, %v905, %v1017
  %v1074 = vsel %vm962, %v906, %v1018
  %v1075 = vsel %vm963, %v907, %v1019
  %v1076 = vsel %vm964, %v908, %v1020
  %v1077 = vsel %vm965, %v909, %v1021
  %v1078 = vsel %vm966, %v910, %v1022
  %v1079 = vsel %vm967, %v911, %v1023
  %v1080 = vsel %vm968, %v912, %v1024
  %v1081 = vsel %vm969, %v913, %v1025
  %v1082 = vsel %vm970, %v914, %v1026
  %v1083 = vsel %vm971, %v915, %v1027
  %v1084 = vsel %vm972, %v916, %v1028
  %v1085 = vsel %vm973, %v917, %v1029
  %v1086 = vsel %vm974, %v918, %v1030
  %v1087 = vsel %vm975, %v919, %v1031
  %v1088 = vsel %vm976, %v920, %v1032
  %v1089 = vsel %vm977, %v921, %v1033
  %v1090 = vsel %vm978, %v922, %v1034
  %v1091 = vsel %vm979, %v923, %v1035
  %v1092 = vsel %vm980, %v924, %v1036
  %v1093 = vsel %vm981, %v925, %v1037
  %v1094 = vadd.f32 %v1038, %v73
  %v1095 = vadd.f32 %v1039, %v74
  %v1096 = vadd.f32 %v1040, %v75
  %v1097 = vadd.f32 %v1041, %v76
  %v1098 = vadd.f32 %v1042, %v77
  %v1099 = vadd.f32 %v1043, %v78
  %v1100 = vadd.f32 %v1044, %v79
  %v1101 = vadd.f32 %v1045, %v80
  %v1102 = vadd.f32 %v1046, %v73
  %v1103 = vadd.f32 %v1047, %v74
  %v1104 = vadd.f32 %v1048, %v75
  %v1105 = vadd.f32 %v1049, %v76
  %v1106 = vadd.f32 %v1050, %v77
  %v1107 = vadd.f32 %v1051, %v78
  %v1108 = vadd.f32 %v1052, %v79
  %v1109 = vadd.f32 %v1053, %v80
  %v1110 = vadd.f32 %v1054, %v73
  %v1111 = vadd.f32 %v1055, %v74
  %v1112 = vadd.f32 %v1056, %v75
  %v1113 = vadd.f32 %v1057, %v76
  %v1114 = vadd.f32 %v1058, %v77
  %v1115 = vadd.f32 %v1059, %v78
  %v1116 = vadd.f32 %v1060, %v79
  %v1117 = vadd.f32 %v1061, %v80
  %v1118 = vadd.f32 %v1062, %v73
  %v1119 = vadd.f32 %v1063, %v74
  %v1120 = vadd.f32 %v1064, %v75
  %v1121 = vadd.f32 %v1065, %v76
  %v1122 = vadd.f32 %v1066, %v77
  %v1123 = vadd.f32 %v1067, %v78
  %v1124 = vadd.f32 %v1068, %v79
  %v1125 = vadd.f32 %v1069, %v80
  %v1126 = vadd.f32 %v1070, %v73
  %v1127 = vadd.f32 %v1071, %v74
  %v1128 = vadd.f32 %v1072, %v75
  %v1129 = vadd.f32 %v1073, %v76
  %v1130 = vadd.f32 %v1074, %v77
  %v1131 = vadd.f32 %v1075, %v78
  %v1132 = vadd.f32 %v1076, %v79
  %v1133 = vadd.f32 %v1077, %v80
  %v1134 = vadd.f32 %v1078, %v73
  %v1135 = vadd.f32 %v1079, %v74
  %v1136 = vadd.f32 %v1080, %v75
  %v1137 = vadd.f32 %v1081, %v76
  %v1138 = vadd.f32 %v1082, %v77
  %v1139 = vadd.f32 %v1083, %v78
  %v1140 = vadd.f32 %v1084, %v79
  %v1141 = vadd.f32 %v1085, %v80
  %v1142 = vadd.f32 %v1086, %v73
  %v1143 = vadd.f32 %v1087, %v74
  %v1144 = vadd.f32 %v1088, %v75
  %v1145 = vadd.f32 %v1089, %v76
  %v1146 = vadd.f32 %v1090, %v77
  %v1147 = vadd.f32 %v1091, %v78
  %v1148 = vadd.f32 %v1092, %v79
  %v1149 = vadd.f32 %v1093, %v80
  %vm1150 = vcmask 523264
  %v1151 = vsel %vm1150, %v1094, -inf
  %1152 = vmax.xlane.f32.xlu0 %v1151
  %v1153 = vpop.xlane.xlu0 %1152
  %v1154 = vsel %vm1150, %v1095, -inf
  %1155 = vmax.xlane.f32.xlu0 %v1154
  %v1156 = vpop.xlane.xlu0 %1155
  %v1157 = vsel %vm1150, %v1096, -inf
  %1158 = vmax.xlane.f32.xlu0 %v1157
  %v1159 = vpop.xlane.xlu0 %1158
  %v1160 = vsel %vm1150, %v1097, -inf
  %1161 = vmax.xlane.f32.xlu0 %v1160
  %v1162 = vpop.xlane.xlu0 %1161
  %v1163 = vsel %vm1150, %v1098, -inf
  %1164 = vmax.xlane.f32.xlu0 %v1163
  %v1165 = vpop.xlane.xlu0 %1164
  %v1166 = vsel %vm1150, %v1099, -inf
  %1167 = vmax.xlane.f32.xlu0 %v1166
  %v1168 = vpop.xlane.xlu0 %1167
  %v1169 = vsel %vm1150, %v1100, -inf
  %1170 = vmax.xlane.f32.xlu0 %v1169
  %v1171 = vpop.xlane.xlu0 %1170
  %v1172 = vsel %vm1150, %v1101, -inf
  %1173 = vmax.xlane.f32.xlu0 %v1172
  %v1174 = vpop.xlane.xlu0 %1173
  %v1175 = vsel %vm1150, %v1102, -inf
  %1176 = vmax.xlane.f32.xlu0 %v1175
  %v1177 = vpop.xlane.xlu0 %1176
  %v1178 = vsel %vm1150, %v1103, -inf
  %1179 = vmax.xlane.f32.xlu0 %v1178
  %v1180 = vpop.xlane.xlu0 %1179
  %v1181 = vsel %vm1150, %v1104, -inf
  %1182 = vmax.xlane.f32.xlu0 %v1181
  %v1183 = vpop.xlane.xlu0 %1182
  %v1184 = vsel %vm1150, %v1105, -inf
  %1185 = vmax.xlane.f32.xlu0 %v1184
  %v1186 = vpop.xlane.xlu0 %1185
  %v1187 = vsel %vm1150, %v1106, -inf
  %1188 = vmax.xlane.f32.xlu0 %v1187
  %v1189 = vpop.xlane.xlu0 %1188
  %v1190 = vsel %vm1150, %v1107, -inf
  %1191 = vmax.xlane.f32.xlu0 %v1190
  %v1192 = vpop.xlane.xlu0 %1191
  %v1193 = vsel %vm1150, %v1108, -inf
  %1194 = vmax.xlane.f32.xlu0 %v1193
  %v1195 = vpop.xlane.xlu0 %1194
  %v1196 = vsel %vm1150, %v1109, -inf
  %1197 = vmax.xlane.f32.xlu0 %v1196
  %v1198 = vpop.xlane.xlu0 %1197
  %v1199 = vsel %vm1150, %v1110, -inf
  %1200 = vmax.xlane.f32.xlu0 %v1199
  %v1201 = vpop.xlane.xlu0 %1200
  %v1202 = vsel %vm1150, %v1111, -inf
  %1203 = vmax.xlane.f32.xlu0 %v1202
  %v1204 = vpop.xlane.xlu0 %1203
  %v1205 = vsel %vm1150, %v1112, -inf
  %1206 = vmax.xlane.f32.xlu0 %v1205
  %v1207 = vpop.xlane.xlu0 %1206
  %v1208 = vsel %vm1150, %v1113, -inf
  %1209 = vmax.xlane.f32.xlu0 %v1208
  %v1210 = vpop.xlane.xlu0 %1209
  %v1211 = vsel %vm1150, %v1114, -inf
  %1212 = vmax.xlane.f32.xlu0 %v1211
  %v1213 = vpop.xlane.xlu0 %1212
  %v1214 = vsel %vm1150, %v1115, -inf
  %1215 = vmax.xlane.f32.xlu0 %v1214
  %v1216 = vpop.xlane.xlu0 %1215
  %v1217 = vsel %vm1150, %v1116, -inf
  %1218 = vmax.xlane.f32.xlu0 %v1217
  %v1219 = vpop.xlane.xlu0 %1218
  %v1220 = vsel %vm1150, %v1117, -inf
  %1221 = vmax.xlane.f32.xlu0 %v1220
  %v1222 = vpop.xlane.xlu0 %1221
  %v1223 = vsel %vm1150, %v1118, -inf
  %1224 = vmax.xlane.f32.xlu0 %v1223
  %v1225 = vpop.xlane.xlu0 %1224
  %v1226 = vsel %vm1150, %v1119, -inf
  %1227 = vmax.xlane.f32.xlu0 %v1226
  %v1228 = vpop.xlane.xlu0 %1227
  %v1229 = vsel %vm1150, %v1120, -inf
  %1230 = vmax.xlane.f32.xlu0 %v1229
  %v1231 = vpop.xlane.xlu0 %1230
  %v1232 = vsel %vm1150, %v1121, -inf
  %1233 = vmax.xlane.f32.xlu0 %v1232
  %v1234 = vpop.xlane.xlu0 %1233
  %v1235 = vsel %vm1150, %v1122, -inf
  %1236 = vmax.xlane.f32.xlu0 %v1235
  %v1237 = vpop.xlane.xlu0 %1236
  %v1238 = vsel %vm1150, %v1123, -inf
  %1239 = vmax.xlane.f32.xlu0 %v1238
  %v1240 = vpop.xlane.xlu0 %1239
  %v1241 = vsel %vm1150, %v1124, -inf
  %1242 = vmax.xlane.f32.xlu0 %v1241
  %v1243 = vpop.xlane.xlu0 %1242
  %v1244 = vsel %vm1150, %v1125, -inf
  %1245 = vmax.xlane.f32.xlu0 %v1244
  %v1246 = vpop.xlane.xlu0 %1245
  %v1247 = vsel %vm1150, %v1126, -inf
  %1248 = vmax.xlane.f32.xlu0 %v1247
  %v1249 = vpop.xlane.xlu0 %1248
  %v1250 = vsel %vm1150, %v1127, -inf
  %1251 = vmax.xlane.f32.xlu0 %v1250
  %v1252 = vpop.xlane.xlu0 %1251
  %v1253 = vsel %vm1150, %v1128, -inf
  %1254 = vmax.xlane.f32.xlu0 %v1253
  %v1255 = vpop.xlane.xlu0 %1254
  %v1256 = vsel %vm1150, %v1129, -inf
  %1257 = vmax.xlane.f32.xlu0 %v1256
  %v1258 = vpop.xlane.xlu0 %1257
  %v1259 = vsel %vm1150, %v1130, -inf
  %1260 = vmax.xlane.f32.xlu0 %v1259
  %v1261 = vpop.xlane.xlu0 %1260
  %v1262 = vsel %vm1150, %v1131, -inf
  %1263 = vmax.xlane.f32.xlu0 %v1262
  %v1264 = vpop.xlane.xlu0 %1263
  %v1265 = vsel %vm1150, %v1132, -inf
  %1266 = vmax.xlane.f32.xlu0 %v1265
  %v1267 = vpop.xlane.xlu0 %1266
  %v1268 = vsel %vm1150, %v1133, -inf
  %1269 = vmax.xlane.f32.xlu0 %v1268
  %v1270 = vpop.xlane.xlu0 %1269
  %v1271 = vsel %vm1150, %v1134, -inf
  %1272 = vmax.xlane.f32.xlu0 %v1271
  %v1273 = vpop.xlane.xlu0 %1272
  %v1274 = vsel %vm1150, %v1135, -inf
  %1275 = vmax.xlane.f32.xlu0 %v1274
  %v1276 = vpop.xlane.xlu0 %1275
  %v1277 = vsel %vm1150, %v1136, -inf
  %1278 = vmax.xlane.f32.xlu0 %v1277
  %v1279 = vpop.xlane.xlu0 %1278
  %v1280 = vsel %vm1150, %v1137, -inf
  %1281 = vmax.xlane.f32.xlu0 %v1280
  %v1282 = vpop.xlane.xlu0 %1281
  %v1283 = vsel %vm1150, %v1138, -inf
  %1284 = vmax.xlane.f32.xlu0 %v1283
  %v1285 = vpop.xlane.xlu0 %1284
  %v1286 = vsel %vm1150, %v1139, -inf
  %1287 = vmax.xlane.f32.xlu0 %v1286
  %v1288 = vpop.xlane.xlu0 %1287
  %v1289 = vsel %vm1150, %v1140, -inf
  %1290 = vmax.xlane.f32.xlu0 %v1289
  %v1291 = vpop.xlane.xlu0 %1290
  %v1292 = vsel %vm1150, %v1141, -inf
  %1293 = vmax.xlane.f32.xlu0 %v1292
  %v1294 = vpop.xlane.xlu0 %1293
  %v1295 = vsel %vm1150, %v1142, -inf
  %1296 = vmax.xlane.f32.xlu0 %v1295
  %v1297 = vpop.xlane.xlu0 %1296
  %v1298 = vsel %vm1150, %v1143, -inf
  %1299 = vmax.xlane.f32.xlu0 %v1298
  %v1300 = vpop.xlane.xlu0 %1299
  %v1301 = vsel %vm1150, %v1144, -inf
  %1302 = vmax.xlane.f32.xlu0 %v1301
  %v1303 = vpop.xlane.xlu0 %1302
  %v1304 = vsel %vm1150, %v1145, -inf
  %1305 = vmax.xlane.f32.xlu0 %v1304
  %v1306 = vpop.xlane.xlu0 %1305
  %v1307 = vsel %vm1150, %v1146, -inf
  %1308 = vmax.xlane.f32.xlu0 %v1307
  %v1309 = vpop.xlane.xlu0 %1308
  %v1310 = vsel %vm1150, %v1147, -inf
  %1311 = vmax.xlane.f32.xlu0 %v1310
  %v1312 = vpop.xlane.xlu0 %1311
  %v1313 = vsel %vm1150, %v1148, -inf
  %1314 = vmax.xlane.f32.xlu0 %v1313
  %v1315 = vpop.xlane.xlu0 %1314
  %v1316 = vsel %vm1150, %v1149, -inf
  %1317 = vmax.xlane.f32.xlu0 %v1316
  %v1318 = vpop.xlane.xlu0 %1317
  %v1319 = vsub.f32 %v1094, %v1153
  %v1320 = vsub.f32 %v1095, %v1156
  %v1321 = vsub.f32 %v1096, %v1159
  %v1322 = vsub.f32 %v1097, %v1162
  %v1323 = vsub.f32 %v1098, %v1165
  %v1324 = vsub.f32 %v1099, %v1168
  %v1325 = vsub.f32 %v1100, %v1171
  %v1326 = vsub.f32 %v1101, %v1174
  %v1327 = vsub.f32 %v1102, %v1177
  %v1328 = vsub.f32 %v1103, %v1180
  %v1329 = vsub.f32 %v1104, %v1183
  %v1330 = vsub.f32 %v1105, %v1186
  %v1331 = vsub.f32 %v1106, %v1189
  %v1332 = vsub.f32 %v1107, %v1192
  %v1333 = vsub.f32 %v1108, %v1195
  %v1334 = vsub.f32 %v1109, %v1198
  %v1335 = vsub.f32 %v1110, %v1201
  %v1336 = vsub.f32 %v1111, %v1204
  %v1337 = vsub.f32 %v1112, %v1207
  %v1338 = vsub.f32 %v1113, %v1210
  %v1339 = vsub.f32 %v1114, %v1213
  %v1340 = vsub.f32 %v1115, %v1216
  %v1341 = vsub.f32 %v1116, %v1219
  %v1342 = vsub.f32 %v1117, %v1222
  %v1343 = vsub.f32 %v1118, %v1225
  %v1344 = vsub.f32 %v1119, %v1228
  %v1345 = vsub.f32 %v1120, %v1231
  %v1346 = vsub.f32 %v1121, %v1234
  %v1347 = vsub.f32 %v1122, %v1237
  %v1348 = vsub.f32 %v1123, %v1240
  %v1349 = vsub.f32 %v1124, %v1243
  %v1350 = vsub.f32 %v1125, %v1246
  %v1351 = vsub.f32 %v1126, %v1249
  %v1352 = vsub.f32 %v1127, %v1252
  %v1353 = vsub.f32 %v1128, %v1255
  %v1354 = vsub.f32 %v1129, %v1258
  %v1355 = vsub.f32 %v1130, %v1261
  %v1356 = vsub.f32 %v1131, %v1264
  %v1357 = vsub.f32 %v1132, %v1267
  %v1358 = vsub.f32 %v1133, %v1270
  %v1359 = vsub.f32 %v1134, %v1273
  %v1360 = vsub.f32 %v1135, %v1276
  %v1361 = vsub.f32 %v1136, %v1279
  %v1362 = vsub.f32 %v1137, %v1282
  %v1363 = vsub.f32 %v1138, %v1285
  %v1364 = vsub.f32 %v1139, %v1288
  %v1365 = vsub.f32 %v1140, %v1291
  %v1366 = vsub.f32 %v1141, %v1294
  %v1367 = vsub.f32 %v1142, %v1297
  %v1368 = vsub.f32 %v1143, %v1300
  %v1369 = vsub.f32 %v1144, %v1303
  %v1370 = vsub.f32 %v1145, %v1306
  %v1371 = vsub.f32 %v1146, %v1309
  %v1372 = vsub.f32 %v1147, %v1312
  %v1373 = vsub.f32 %v1148, %v1315
  %v1374 = vsub.f32 %v1149, %v1318
  %v1375 = vmul.f32 %v1319, 1.442695
  %v1376 = vpow.pop %v1375
  %v1377 = vmul.f32 %v1320, 1.442695
  %v1378 = vpow.pop %v1377
  %v1379 = vmul.f32 %v1321, 1.442695
  %v1380 = vpow.pop %v1379
  %v1381 = vmul.f32 %v1322, 1.442695
  %v1382 = vpow.pop %v1381
  %v1383 = vmul.f32 %v1323, 1.442695
  %v1384 = vpow.pop %v1383
  %v1385 = vmul.f32 %v1324, 1.442695
  %v1386 = vpow.pop %v1385
  %v1387 = vmul.f32 %v1325, 1.442695
  %v1388 = vpow.pop %v1387
  %v1389 = vmul.f32 %v1326, 1.442695
  %v1390 = vpow.pop %v1389
  %v1391 = vmul.f32 %v1327, 1.442695
  %v1392 = vpow.pop %v1391
  %v1393 = vmul.f32 %v1328, 1.442695
  %v1394 = vpow.pop %v1393
  %v1395 = vmul.f32 %v1329, 1.442695
  %v1396 = vpow.pop %v1395
  %v1397 = vmul.f32 %v1330, 1.442695
  %v1398 = vpow.pop %v1397
  %v1399 = vmul.f32 %v1331, 1.442695
  %v1400 = vpow.pop %v1399
  %v1401 = vmul.f32 %v1332, 1.442695
  %v1402 = vpow.pop %v1401
  %v1403 = vmul.f32 %v1333, 1.442695
  %v1404 = vpow.pop %v1403
  %v1405 = vmul.f32 %v1334, 1.442695
  %v1406 = vpow.pop %v1405
  %v1407 = vmul.f32 %v1335, 1.442695
  %v1408 = vpow.pop %v1407
  %v1409 = vmul.f32 %v1336, 1.442695
  %v1410 = vpow.pop %v1409
  %v1411 = vmul.f32 %v1337, 1.442695
  %v1412 = vpow.pop %v1411
  %v1413 = vmul.f32 %v1338, 1.442695
  %v1414 = vpow.pop %v1413
  %v1415 = vmul.f32 %v1339, 1.442695
  %v1416 = vpow.pop %v1415
  %v1417 = vmul.f32 %v1340, 1.442695
  %v1418 = vpow.pop %v1417
  %v1419 = vmul.f32 %v1341, 1.442695
  %v1420 = vpow.pop %v1419
  %v1421 = vmul.f32 %v1342, 1.442695
  %v1422 = vpow.pop %v1421
  %v1423 = vmul.f32 %v1343, 1.442695
  %v1424 = vpow.pop %v1423
  %v1425 = vmul.f32 %v1344, 1.442695
  %v1426 = vpow.pop %v1425
  %v1427 = vmul.f32 %v1345, 1.442695
  %v1428 = vpow.pop %v1427
  %v1429 = vmul.f32 %v1346, 1.442695
  %v1430 = vpow.pop %v1429
  %v1431 = vmul.f32 %v1347, 1.442695
  %v1432 = vpow.pop %v1431
  %v1433 = vmul.f32 %v1348, 1.442695
  %v1434 = vpow.pop %v1433
  %v1435 = vmul.f32 %v1349, 1.442695
  %v1436 = vpow.pop %v1435
  %v1437 = vmul.f32 %v1350, 1.442695
  %v1438 = vpow.pop %v1437
  %v1439 = vmul.f32 %v1351, 1.442695
  %v1440 = vpow.pop %v1439
  %v1441 = vmul.f32 %v1352, 1.442695
  %v1442 = vpow.pop %v1441
  %v1443 = vmul.f32 %v1353, 1.442695
  %v1444 = vpow.pop %v1443
  %v1445 = vmul.f32 %v1354, 1.442695
  %v1446 = vpow.pop %v1445
  %v1447 = vmul.f32 %v1355, 1.442695
  %v1448 = vpow.pop %v1447
  %v1449 = vmul.f32 %v1356, 1.442695
  %v1450 = vpow.pop %v1449
  %v1451 = vmul.f32 %v1357, 1.442695
  %v1452 = vpow.pop %v1451
  %v1453 = vmul.f32 %v1358, 1.442695
  %v1454 = vpow.pop %v1453
  %v1455 = vmul.f32 %v1359, 1.442695
  %v1456 = vpow.pop %v1455
  %v1457 = vmul.f32 %v1360, 1.442695
  %v1458 = vpow.pop %v1457
  %v1459 = vmul.f32 %v1361, 1.442695
  %v1460 = vpow.pop %v1459
  %v1461 = vmul.f32 %v1362, 1.442695
  %v1462 = vpow.pop %v1461
  %v1463 = vmul.f32 %v1363, 1.442695
  %v1464 = vpow.pop %v1463
  %v1465 = vmul.f32 %v1364, 1.442695
  %v1466 = vpow.pop %v1465
  %v1467 = vmul.f32 %v1365, 1.442695
  %v1468 = vpow.pop %v1467
  %v1469 = vmul.f32 %v1366, 1.442695
  %v1470 = vpow.pop %v1469
  %v1471 = vmul.f32 %v1367, 1.442695
  %v1472 = vpow.pop %v1471
  %v1473 = vmul.f32 %v1368, 1.442695
  %v1474 = vpow.pop %v1473
  %v1475 = vmul.f32 %v1369, 1.442695
  %v1476 = vpow.pop %v1475
  %v1477 = vmul.f32 %v1370, 1.442695
  %v1478 = vpow.pop %v1477
  %v1479 = vmul.f32 %v1371, 1.442695
  %v1480 = vpow.pop %v1479
  %v1481 = vmul.f32 %v1372, 1.442695
  %v1482 = vpow.pop %v1481
  %v1483 = vmul.f32 %v1373, 1.442695
  %v1484 = vpow.pop %v1483
  %v1485 = vmul.f32 %v1374, 1.442695
  %v1486 = vpow.pop %v1485
  %v1487 = vsel %vm1150, %v1376, 0.0
  %1488 = vadd.xlane.f32.xlu0 %v1487
  %v1489 = vpop.xlane.xlu0 %1488
  %v1490 = vsel %vm1150, %v1378, 0.0
  %1491 = vadd.xlane.f32.xlu0 %v1490
  %v1492 = vpop.xlane.xlu0 %1491
  %v1493 = vsel %vm1150, %v1380, 0.0
  %1494 = vadd.xlane.f32.xlu0 %v1493
  %v1495 = vpop.xlane.xlu0 %1494
  %v1496 = vsel %vm1150, %v1382, 0.0
  %1497 = vadd.xlane.f32.xlu0 %v1496
  %v1498 = vpop.xlane.xlu0 %1497
  %v1499 = vsel %vm1150, %v1384, 0.0
  %1500 = vadd.xlane.f32.xlu0 %v1499
  %v1501 = vpop.xlane.xlu0 %1500
  %v1502 = vsel %vm1150, %v1386, 0.0
  %1503 = vadd.xlane.f32.xlu0 %v1502
  %v1504 = vpop.xlane.xlu0 %1503
  %v1505 = vsel %vm1150, %v1388, 0.0
  %1506 = vadd.xlane.f32.xlu0 %v1505
  %v1507 = vpop.xlane.xlu0 %1506
  %v1508 = vsel %vm1150, %v1390, 0.0
  %1509 = vadd.xlane.f32.xlu0 %v1508
  %v1510 = vpop.xlane.xlu0 %1509
  %v1511 = vsel %vm1150, %v1392, 0.0
  %1512 = vadd.xlane.f32.xlu0 %v1511
  %v1513 = vpop.xlane.xlu0 %1512
  %v1514 = vsel %vm1150, %v1394, 0.0
  %1515 = vadd.xlane.f32.xlu0 %v1514
  %v1516 = vpop.xlane.xlu0 %1515
  %v1517 = vsel %vm1150, %v1396, 0.0
  %1518 = vadd.xlane.f32.xlu0 %v1517
  %v1519 = vpop.xlane.xlu0 %1518
  %v1520 = vsel %vm1150, %v1398, 0.0
  %1521 = vadd.xlane.f32.xlu0 %v1520
  %v1522 = vpop.xlane.xlu0 %1521
  %v1523 = vsel %vm1150, %v1400, 0.0
  %1524 = vadd.xlane.f32.xlu0 %v1523
  %v1525 = vpop.xlane.xlu0 %1524
  %v1526 = vsel %vm1150, %v1402, 0.0
  %1527 = vadd.xlane.f32.xlu0 %v1526
  %v1528 = vpop.xlane.xlu0 %1527
  %v1529 = vsel %vm1150, %v1404, 0.0
  %1530 = vadd.xlane.f32.xlu0 %v1529
  %v1531 = vpop.xlane.xlu0 %1530
  %v1532 = vsel %vm1150, %v1406, 0.0
  %1533 = vadd.xlane.f32.xlu0 %v1532
  %v1534 = vpop.xlane.xlu0 %1533
  %v1535 = vsel %vm1150, %v1408, 0.0
  %1536 = vadd.xlane.f32.xlu0 %v1535
  %v1537 = vpop.xlane.xlu0 %1536
  %v1538 = vsel %vm1150, %v1410, 0.0
  %1539 = vadd.xlane.f32.xlu0 %v1538
  %v1540 = vpop.xlane.xlu0 %1539
  %v1541 = vsel %vm1150, %v1412, 0.0
  %1542 = vadd.xlane.f32.xlu0 %v1541
  %v1543 = vpop.xlane.xlu0 %1542
  %v1544 = vsel %vm1150, %v1414, 0.0
  %1545 = vadd.xlane.f32.xlu0 %v1544
  %v1546 = vpop.xlane.xlu0 %1545
  %v1547 = vsel %vm1150, %v1416, 0.0
  %1548 = vadd.xlane.f32.xlu0 %v1547
  %v1549 = vpop.xlane.xlu0 %1548
  %v1550 = vsel %vm1150, %v1418, 0.0
  %1551 = vadd.xlane.f32.xlu0 %v1550
  %v1552 = vpop.xlane.xlu0 %1551
  %v1553 = vsel %vm1150, %v1420, 0.0
  %1554 = vadd.xlane.f32.xlu0 %v1553
  %v1555 = vpop.xlane.xlu0 %1554
  %v1556 = vsel %vm1150, %v1422, 0.0
  %1557 = vadd.xlane.f32.xlu0 %v1556
  %v1558 = vpop.xlane.xlu0 %1557
  %v1559 = vsel %vm1150, %v1424, 0.0
  %1560 = vadd.xlane.f32.xlu0 %v1559
  %v1561 = vpop.xlane.xlu0 %1560
  %v1562 = vsel %vm1150, %v1426, 0.0
  %1563 = vadd.xlane.f32.xlu0 %v1562
  %v1564 = vpop.xlane.xlu0 %1563
  %v1565 = vsel %vm1150, %v1428, 0.0
  %1566 = vadd.xlane.f32.xlu0 %v1565
  %v1567 = vpop.xlane.xlu0 %1566
  %v1568 = vsel %vm1150, %v1430, 0.0
  %1569 = vadd.xlane.f32.xlu0 %v1568
  %v1570 = vpop.xlane.xlu0 %1569
  %v1571 = vsel %vm1150, %v1432, 0.0
  %1572 = vadd.xlane.f32.xlu0 %v1571
  %v1573 = vpop.xlane.xlu0 %1572
  %v1574 = vsel %vm1150, %v1434, 0.0
  %1575 = vadd.xlane.f32.xlu0 %v1574
  %v1576 = vpop.xlane.xlu0 %1575
  %v1577 = vsel %vm1150, %v1436, 0.0
  %1578 = vadd.xlane.f32.xlu0 %v1577
  %v1579 = vpop.xlane.xlu0 %1578
  %v1580 = vsel %vm1150, %v1438, 0.0
  %1581 = vadd.xlane.f32.xlu0 %v1580
  %v1582 = vpop.xlane.xlu0 %1581
  %v1583 = vsel %vm1150, %v1440, 0.0
  %1584 = vadd.xlane.f32.xlu0 %v1583
  %v1585 = vpop.xlane.xlu0 %1584
  %v1586 = vsel %vm1150, %v1442, 0.0
  %1587 = vadd.xlane.f32.xlu0 %v1586
  %v1588 = vpop.xlane.xlu0 %1587
  %v1589 = vsel %vm1150, %v1444, 0.0
  %1590 = vadd.xlane.f32.xlu0 %v1589
  %v1591 = vpop.xlane.xlu0 %1590
  %v1592 = vsel %vm1150, %v1446, 0.0
  %1593 = vadd.xlane.f32.xlu0 %v1592
  %v1594 = vpop.xlane.xlu0 %1593
  %v1595 = vsel %vm1150, %v1448, 0.0
  %1596 = vadd.xlane.f32.xlu0 %v1595
  %v1597 = vpop.xlane.xlu0 %1596
  %v1598 = vsel %vm1150, %v1450, 0.0
  %1599 = vadd.xlane.f32.xlu0 %v1598
  %v1600 = vpop.xlane.xlu0 %1599
  %v1601 = vsel %vm1150, %v1452, 0.0
  %1602 = vadd.xlane.f32.xlu0 %v1601
  %v1603 = vpop.xlane.xlu0 %1602
  %v1604 = vsel %vm1150, %v1454, 0.0
  %1605 = vadd.xlane.f32.xlu0 %v1604
  %v1606 = vpop.xlane.xlu0 %1605
  %v1607 = vsel %vm1150, %v1456, 0.0
  %1608 = vadd.xlane.f32.xlu0 %v1607
  %v1609 = vpop.xlane.xlu0 %1608
  %v1610 = vsel %vm1150, %v1458, 0.0
  %1611 = vadd.xlane.f32.xlu0 %v1610
  %v1612 = vpop.xlane.xlu0 %1611
  %v1613 = vsel %vm1150, %v1460, 0.0
  %1614 = vadd.xlane.f32.xlu0 %v1613
  %v1615 = vpop.xlane.xlu0 %1614
  %v1616 = vsel %vm1150, %v1462, 0.0
  %1617 = vadd.xlane.f32.xlu0 %v1616
  %v1618 = vpop.xlane.xlu0 %1617
  %v1619 = vsel %vm1150, %v1464, 0.0
  %1620 = vadd.xlane.f32.xlu0 %v1619
  %v1621 = vpop.xlane.xlu0 %1620
  %v1622 = vsel %vm1150, %v1466, 0.0
  %1623 = vadd.xlane.f32.xlu0 %v1622
  %v1624 = vpop.xlane.xlu0 %1623
  %v1625 = vsel %vm1150, %v1468, 0.0
  %1626 = vadd.xlane.f32.xlu0 %v1625
  %v1627 = vpop.xlane.xlu0 %1626
  %v1628 = vsel %vm1150, %v1470, 0.0
  %1629 = vadd.xlane.f32.xlu0 %v1628
  %v1630 = vpop.xlane.xlu0 %1629
  %v1631 = vsel %vm1150, %v1472, 0.0
  %1632 = vadd.xlane.f32.xlu0 %v1631
  %v1633 = vpop.xlane.xlu0 %1632
  %v1634 = vsel %vm1150, %v1474, 0.0
  %1635 = vadd.xlane.f32.xlu0 %v1634
  %v1636 = vpop.xlane.xlu0 %1635
  %v1637 = vsel %vm1150, %v1476, 0.0
  %1638 = vadd.xlane.f32.xlu0 %v1637
  %v1639 = vpop.xlane.xlu0 %1638
  %v1640 = vsel %vm1150, %v1478, 0.0
  %1641 = vadd.xlane.f32.xlu0 %v1640
  %v1642 = vpop.xlane.xlu0 %1641
  %v1643 = vsel %vm1150, %v1480, 0.0
  %1644 = vadd.xlane.f32.xlu0 %v1643
  %v1645 = vpop.xlane.xlu0 %1644
  %v1646 = vsel %vm1150, %v1482, 0.0
  %1647 = vadd.xlane.f32.xlu0 %v1646
  %v1648 = vpop.xlane.xlu0 %1647
  %v1649 = vsel %vm1150, %v1484, 0.0
  %1650 = vadd.xlane.f32.xlu0 %v1649
  %v1651 = vpop.xlane.xlu0 %1650
  %v1652 = vsel %vm1150, %v1486, 0.0
  %1653 = vadd.xlane.f32.xlu0 %v1652
  %v1654 = vpop.xlane.xlu0 %1653
  %v1655 = vrcp.pop %v1489
  %v1656 = vrcp.pop %v1492
  %v1657 = vrcp.pop %v1495
  %v1658 = vrcp.pop %v1498
  %v1659 = vrcp.pop %v1501
  %v1660 = vrcp.pop %v1504
  %v1661 = vrcp.pop %v1507
  %v1662 = vrcp.pop %v1510
  %v1663 = vrcp.pop %v1513
  %v1664 = vrcp.pop %v1516
  %v1665 = vrcp.pop %v1519
  %v1666 = vrcp.pop %v1522
  %v1667 = vrcp.pop %v1525
  %v1668 = vrcp.pop %v1528
  %v1669 = vrcp.pop %v1531
  %v1670 = vrcp.pop %v1534
  %v1671 = vrcp.pop %v1537
  %v1672 = vrcp.pop %v1540
  %v1673 = vrcp.pop %v1543
  %v1674 = vrcp.pop %v1546
  %v1675 = vrcp.pop %v1549
  %v1676 = vrcp.pop %v1552
  %v1677 = vrcp.pop %v1555
  %v1678 = vrcp.pop %v1558
  %v1679 = vrcp.pop %v1561
  %v1680 = vrcp.pop %v1564
  %v1681 = vrcp.pop %v1567
  %v1682 = vrcp.pop %v1570
  %v1683 = vrcp.pop %v1573
  %v1684 = vrcp.pop %v1576
  %v1685 = vrcp.pop %v1579
  %v1686 = vrcp.pop %v1582
  %v1687 = vrcp.pop %v1585
  %v1688 = vrcp.pop %v1588
  %v1689 = vrcp.pop %v1591
  %v1690 = vrcp.pop %v1594
  %v1691 = vrcp.pop %v1597
  %v1692 = vrcp.pop %v1600
  %v1693 = vrcp.pop %v1603
  %v1694 = vrcp.pop %v1606
  %v1695 = vrcp.pop %v1609
  %v1696 = vrcp.pop %v1612
  %v1697 = vrcp.pop %v1615
  %v1698 = vrcp.pop %v1618
  %v1699 = vrcp.pop %v1621
  %v1700 = vrcp.pop %v1624
  %v1701 = vrcp.pop %v1627
  %v1702 = vrcp.pop %v1630
  %v1703 = vrcp.pop %v1633
  %v1704 = vrcp.pop %v1636
  %v1705 = vrcp.pop %v1639
  %v1706 = vrcp.pop %v1642
  %v1707 = vrcp.pop %v1645
  %v1708 = vrcp.pop %v1648
  %v1709 = vrcp.pop %v1651
  %v1710 = vrcp.pop %v1654
  %v1711 = vmul.f32 %v1376, %v1655
  %v1712 = vmul.f32 %v1378, %v1656
  %v1713 = vmul.f32 %v1380, %v1657
  %v1714 = vmul.f32 %v1382, %v1658
  %v1715 = vmul.f32 %v1384, %v1659
  %v1716 = vmul.f32 %v1386, %v1660
  %v1717 = vmul.f32 %v1388, %v1661
  %v1718 = vmul.f32 %v1390, %v1662
  %v1719 = vmul.f32 %v1392, %v1663
  %v1720 = vmul.f32 %v1394, %v1664
  %v1721 = vmul.f32 %v1396, %v1665
  %v1722 = vmul.f32 %v1398, %v1666
  %v1723 = vmul.f32 %v1400, %v1667
  %v1724 = vmul.f32 %v1402, %v1668
  %v1725 = vmul.f32 %v1404, %v1669
  %v1726 = vmul.f32 %v1406, %v1670
  %v1727 = vmul.f32 %v1408, %v1671
  %v1728 = vmul.f32 %v1410, %v1672
  %v1729 = vmul.f32 %v1412, %v1673
  %v1730 = vmul.f32 %v1414, %v1674
  %v1731 = vmul.f32 %v1416, %v1675
  %v1732 = vmul.f32 %v1418, %v1676
  %v1733 = vmul.f32 %v1420, %v1677
  %v1734 = vmul.f32 %v1422, %v1678
  %v1735 = vmul.f32 %v1424, %v1679
  %v1736 = vmul.f32 %v1426, %v1680
  %v1737 = vmul.f32 %v1428, %v1681
  %v1738 = vmul.f32 %v1430, %v1682
  %v1739 = vmul.f32 %v1432, %v1683
  %v1740 = vmul.f32 %v1434, %v1684
  %v1741 = vmul.f32 %v1436, %v1685
  %v1742 = vmul.f32 %v1438, %v1686
  %v1743 = vmul.f32 %v1440, %v1687
  %v1744 = vmul.f32 %v1442, %v1688
  %v1745 = vmul.f32 %v1444, %v1689
  %v1746 = vmul.f32 %v1446, %v1690
  %v1747 = vmul.f32 %v1448, %v1691
  %v1748 = vmul.f32 %v1450, %v1692
  %v1749 = vmul.f32 %v1452, %v1693
  %v1750 = vmul.f32 %v1454, %v1694
  %v1751 = vmul.f32 %v1456, %v1695
  %v1752 = vmul.f32 %v1458, %v1696
  %v1753 = vmul.f32 %v1460, %v1697
  %v1754 = vmul.f32 %v1462, %v1698
  %v1755 = vmul.f32 %v1464, %v1699
  %v1756 = vmul.f32 %v1466, %v1700
  %v1757 = vmul.f32 %v1468, %v1701
  %v1758 = vmul.f32 %v1470, %v1702
  %v1759 = vmul.f32 %v1472, %v1703
  %v1760 = vmul.f32 %v1474, %v1704
  %v1761 = vmul.f32 %v1476, %v1705
  %v1762 = vmul.f32 %v1478, %v1706
  %v1763 = vmul.f32 %v1480, %v1707
  %v1764 = vmul.f32 %v1482, %v1708
  %v1765 = vmul.f32 %v1484, %v1709
  %v1766 = vmul.f32 %v1486, %v1710
  %v1767 = vpack.c.bf16 %v1712, %v1711
  %v1768 = vpack.c.bf16 %v1714, %v1713
  %v1769 = vpack.c.bf16 %v1716, %v1715
  %v1770 = vpack.c.bf16 %v1718, %v1717
  %v1771 = vpack.c.bf16 %v1720, %v1719
  %v1772 = vpack.c.bf16 %v1722, %v1721
  %v1773 = vpack.c.bf16 %v1724, %v1723
  %v1774 = vpack.c.bf16 %v1726, %v1725
  %v1775 = vpack.c.bf16 %v1728, %v1727
  %v1776 = vpack.c.bf16 %v1730, %v1729
  %v1777 = vpack.c.bf16 %v1732, %v1731
  %v1778 = vpack.c.bf16 %v1734, %v1733
  %v1779 = vpack.c.bf16 %v1736, %v1735
  %v1780 = vpack.c.bf16 %v1738, %v1737
  %v1781 = vpack.c.bf16 %v1740, %v1739
  %v1782 = vpack.c.bf16 %v1742, %v1741
  %v1783 = vpack.c.bf16 %v1744, %v1743
  %v1784 = vpack.c.bf16 %v1746, %v1745
  %v1785 = vpack.c.bf16 %v1748, %v1747
  %v1786 = vpack.c.bf16 %v1750, %v1749
  %v1787 = vpack.c.bf16 %v1752, %v1751
  %v1788 = vpack.c.bf16 %v1754, %v1753
  %v1789 = vpack.c.bf16 %v1756, %v1755
  %v1790 = vpack.c.bf16 %v1758, %v1757
  %v1791 = vpack.c.bf16 %v1760, %v1759
  %v1792 = vpack.c.bf16 %v1762, %v1761
  %v1793 = vpack.c.bf16 %v1764, %v1763
  %v1794 = vpack.c.bf16 %v1766, %v1765
  %v1795 = vpack.c.bf16 %v136, %v133
  %v1796 = vpack.c.bf16 %v142, %v139
  %v1797 = vpack.c.bf16 %v148, %v145
  %v1798 = vpack.c.bf16 %v154, %v151
  %v1800 = vsel %vm1150, %v1767, 0
  %v1803 = vsel %vm1150, %v1768, 0
  %v1806 = vsel %vm1150, %v1769, 0
  %v1809 = vsel %vm1150, %v1770, 0
  %v1812 = vsel %vm1150, %v1771, 0
  %v1815 = vsel %vm1150, %v1772, 0
  %v1818 = vsel %vm1150, %v1773, 0
  %v1821 = vsel %vm1150, %v1774, 0
  %v1824 = vsel %vm1150, %v1775, 0
  %v1827 = vsel %vm1150, %v1776, 0
  %v1830 = vsel %vm1150, %v1777, 0
  %v1833 = vsel %vm1150, %v1778, 0
  %v1836 = vsel %vm1150, %v1779, 0
  %v1839 = vsel %vm1150, %v1780, 0
  %v1842 = vsel %vm1150, %v1781, 0
  %v1845 = vsel %vm1150, %v1782, 0
  %v1848 = vsel %vm1150, %v1783, 0
  %v1851 = vsel %vm1150, %v1784, 0
  %v1854 = vsel %vm1150, %v1785, 0
  %v1857 = vsel %vm1150, %v1786, 0
  %v1860 = vsel %vm1150, %v1787, 0
  %v1863 = vsel %vm1150, %v1788, 0
  %v1866 = vsel %vm1150, %v1789, 0
  %v1869 = vsel %vm1150, %v1790, 0
  %v1872 = vsel %vm1150, %v1791, 0
  %v1875 = vsel %vm1150, %v1792, 0
  %v1878 = vsel %vm1150, %v1793, 0
  %v1881 = vsel %vm1150, %v1794, 0
  %1883 = vmatpush.bf16.msra.mxu0 0
  %1884 = vmatpush.bf16.msra.mxu0 0
  %1885 = vmatpush.bf16.msra.mxu0 0
  %1886 = vmatpush.bf16.msra.mxu0 0
  %1887 = vmatpush.bf16.msra.mxu0 %v1798
  %1888 = vmatpush.bf16.msra.mxu0 %v1797
  %1889 = vmatpush.bf16.msra.mxu0 %v1796
  %1890 = vmatpush.bf16.msra.mxu0 %v1795
  %1891 = vmatmul.bf16.gmra.mxu0 %v1800
  %v1892 = vpop.f32.mrf.mxu0
  %v1893 = vadd.f32 0.0, %v1892
  %v1894 = vpop.f32.mrf.mxu0
  %v1895 = vadd.f32 0.0, %v1894
  %1896 = vmatmul.bf16.gmra.mxu0 %v1803
  %v1897 = vpop.f32.mrf.mxu0
  %v1898 = vadd.f32 0.0, %v1897
  %v1899 = vpop.f32.mrf.mxu0
  %v1900 = vadd.f32 0.0, %v1899
  %1901 = vmatmul.bf16.gmra.mxu0 %v1806
  %v1902 = vpop.f32.mrf.mxu0
  %v1903 = vadd.f32 0.0, %v1902
  %v1904 = vpop.f32.mrf.mxu0
  %v1905 = vadd.f32 0.0, %v1904
  %1906 = vmatmul.bf16.gmra.mxu0 %v1809
  %v1907 = vpop.f32.mrf.mxu0
  %v1908 = vadd.f32 0.0, %v1907
  %v1909 = vpop.f32.mrf.mxu0
  %v1910 = vadd.f32 0.0, %v1909
  %1911 = vmatmul.bf16.gmra.mxu0 %v1812
  %v1912 = vpop.f32.mrf.mxu0
  %v1913 = vadd.f32 0.0, %v1912
  %v1914 = vpop.f32.mrf.mxu0
  %v1915 = vadd.f32 0.0, %v1914
  %1916 = vmatmul.bf16.gmra.mxu0 %v1815
  %v1917 = vpop.f32.mrf.mxu0
  %v1918 = vadd.f32 0.0, %v1917
  %v1919 = vpop.f32.mrf.mxu0
  %v1920 = vadd.f32 0.0, %v1919
  %1921 = vmatmul.bf16.gmra.mxu0 %v1818
  %v1922 = vpop.f32.mrf.mxu0
  %v1923 = vadd.f32 0.0, %v1922
  %v1924 = vpop.f32.mrf.mxu0
  %v1925 = vadd.f32 0.0, %v1924
  %1926 = vmatmul.bf16.gmra.mxu0 %v1821
  %v1927 = vpop.f32.mrf.mxu0
  %v1928 = vadd.f32 0.0, %v1927
  %v1929 = vpop.f32.mrf.mxu0
  %v1930 = vadd.f32 0.0, %v1929
  %1931 = vmatmul.bf16.gmra.mxu0 %v1824
  %v1932 = vpop.f32.mrf.mxu0
  %v1933 = vadd.f32 0.0, %v1932
  %v1934 = vpop.f32.mrf.mxu0
  %v1935 = vadd.f32 0.0, %v1934
  %1936 = vmatmul.bf16.gmra.mxu0 %v1827
  %v1937 = vpop.f32.mrf.mxu0
  %v1938 = vadd.f32 0.0, %v1937
  %v1939 = vpop.f32.mrf.mxu0
  %v1940 = vadd.f32 0.0, %v1939
  %1941 = vmatmul.bf16.gmra.mxu0 %v1830
  %v1942 = vpop.f32.mrf.mxu0
  %v1943 = vadd.f32 0.0, %v1942
  %v1944 = vpop.f32.mrf.mxu0
  %v1945 = vadd.f32 0.0, %v1944
  %1946 = vmatmul.bf16.gmra.mxu0 %v1833
  %v1947 = vpop.f32.mrf.mxu0
  %v1948 = vadd.f32 0.0, %v1947
  %v1949 = vpop.f32.mrf.mxu0
  %v1950 = vadd.f32 0.0, %v1949
  %1951 = vmatmul.bf16.gmra.mxu0 %v1836
  %v1952 = vpop.f32.mrf.mxu0
  %v1953 = vadd.f32 0.0, %v1952
  %v1954 = vpop.f32.mrf.mxu0
  %v1955 = vadd.f32 0.0, %v1954
  %1956 = vmatmul.bf16.gmra.mxu0 %v1839
  %v1957 = vpop.f32.mrf.mxu0
  %v1958 = vadd.f32 0.0, %v1957
  %v1959 = vpop.f32.mrf.mxu0
  %v1960 = vadd.f32 0.0, %v1959
  %1961 = vmatmul.bf16.gmra.mxu0 %v1842
  %v1962 = vpop.f32.mrf.mxu0
  %v1963 = vadd.f32 0.0, %v1962
  %v1964 = vpop.f32.mrf.mxu0
  %v1965 = vadd.f32 0.0, %v1964
  %1966 = vmatmul.bf16.gmra.mxu0 %v1845
  %v1967 = vpop.f32.mrf.mxu0
  %v1968 = vadd.f32 0.0, %v1967
  %v1969 = vpop.f32.mrf.mxu0
  %v1970 = vadd.f32 0.0, %v1969
  %1971 = vmatmul.bf16.gmra.mxu0 %v1848
  %v1972 = vpop.f32.mrf.mxu0
  %v1973 = vadd.f32 0.0, %v1972
  %v1974 = vpop.f32.mrf.mxu0
  %v1975 = vadd.f32 0.0, %v1974
  %1976 = vmatmul.bf16.gmra.mxu0 %v1851
  %v1977 = vpop.f32.mrf.mxu0
  %v1978 = vadd.f32 0.0, %v1977
  %v1979 = vpop.f32.mrf.mxu0
  %v1980 = vadd.f32 0.0, %v1979
  %1981 = vmatmul.bf16.gmra.mxu0 %v1854
  %v1982 = vpop.f32.mrf.mxu0
  %v1983 = vadd.f32 0.0, %v1982
  %v1984 = vpop.f32.mrf.mxu0
  %v1985 = vadd.f32 0.0, %v1984
  %1986 = vmatmul.bf16.gmra.mxu0 %v1857
  %v1987 = vpop.f32.mrf.mxu0
  %v1988 = vadd.f32 0.0, %v1987
  %v1989 = vpop.f32.mrf.mxu0
  %v1990 = vadd.f32 0.0, %v1989
  %1991 = vmatmul.bf16.gmra.mxu0 %v1860
  %v1992 = vpop.f32.mrf.mxu0
  %v1993 = vadd.f32 0.0, %v1992
  %v1994 = vpop.f32.mrf.mxu0
  %v1995 = vadd.f32 0.0, %v1994
  %1996 = vmatmul.bf16.gmra.mxu0 %v1863
  %v1997 = vpop.f32.mrf.mxu0
  %v1998 = vadd.f32 0.0, %v1997
  %v1999 = vpop.f32.mrf.mxu0
  %v2000 = vadd.f32 0.0, %v1999
  %2001 = vmatmul.bf16.gmra.mxu0 %v1866
  %v2002 = vpop.f32.mrf.mxu0
  %v2003 = vadd.f32 0.0, %v2002
  %v2004 = vpop.f32.mrf.mxu0
  %v2005 = vadd.f32 0.0, %v2004
  %2006 = vmatmul.bf16.gmra.mxu0 %v1869
  %v2007 = vpop.f32.mrf.mxu0
  %v2008 = vadd.f32 0.0, %v2007
  %v2009 = vpop.f32.mrf.mxu0
  %v2010 = vadd.f32 0.0, %v2009
  %2011 = vmatmul.bf16.gmra.mxu0 %v1872
  %v2012 = vpop.f32.mrf.mxu0
  %v2013 = vadd.f32 0.0, %v2012
  %v2014 = vpop.f32.mrf.mxu0
  %v2015 = vadd.f32 0.0, %v2014
  %2016 = vmatmul.bf16.gmra.mxu0 %v1875
  %v2017 = vpop.f32.mrf.mxu0
  %v2018 = vadd.f32 0.0, %v2017
  %v2019 = vpop.f32.mrf.mxu0
  %v2020 = vadd.f32 0.0, %v2019
  %2021 = vmatmul.bf16.gmra.mxu0 %v1878
  %v2022 = vpop.f32.mrf.mxu0
  %v2023 = vadd.f32 0.0, %v2022
  %v2024 = vpop.f32.mrf.mxu0
  %v2025 = vadd.f32 0.0, %v2024
  %2026 = vmatmul.bf16.gmra.mxu0 %v1881
  %v2027 = vpop.f32.mrf.mxu0
  %v2028 = vadd.f32 0.0, %v2027
  %v2029 = vpop.f32.mrf.mxu0
  %v2030 = vadd.f32 0.0, %v2029
  %2031 = vdwg.mxu0
  %v2032 = vld [vmem:[%s5] sm:$0x7f]
  %v2033 = vperm.slane %v2032, 0
  %v2034 = vmul.f32 %v1893, %v2033
  %v2035 = vmul.f32 %v1895, %v2033
  %v2036 = vmul.f32 %v1898, %v2033
  %v2037 = vmul.f32 %v1900, %v2033
  %v2038 = vmul.f32 %v1903, %v2033
  %v2039 = vmul.f32 %v1905, %v2033
  %v2040 = vmul.f32 %v1908, %v2033
  %v2041 = vmul.f32 %v1910, %v2033
  %v2042 = vperm.slane %v2032, 1
  %v2043 = vmul.f32 %v1913, %v2042
  %v2044 = vmul.f32 %v1915, %v2042
  %v2045 = vmul.f32 %v1918, %v2042
  %v2046 = vmul.f32 %v1920, %v2042
  %v2047 = vmul.f32 %v1923, %v2042
  %v2048 = vmul.f32 %v1925, %v2042
  %v2049 = vmul.f32 %v1928, %v2042
  %v2050 = vmul.f32 %v1930, %v2042
  %v2051 = vadd.f32 %v2034, %v2043
  %v2052 = vadd.f32 %v2035, %v2044
  %v2053 = vadd.f32 %v2036, %v2045
  %v2054 = vadd.f32 %v2037, %v2046
  %v2055 = vadd.f32 %v2038, %v2047
  %v2056 = vadd.f32 %v2039, %v2048
  %v2057 = vadd.f32 %v2040, %v2049
  %v2058 = vadd.f32 %v2041, %v2050
  %v2059 = vperm.slane %v2032, 2
  %v2060 = vmul.f32 %v1933, %v2059
  %v2061 = vmul.f32 %v1935, %v2059
  %v2062 = vmul.f32 %v1938, %v2059
  %v2063 = vmul.f32 %v1940, %v2059
  %v2064 = vmul.f32 %v1943, %v2059
  %v2065 = vmul.f32 %v1945, %v2059
  %v2066 = vmul.f32 %v1948, %v2059
  %v2067 = vmul.f32 %v1950, %v2059
  %v2068 = vadd.f32 %v2051, %v2060
  %v2069 = vadd.f32 %v2052, %v2061
  %v2070 = vadd.f32 %v2053, %v2062
  %v2071 = vadd.f32 %v2054, %v2063
  %v2072 = vadd.f32 %v2055, %v2064
  %v2073 = vadd.f32 %v2056, %v2065
  %v2074 = vadd.f32 %v2057, %v2066
  %v2075 = vadd.f32 %v2058, %v2067
  %v2076 = vperm.slane %v2032, 3
  %v2077 = vmul.f32 %v1953, %v2076
  %v2078 = vmul.f32 %v1955, %v2076
  %v2079 = vmul.f32 %v1958, %v2076
  %v2080 = vmul.f32 %v1960, %v2076
  %v2081 = vmul.f32 %v1963, %v2076
  %v2082 = vmul.f32 %v1965, %v2076
  %v2083 = vmul.f32 %v1968, %v2076
  %v2084 = vmul.f32 %v1970, %v2076
  %v2085 = vadd.f32 %v2068, %v2077
  %v2086 = vadd.f32 %v2069, %v2078
  %v2087 = vadd.f32 %v2070, %v2079
  %v2088 = vadd.f32 %v2071, %v2080
  %v2089 = vadd.f32 %v2072, %v2081
  %v2090 = vadd.f32 %v2073, %v2082
  %v2091 = vadd.f32 %v2074, %v2083
  %v2092 = vadd.f32 %v2075, %v2084
  %v2093 = vperm.slane %v2032, 4
  %v2094 = vmul.f32 %v1973, %v2093
  %v2095 = vmul.f32 %v1975, %v2093
  %v2096 = vmul.f32 %v1978, %v2093
  %v2097 = vmul.f32 %v1980, %v2093
  %v2098 = vmul.f32 %v1983, %v2093
  %v2099 = vmul.f32 %v1985, %v2093
  %v2100 = vmul.f32 %v1988, %v2093
  %v2101 = vmul.f32 %v1990, %v2093
  %v2102 = vadd.f32 %v2085, %v2094
  %v2103 = vadd.f32 %v2086, %v2095
  %v2104 = vadd.f32 %v2087, %v2096
  %v2105 = vadd.f32 %v2088, %v2097
  %v2106 = vadd.f32 %v2089, %v2098
  %v2107 = vadd.f32 %v2090, %v2099
  %v2108 = vadd.f32 %v2091, %v2100
  %v2109 = vadd.f32 %v2092, %v2101
  %v2110 = vperm.slane %v2032, 5
  %v2111 = vmul.f32 %v1993, %v2110
  %v2112 = vmul.f32 %v1995, %v2110
  %v2113 = vmul.f32 %v1998, %v2110
  %v2114 = vmul.f32 %v2000, %v2110
  %v2115 = vmul.f32 %v2003, %v2110
  %v2116 = vmul.f32 %v2005, %v2110
  %v2117 = vmul.f32 %v2008, %v2110
  %v2118 = vmul.f32 %v2010, %v2110
  %v2119 = vadd.f32 %v2102, %v2111
  %v2120 = vadd.f32 %v2103, %v2112
  %v2121 = vadd.f32 %v2104, %v2113
  %v2122 = vadd.f32 %v2105, %v2114
  %v2123 = vadd.f32 %v2106, %v2115
  %v2124 = vadd.f32 %v2107, %v2116
  %v2125 = vadd.f32 %v2108, %v2117
  %v2126 = vadd.f32 %v2109, %v2118
  %v2127 = vperm.slane %v2032, 6
  %v2128 = vmul.f32 %v2013, %v2127
  %v2129 = vmul.f32 %v2015, %v2127
  %v2130 = vmul.f32 %v2018, %v2127
  %v2131 = vmul.f32 %v2020, %v2127
  %v2132 = vmul.f32 %v2023, %v2127
  %v2133 = vmul.f32 %v2025, %v2127
  %v2134 = vmul.f32 %v2028, %v2127
  %v2135 = vmul.f32 %v2030, %v2127
  %v2136 = vadd.f32 %v2119, %v2128
  %v2137 = vadd.f32 %v2120, %v2129
  %v2138 = vadd.f32 %v2121, %v2130
  %v2139 = vadd.f32 %v2122, %v2131
  %v2140 = vadd.f32 %v2123, %v2132
  %v2141 = vadd.f32 %v2124, %v2133
  %v2142 = vadd.f32 %v2125, %v2134
  %v2143 = vadd.f32 %v2126, %v2135
  %v2144 = vld [vmem:[%s6] sm:$0x1]
  %v2146 = vperm.slane %v2144, 0
  %v2148 = vadd.f32 %v2136, %v2146
  %v2149 = vadd.f32 %v2137, %v2146
  %v2150 = vadd.f32 %v2138, %v2146
  %v2151 = vadd.f32 %v2139, %v2146
  %v2152 = vadd.f32 %v2140, %v2146
  %v2153 = vadd.f32 %v2141, %v2146
  %v2154 = vadd.f32 %v2142, %v2146
  %v2155 = vadd.f32 %v2143, %v2146
  %v2156 = vmax.f32 %v2148, 0.0
  %v2157 = vmax.f32 %v2149, 0.0
  %v2158 = vmax.f32 %v2150, 0.0
  %v2159 = vmax.f32 %v2151, 0.0
  %v2160 = vmax.f32 %v2152, 0.0
  %v2161 = vmax.f32 %v2153, 0.0
  %v2162 = vmax.f32 %v2154, 0.0
  %v2163 = vmax.f32 %v2155, 0.0
  %v2164 = vld [vmem:[%s7] sm:$0xff]
  %v2165 = vld [vmem:[%s7 + $0x8] sm:$0xff]
  %v2166 = vld [vmem:[%s7 + $0x10] sm:$0xff]
  %v2167 = vld [vmem:[%s7 + $0x18] sm:$0xff]
  %v2168 = vld [vmem:[%s7 + $0x20] sm:$0xff]
  %v2169 = vld [vmem:[%s7 + $0x28] sm:$0xff]
  %v2170 = vld [vmem:[%s7 + $0x30] sm:$0xff]
  %v2172 = vsel %vm212, %v2156, 0
  %v2175 = vsel %vm212, %v2157, 0
  %v2178 = vsel %vm212, %v2158, 0
  %v2181 = vsel %vm212, %v2159, 0
  %v2184 = vsel %vm212, %v2160, 0
  %v2187 = vsel %vm212, %v2161, 0
  %v2190 = vsel %vm212, %v2162, 0
  %v2193 = vsel %vm212, %v2163, 0
  %2195 = vmatpush.msra.mxu0 0.0
  %2196 = vmatpush.msra.mxu0 0.0
  %2197 = vmatpush.msra.mxu0 0.0
  %2198 = vmatpush.msra.mxu0 0.0
  %2199 = vmatpush.msra.mxu0 0.0
  %2200 = vmatpush.msra.mxu0 0.0
  %2201 = vmatpush.msra.mxu0 0.0
  %2202 = vmatpush.msra.mxu0 0.0
  %2203 = vmatpush.msra.mxu0 0.0
  %2204 = vmatpush.msra.mxu0 %v2170
  %2205 = vmatpush.msra.mxu0 %v2169
  %2206 = vmatpush.msra.mxu0 %v2168
  %2207 = vmatpush.msra.mxu0 %v2167
  %2208 = vmatpush.msra.mxu0 %v2166
  %2209 = vmatpush.msra.mxu0 %v2165
  %2210 = vmatpush.msra.mxu0 %v2164
  %2211 = vmatmul.f32.gmra.mxu0 %v2172
  %v2212 = vpop.f32.mrf.mxu0
  %v2213 = vadd.f32 0.0, %v2212
  %2214 = vmatmul.f32.gmra.mxu0 %v2175
  %v2215 = vpop.f32.mrf.mxu0
  %v2216 = vadd.f32 0.0, %v2215
  %2217 = vmatmul.f32.gmra.mxu0 %v2178
  %v2218 = vpop.f32.mrf.mxu0
  %v2219 = vadd.f32 0.0, %v2218
  %2220 = vmatmul.f32.gmra.mxu0 %v2181
  %v2221 = vpop.f32.mrf.mxu0
  %v2222 = vadd.f32 0.0, %v2221
  %2223 = vmatmul.f32.gmra.mxu0 %v2184
  %v2224 = vpop.f32.mrf.mxu0
  %v2225 = vadd.f32 0.0, %v2224
  %2226 = vmatmul.f32.gmra.mxu0 %v2187
  %v2227 = vpop.f32.mrf.mxu0
  %v2228 = vadd.f32 0.0, %v2227
  %2229 = vmatmul.f32.gmra.mxu0 %v2190
  %v2230 = vpop.f32.mrf.mxu0
  %v2231 = vadd.f32 0.0, %v2230
  %2232 = vmatmul.f32.gmra.mxu0 %v2193
  %v2233 = vpop.f32.mrf.mxu0
  %v2234 = vadd.f32 0.0, %v2233
  %2235 = vdwg.mxu0
  %v2236 = vld [vmem:[%s8] sm:$0xff]
  %v2237 = vld [vmem:[%s8 + $0x8] sm:$0xff]
  %v2238 = vld [vmem:[%s8 + $0x10] sm:$0xff]
  %v2239 = vld [vmem:[%s8 + $0x18] sm:$0xff]
  %v2240 = vld [vmem:[%s8 + $0x20] sm:$0xff]
  %v2241 = vld [vmem:[%s8 + $0x28] sm:$0xff]
  %v2242 = vld [vmem:[%s8 + $0x30] sm:$0xff]
  %v2243 = vld [vmem:[%s8 + $0x38] sm:$0xff]
  %v2244 = vld [vmem:[%s8 + $0x40] sm:$0xff]
  %v2245 = vld [vmem:[%s8 + $0x48] sm:$0xff]
  %v2246 = vld [vmem:[%s8 + $0x50] sm:$0xff]
  %v2247 = vld [vmem:[%s8 + $0x58] sm:$0xff]
  %v2248 = vld [vmem:[%s8 + $0x60] sm:$0xff]
  %v2249 = vld [vmem:[%s8 + $0x68] sm:$0xff]
  %v2250 = vld [vmem:[%s8 + $0x70] sm:$0xff]
  %v2251 = vld [vmem:[%s8 + $0x78] sm:$0xff]
  %v2252 = vld [vmem:[%s8 + $0x80] sm:$0xff]
  %v2253 = vld [vmem:[%s8 + $0x88] sm:$0xff]
  %v2254 = vld [vmem:[%s8 + $0x90] sm:$0xff]
  %v2255 = vld [vmem:[%s8 + $0x98] sm:$0xff]
  %v2256 = vld [vmem:[%s8 + $0xa0] sm:$0xff]
  %v2257 = vld [vmem:[%s8 + $0xa8] sm:$0xff]
  %v2258 = vld [vmem:[%s8 + $0xb0] sm:$0xff]
  %v2259 = vld [vmem:[%s8 + $0xb8] sm:$0xff]
  %v2260 = vld [vmem:[%s8 + $0xc0] sm:$0xff]
  %v2261 = vld [vmem:[%s8 + $0xc8] sm:$0xff]
  %v2262 = vld [vmem:[%s8 + $0xd0] sm:$0xff]
  %v2263 = vld [vmem:[%s8 + $0xd8] sm:$0xff]
  %v2264 = vld [vmem:[%s8 + $0xe0] sm:$0xff]
  %v2265 = vld [vmem:[%s8 + $0xe8] sm:$0xff]
  %v2266 = vld [vmem:[%s8 + $0xf0] sm:$0xff]
  %v2267 = vld [vmem:[%s8 + $0xf8] sm:$0xff]
  %v2268 = vld [vmem:[%s8 + $0x100] sm:$0xff]
  %v2269 = vld [vmem:[%s8 + $0x108] sm:$0xff]
  %v2270 = vld [vmem:[%s8 + $0x110] sm:$0xff]
  %v2271 = vld [vmem:[%s8 + $0x118] sm:$0xff]
  %v2272 = vld [vmem:[%s8 + $0x120] sm:$0xff]
  %v2273 = vld [vmem:[%s8 + $0x128] sm:$0xff]
  %v2274 = vld [vmem:[%s8 + $0x130] sm:$0xff]
  %v2275 = vld [vmem:[%s8 + $0x138] sm:$0xff]
  %v2276 = vld [vmem:[%s8 + $0x140] sm:$0xff]
  %v2277 = vld [vmem:[%s8 + $0x148] sm:$0xff]
  %v2278 = vld [vmem:[%s8 + $0x150] sm:$0xff]
  %v2279 = vld [vmem:[%s8 + $0x158] sm:$0xff]
  %v2280 = vld [vmem:[%s8 + $0x160] sm:$0xff]
  %v2281 = vld [vmem:[%s8 + $0x168] sm:$0xff]
  %v2282 = vld [vmem:[%s8 + $0x170] sm:$0xff]
  %v2283 = vld [vmem:[%s8 + $0x178] sm:$0xff]
  %vm2284 = vcmask 392192
  %v2286 = vsel %vm2284, %v2236, 0
  %v2289 = vsel %vm2284, %v2237, 0
  %v2292 = vsel %vm2284, %v2238, 0
  %v2295 = vsel %vm2284, %v2239, 0
  %v2298 = vsel %vm2284, %v2240, 0
  %v2301 = vsel %vm2284, %v2241, 0
  %v2304 = vsel %vm2284, %v2242, 0
  %v2307 = vsel %vm2284, %v2243, 0
  %v2310 = vsel %vm2284, %v2244, 0
  %v2313 = vsel %vm2284, %v2245, 0
  %v2316 = vsel %vm2284, %v2246, 0
  %v2319 = vsel %vm2284, %v2247, 0
  %v2322 = vsel %vm2284, %v2248, 0
  %v2325 = vsel %vm2284, %v2249, 0
  %v2328 = vsel %vm2284, %v2250, 0
  %v2331 = vsel %vm2284, %v2251, 0
  %v2334 = vsel %vm2284, %v2252, 0
  %v2337 = vsel %vm2284, %v2253, 0
  %v2340 = vsel %vm2284, %v2254, 0
  %v2343 = vsel %vm2284, %v2255, 0
  %v2346 = vsel %vm2284, %v2256, 0
  %v2349 = vsel %vm2284, %v2257, 0
  %v2352 = vsel %vm2284, %v2258, 0
  %v2355 = vsel %vm2284, %v2259, 0
  %v2358 = vsel %vm2284, %v2260, 0
  %v2361 = vsel %vm2284, %v2261, 0
  %v2364 = vsel %vm2284, %v2262, 0
  %v2367 = vsel %vm2284, %v2263, 0
  %v2370 = vsel %vm2284, %v2264, 0
  %v2373 = vsel %vm2284, %v2265, 0
  %v2376 = vsel %vm2284, %v2266, 0
  %v2379 = vsel %vm2284, %v2267, 0
  %v2382 = vsel %vm2284, %v2268, 0
  %v2385 = vsel %vm2284, %v2269, 0
  %v2388 = vsel %vm2284, %v2270, 0
  %v2391 = vsel %vm2284, %v2271, 0
  %v2394 = vsel %vm2284, %v2272, 0
  %v2397 = vsel %vm2284, %v2273, 0
  %v2400 = vsel %vm2284, %v2274, 0
  %v2403 = vsel %vm2284, %v2275, 0
  %v2406 = vsel %vm2284, %v2276, 0
  %v2409 = vsel %vm2284, %v2277, 0
  %v2412 = vsel %vm2284, %v2278, 0
  %v2415 = vsel %vm2284, %v2279, 0
  %v2418 = vsel %vm2284, %v2280, 0
  %v2421 = vsel %vm2284, %v2281, 0
  %v2424 = vsel %vm2284, %v2282, 0
  %v2427 = vsel %vm2284, %v2283, 0
  %v2430 = vsel %vm2284, %v2213, 0
  %v2433 = vsel %vm2284, %v2216, 0
  %v2436 = vsel %vm2284, %v2219, 0
  %v2439 = vsel %vm2284, %v2222, 0
  %v2442 = vsel %vm2284, %v2225, 0
  %v2445 = vsel %vm2284, %v2228, 0
  %v2448 = vsel %vm2284, %v2231, 0
  %v2451 = vsel %vm2284, %v2234, 0
  %2453 = vmatpush.xpose.msra.mxu0 0.0
  %2454 = vmatpush.xpose.msra.mxu0 0.0
  %2455 = vmatpush.xpose.msra.mxu0 0.0
  %2456 = vmatpush.xpose.msra.mxu0 0.0
  %2457 = vmatpush.xpose.msra.mxu0 0.0
  %2458 = vmatpush.xpose.msra.mxu0 0.0
  %2459 = vmatpush.xpose.msra.mxu0 0.0
  %2460 = vmatpush.xpose.msra.mxu0 0.0
  %2461 = vmatpush.xpose.msra.mxu0 %v2451
  %2462 = vmatpush.xpose.msra.mxu0 %v2448
  %2463 = vmatpush.xpose.msra.mxu0 %v2445
  %2464 = vmatpush.xpose.msra.mxu0 %v2442
  %2465 = vmatpush.xpose.msra.mxu0 %v2439
  %2466 = vmatpush.xpose.msra.mxu0 %v2436
  %2467 = vmatpush.xpose.msra.mxu0 %v2433
  %2468 = vmatpush.xpose.msra.mxu0 %v2430
  %2469 = vmatmul.f32.gmra.mxu0 %v2286
  %v2470 = vpop.f32.mrf.mxu0
  %v2471 = vadd.f32 0.0, %v2470
  %2472 = vmatmul.f32.gmra.mxu0 %v2289
  %v2473 = vpop.f32.mrf.mxu0
  %v2474 = vadd.f32 0.0, %v2473
  %2475 = vmatmul.f32.gmra.mxu0 %v2292
  %v2476 = vpop.f32.mrf.mxu0
  %v2477 = vadd.f32 0.0, %v2476
  %2478 = vmatmul.f32.gmra.mxu0 %v2295
  %v2479 = vpop.f32.mrf.mxu0
  %v2480 = vadd.f32 0.0, %v2479
  %2481 = vmatmul.f32.gmra.mxu0 %v2298
  %v2482 = vpop.f32.mrf.mxu0
  %v2483 = vadd.f32 0.0, %v2482
  %2484 = vmatmul.f32.gmra.mxu0 %v2301
  %v2485 = vpop.f32.mrf.mxu0
  %v2486 = vadd.f32 0.0, %v2485
  %2487 = vmatmul.f32.gmra.mxu0 %v2304
  %v2488 = vpop.f32.mrf.mxu0
  %v2489 = vadd.f32 0.0, %v2488
  %2490 = vmatmul.f32.gmra.mxu0 %v2307
  %v2491 = vpop.f32.mrf.mxu0
  %v2492 = vadd.f32 0.0, %v2491
  %2493 = vmatmul.f32.gmra.mxu0 %v2310
  %v2494 = vpop.f32.mrf.mxu0
  %v2495 = vadd.f32 0.0, %v2494
  %2496 = vmatmul.f32.gmra.mxu0 %v2313
  %v2497 = vpop.f32.mrf.mxu0
  %v2498 = vadd.f32 0.0, %v2497
  %2499 = vmatmul.f32.gmra.mxu0 %v2316
  %v2500 = vpop.f32.mrf.mxu0
  %v2501 = vadd.f32 0.0, %v2500
  %2502 = vmatmul.f32.gmra.mxu0 %v2319
  %v2503 = vpop.f32.mrf.mxu0
  %v2504 = vadd.f32 0.0, %v2503
  %2505 = vmatmul.f32.gmra.mxu0 %v2322
  %v2506 = vpop.f32.mrf.mxu0
  %v2507 = vadd.f32 0.0, %v2506
  %2508 = vmatmul.f32.gmra.mxu0 %v2325
  %v2509 = vpop.f32.mrf.mxu0
  %v2510 = vadd.f32 0.0, %v2509
  %2511 = vmatmul.f32.gmra.mxu0 %v2328
  %v2512 = vpop.f32.mrf.mxu0
  %v2513 = vadd.f32 0.0, %v2512
  %2514 = vmatmul.f32.gmra.mxu0 %v2331
  %v2515 = vpop.f32.mrf.mxu0
  %v2516 = vadd.f32 0.0, %v2515
  %2517 = vmatmul.f32.gmra.mxu0 %v2334
  %v2518 = vpop.f32.mrf.mxu0
  %v2519 = vadd.f32 0.0, %v2518
  %2520 = vmatmul.f32.gmra.mxu0 %v2337
  %v2521 = vpop.f32.mrf.mxu0
  %v2522 = vadd.f32 0.0, %v2521
  %2523 = vmatmul.f32.gmra.mxu0 %v2340
  %v2524 = vpop.f32.mrf.mxu0
  %v2525 = vadd.f32 0.0, %v2524
  %2526 = vmatmul.f32.gmra.mxu0 %v2343
  %v2527 = vpop.f32.mrf.mxu0
  %v2528 = vadd.f32 0.0, %v2527
  %2529 = vmatmul.f32.gmra.mxu0 %v2346
  %v2530 = vpop.f32.mrf.mxu0
  %v2531 = vadd.f32 0.0, %v2530
  %2532 = vmatmul.f32.gmra.mxu0 %v2349
  %v2533 = vpop.f32.mrf.mxu0
  %v2534 = vadd.f32 0.0, %v2533
  %2535 = vmatmul.f32.gmra.mxu0 %v2352
  %v2536 = vpop.f32.mrf.mxu0
  %v2537 = vadd.f32 0.0, %v2536
  %2538 = vmatmul.f32.gmra.mxu0 %v2355
  %v2539 = vpop.f32.mrf.mxu0
  %v2540 = vadd.f32 0.0, %v2539
  %2541 = vmatmul.f32.gmra.mxu0 %v2358
  %v2542 = vpop.f32.mrf.mxu0
  %v2543 = vadd.f32 0.0, %v2542
  %2544 = vmatmul.f32.gmra.mxu0 %v2361
  %v2545 = vpop.f32.mrf.mxu0
  %v2546 = vadd.f32 0.0, %v2545
  %2547 = vmatmul.f32.gmra.mxu0 %v2364
  %v2548 = vpop.f32.mrf.mxu0
  %v2549 = vadd.f32 0.0, %v2548
  %2550 = vmatmul.f32.gmra.mxu0 %v2367
  %v2551 = vpop.f32.mrf.mxu0
  %v2552 = vadd.f32 0.0, %v2551
  %2553 = vmatmul.f32.gmra.mxu0 %v2370
  %v2554 = vpop.f32.mrf.mxu0
  %v2555 = vadd.f32 0.0, %v2554
  %2556 = vmatmul.f32.gmra.mxu0 %v2373
  %v2557 = vpop.f32.mrf.mxu0
  %v2558 = vadd.f32 0.0, %v2557
  %2559 = vmatmul.f32.gmra.mxu0 %v2376
  %v2560 = vpop.f32.mrf.mxu0
  %v2561 = vadd.f32 0.0, %v2560
  %2562 = vmatmul.f32.gmra.mxu0 %v2379
  %v2563 = vpop.f32.mrf.mxu0
  %v2564 = vadd.f32 0.0, %v2563
  %2565 = vmatmul.f32.gmra.mxu0 %v2382
  %v2566 = vpop.f32.mrf.mxu0
  %v2567 = vadd.f32 0.0, %v2566
  %2568 = vmatmul.f32.gmra.mxu0 %v2385
  %v2569 = vpop.f32.mrf.mxu0
  %v2570 = vadd.f32 0.0, %v2569
  %2571 = vmatmul.f32.gmra.mxu0 %v2388
  %v2572 = vpop.f32.mrf.mxu0
  %v2573 = vadd.f32 0.0, %v2572
  %2574 = vmatmul.f32.gmra.mxu0 %v2391
  %v2575 = vpop.f32.mrf.mxu0
  %v2576 = vadd.f32 0.0, %v2575
  %2577 = vmatmul.f32.gmra.mxu0 %v2394
  %v2578 = vpop.f32.mrf.mxu0
  %v2579 = vadd.f32 0.0, %v2578
  %2580 = vmatmul.f32.gmra.mxu0 %v2397
  %v2581 = vpop.f32.mrf.mxu0
  %v2582 = vadd.f32 0.0, %v2581
  %2583 = vmatmul.f32.gmra.mxu0 %v2400
  %v2584 = vpop.f32.mrf.mxu0
  %v2585 = vadd.f32 0.0, %v2584
  %2586 = vmatmul.f32.gmra.mxu0 %v2403
  %v2587 = vpop.f32.mrf.mxu0
  %v2588 = vadd.f32 0.0, %v2587
  %2589 = vmatmul.f32.gmra.mxu0 %v2406
  %v2590 = vpop.f32.mrf.mxu0
  %v2591 = vadd.f32 0.0, %v2590
  %2592 = vmatmul.f32.gmra.mxu0 %v2409
  %v2593 = vpop.f32.mrf.mxu0
  %v2594 = vadd.f32 0.0, %v2593
  %2595 = vmatmul.f32.gmra.mxu0 %v2412
  %v2596 = vpop.f32.mrf.mxu0
  %v2597 = vadd.f32 0.0, %v2596
  %2598 = vmatmul.f32.gmra.mxu0 %v2415
  %v2599 = vpop.f32.mrf.mxu0
  %v2600 = vadd.f32 0.0, %v2599
  %2601 = vmatmul.f32.gmra.mxu0 %v2418
  %v2602 = vpop.f32.mrf.mxu0
  %v2603 = vadd.f32 0.0, %v2602
  %2604 = vmatmul.f32.gmra.mxu0 %v2421
  %v2605 = vpop.f32.mrf.mxu0
  %v2606 = vadd.f32 0.0, %v2605
  %2607 = vmatmul.f32.gmra.mxu0 %v2424
  %v2608 = vpop.f32.mrf.mxu0
  %v2609 = vadd.f32 0.0, %v2608
  %2610 = vmatmul.f32.gmra.mxu0 %v2427
  %v2611 = vpop.f32.mrf.mxu0
  %v2612 = vadd.f32 0.0, %v2611
  %2613 = vdwg.mxu0
  %v2614 = vld [vmem:[%s9] sm:$0xff]
  %v2615 = vld [vmem:[%s9 + $0x8] sm:$0xff]
  %v2616 = vld [vmem:[%s9 + $0x10] sm:$0xff]
  %v2617 = vld [vmem:[%s9 + $0x18] sm:$0xff]
  %v2618 = vld [vmem:[%s9 + $0x20] sm:$0xff]
  %v2619 = vld [vmem:[%s9 + $0x28] sm:$0xff]
  %v2620 = vld [vmem:[%s9 + $0x30] sm:$0xff]
  %v2621 = vld [vmem:[%s9 + $0x38] sm:$0xff]
  %v2622 = vld [vmem:[%s9 + $0x40] sm:$0xff]
  %v2623 = vld [vmem:[%s9 + $0x48] sm:$0xff]
  %v2624 = vld [vmem:[%s9 + $0x50] sm:$0xff]
  %v2625 = vld [vmem:[%s9 + $0x58] sm:$0xff]
  %v2626 = vld [vmem:[%s9 + $0x60] sm:$0xff]
  %v2627 = vld [vmem:[%s9 + $0x68] sm:$0xff]
  %v2628 = vld [vmem:[%s9 + $0x70] sm:$0xff]
  %v2629 = vld [vmem:[%s9 + $0x78] sm:$0xff]
  %v2630 = vld [vmem:[%s9 + $0x80] sm:$0xff]
  %v2631 = vld [vmem:[%s9 + $0x88] sm:$0xff]
  %v2632 = vld [vmem:[%s9 + $0x90] sm:$0xff]
  %v2633 = vld [vmem:[%s9 + $0x98] sm:$0xff]
  %v2634 = vld [vmem:[%s9 + $0xa0] sm:$0xff]
  %v2635 = vld [vmem:[%s9 + $0xa8] sm:$0xff]
  %v2636 = vld [vmem:[%s9 + $0xb0] sm:$0xff]
  %v2637 = vld [vmem:[%s9 + $0xb8] sm:$0xff]
  %v2638 = vld [vmem:[%s9 + $0xc0] sm:$0xff]
  %v2639 = vld [vmem:[%s9 + $0xc8] sm:$0xff]
  %v2640 = vld [vmem:[%s9 + $0xd0] sm:$0xff]
  %v2641 = vld [vmem:[%s9 + $0xd8] sm:$0xff]
  %v2642 = vld [vmem:[%s9 + $0xe0] sm:$0xff]
  %v2643 = vld [vmem:[%s9 + $0xe8] sm:$0xff]
  %v2644 = vld [vmem:[%s9 + $0xf0] sm:$0xff]
  %v2645 = vld [vmem:[%s9 + $0xf8] sm:$0xff]
  %v2646 = vld [vmem:[%s9 + $0x100] sm:$0xff]
  %v2647 = vld [vmem:[%s9 + $0x108] sm:$0xff]
  %v2648 = vld [vmem:[%s9 + $0x110] sm:$0xff]
  %v2649 = vld [vmem:[%s9 + $0x118] sm:$0xff]
  %v2650 = vld [vmem:[%s9 + $0x120] sm:$0xff]
  %v2651 = vld [vmem:[%s9 + $0x128] sm:$0xff]
  %v2652 = vld [vmem:[%s9 + $0x130] sm:$0xff]
  %v2653 = vld [vmem:[%s9 + $0x138] sm:$0xff]
  %v2654 = vld [vmem:[%s9 + $0x140] sm:$0xff]
  %v2655 = vld [vmem:[%s9 + $0x148] sm:$0xff]
  %v2656 = vld [vmem:[%s9 + $0x150] sm:$0xff]
  %v2657 = vld [vmem:[%s9 + $0x158] sm:$0xff]
  %v2658 = vld [vmem:[%s9 + $0x160] sm:$0xff]
  %v2659 = vld [vmem:[%s9 + $0x168] sm:$0xff]
  %v2660 = vld [vmem:[%s9 + $0x170] sm:$0xff]
  %v2661 = vld [vmem:[%s9 + $0x178] sm:$0xff]
  %v2662 = vmul.f32 %v2213, %v2614
  %v2663 = vmul.f32 %v2216, %v2615
  %v2664 = vmul.f32 %v2219, %v2616
  %v2665 = vmul.f32 %v2222, %v2617
  %v2666 = vmul.f32 %v2225, %v2618
  %v2667 = vmul.f32 %v2228, %v2619
  %v2668 = vmul.f32 %v2231, %v2620
  %v2669 = vmul.f32 %v2234, %v2621
  %v2670 = vmul.f32 %v2213, %v2622
  %v2671 = vmul.f32 %v2216, %v2623
  %v2672 = vmul.f32 %v2219, %v2624
  %v2673 = vmul.f32 %v2222, %v2625
  %v2674 = vmul.f32 %v2225, %v2626
  %v2675 = vmul.f32 %v2228, %v2627
  %v2676 = vmul.f32 %v2231, %v2628
  %v2677 = vmul.f32 %v2234, %v2629
  %v2678 = vmul.f32 %v2213, %v2630
  %v2679 = vmul.f32 %v2216, %v2631
  %v2680 = vmul.f32 %v2219, %v2632
  %v2681 = vmul.f32 %v2222, %v2633
  %v2682 = vmul.f32 %v2225, %v2634
  %v2683 = vmul.f32 %v2228, %v2635
  %v2684 = vmul.f32 %v2231, %v2636
  %v2685 = vmul.f32 %v2234, %v2637
  %v2686 = vmul.f32 %v2213, %v2638
  %v2687 = vmul.f32 %v2216, %v2639
  %v2688 = vmul.f32 %v2219, %v2640
  %v2689 = vmul.f32 %v2222, %v2641
  %v2690 = vmul.f32 %v2225, %v2642
  %v2691 = vmul.f32 %v2228, %v2643
  %v2692 = vmul.f32 %v2231, %v2644
  %v2693 = vmul.f32 %v2234, %v2645
  %v2694 = vmul.f32 %v2213, %v2646
  %v2695 = vmul.f32 %v2216, %v2647
  %v2696 = vmul.f32 %v2219, %v2648
  %v2697 = vmul.f32 %v2222, %v2649
  %v2698 = vmul.f32 %v2225, %v2650
  %v2699 = vmul.f32 %v2228, %v2651
  %v2700 = vmul.f32 %v2231, %v2652
  %v2701 = vmul.f32 %v2234, %v2653
  %v2702 = vmul.f32 %v2213, %v2654
  %v2703 = vmul.f32 %v2216, %v2655
  %v2704 = vmul.f32 %v2219, %v2656
  %v2705 = vmul.f32 %v2222, %v2657
  %v2706 = vmul.f32 %v2225, %v2658
  %v2707 = vmul.f32 %v2228, %v2659
  %v2708 = vmul.f32 %v2231, %v2660
  %v2709 = vmul.f32 %v2234, %v2661
  %v2710 = vsel %vm2284, %v2662, 0.0
  %2711 = vadd.xlane.f32.xlu0 %v2710
  %v2712 = vpop.xlane.xlu0 %2711
  %v2713 = vsel %vm2284, %v2663, 0.0
  %2714 = vadd.xlane.f32.xlu0 %v2713
  %v2715 = vpop.xlane.xlu0 %2714
  %v2716 = vsel %vm2284, %v2664, 0.0
  %2717 = vadd.xlane.f32.xlu0 %v2716
  %v2718 = vpop.xlane.xlu0 %2717
  %v2719 = vsel %vm2284, %v2665, 0.0
  %2720 = vadd.xlane.f32.xlu0 %v2719
  %v2721 = vpop.xlane.xlu0 %2720
  %v2722 = vsel %vm2284, %v2666, 0.0
  %2723 = vadd.xlane.f32.xlu0 %v2722
  %v2724 = vpop.xlane.xlu0 %2723
  %v2725 = vsel %vm2284, %v2667, 0.0
  %2726 = vadd.xlane.f32.xlu0 %v2725
  %v2727 = vpop.xlane.xlu0 %2726
  %v2728 = vsel %vm2284, %v2668, 0.0
  %2729 = vadd.xlane.f32.xlu0 %v2728
  %v2730 = vpop.xlane.xlu0 %2729
  %v2731 = vsel %vm2284, %v2669, 0.0
  %2732 = vadd.xlane.f32.xlu0 %v2731
  %v2733 = vpop.xlane.xlu0 %2732
  %v2734 = vsel %vm2284, %v2670, 0.0
  %2735 = vadd.xlane.f32.xlu0 %v2734
  %v2736 = vpop.xlane.xlu0 %2735
  %v2737 = vsel %vm2284, %v2671, 0.0
  %2738 = vadd.xlane.f32.xlu0 %v2737
  %v2739 = vpop.xlane.xlu0 %2738
  %v2740 = vsel %vm2284, %v2672, 0.0
  %2741 = vadd.xlane.f32.xlu0 %v2740
  %v2742 = vpop.xlane.xlu0 %2741
  %v2743 = vsel %vm2284, %v2673, 0.0
  %2744 = vadd.xlane.f32.xlu0 %v2743
  %v2745 = vpop.xlane.xlu0 %2744
  %v2746 = vsel %vm2284, %v2674, 0.0
  %2747 = vadd.xlane.f32.xlu0 %v2746
  %v2748 = vpop.xlane.xlu0 %2747
  %v2749 = vsel %vm2284, %v2675, 0.0
  %2750 = vadd.xlane.f32.xlu0 %v2749
  %v2751 = vpop.xlane.xlu0 %2750
  %v2752 = vsel %vm2284, %v2676, 0.0
  %2753 = vadd.xlane.f32.xlu0 %v2752
  %v2754 = vpop.xlane.xlu0 %2753
  %v2755 = vsel %vm2284, %v2677, 0.0
  %2756 = vadd.xlane.f32.xlu0 %v2755
  %v2757 = vpop.xlane.xlu0 %2756
  %v2758 = vsel %vm2284, %v2678, 0.0
  %2759 = vadd.xlane.f32.xlu0 %v2758
  %v2760 = vpop.xlane.xlu0 %2759
  %v2761 = vsel %vm2284, %v2679, 0.0
  %2762 = vadd.xlane.f32.xlu0 %v2761
  %v2763 = vpop.xlane.xlu0 %2762
  %v2764 = vsel %vm2284, %v2680, 0.0
  %2765 = vadd.xlane.f32.xlu0 %v2764
  %v2766 = vpop.xlane.xlu0 %2765
  %v2767 = vsel %vm2284, %v2681, 0.0
  %2768 = vadd.xlane.f32.xlu0 %v2767
  %v2769 = vpop.xlane.xlu0 %2768
  %v2770 = vsel %vm2284, %v2682, 0.0
  %2771 = vadd.xlane.f32.xlu0 %v2770
  %v2772 = vpop.xlane.xlu0 %2771
  %v2773 = vsel %vm2284, %v2683, 0.0
  %2774 = vadd.xlane.f32.xlu0 %v2773
  %v2775 = vpop.xlane.xlu0 %2774
  %v2776 = vsel %vm2284, %v2684, 0.0
  %2777 = vadd.xlane.f32.xlu0 %v2776
  %v2778 = vpop.xlane.xlu0 %2777
  %v2779 = vsel %vm2284, %v2685, 0.0
  %2780 = vadd.xlane.f32.xlu0 %v2779
  %v2781 = vpop.xlane.xlu0 %2780
  %v2782 = vsel %vm2284, %v2686, 0.0
  %2783 = vadd.xlane.f32.xlu0 %v2782
  %v2784 = vpop.xlane.xlu0 %2783
  %v2785 = vsel %vm2284, %v2687, 0.0
  %2786 = vadd.xlane.f32.xlu0 %v2785
  %v2787 = vpop.xlane.xlu0 %2786
  %v2788 = vsel %vm2284, %v2688, 0.0
  %2789 = vadd.xlane.f32.xlu0 %v2788
  %v2790 = vpop.xlane.xlu0 %2789
  %v2791 = vsel %vm2284, %v2689, 0.0
  %2792 = vadd.xlane.f32.xlu0 %v2791
  %v2793 = vpop.xlane.xlu0 %2792
  %v2794 = vsel %vm2284, %v2690, 0.0
  %2795 = vadd.xlane.f32.xlu0 %v2794
  %v2796 = vpop.xlane.xlu0 %2795
  %v2797 = vsel %vm2284, %v2691, 0.0
  %2798 = vadd.xlane.f32.xlu0 %v2797
  %v2799 = vpop.xlane.xlu0 %2798
  %v2800 = vsel %vm2284, %v2692, 0.0
  %2801 = vadd.xlane.f32.xlu0 %v2800
  %v2802 = vpop.xlane.xlu0 %2801
  %v2803 = vsel %vm2284, %v2693, 0.0
  %2804 = vadd.xlane.f32.xlu0 %v2803
  %v2805 = vpop.xlane.xlu0 %2804
  %v2806 = vsel %vm2284, %v2694, 0.0
  %2807 = vadd.xlane.f32.xlu0 %v2806
  %v2808 = vpop.xlane.xlu0 %2807
  %v2809 = vsel %vm2284, %v2695, 0.0
  %2810 = vadd.xlane.f32.xlu0 %v2809
  %v2811 = vpop.xlane.xlu0 %2810
  %v2812 = vsel %vm2284, %v2696, 0.0
  %2813 = vadd.xlane.f32.xlu0 %v2812
  %v2814 = vpop.xlane.xlu0 %2813
  %v2815 = vsel %vm2284, %v2697, 0.0
  %2816 = vadd.xlane.f32.xlu0 %v2815
  %v2817 = vpop.xlane.xlu0 %2816
  %v2818 = vsel %vm2284, %v2698, 0.0
  %2819 = vadd.xlane.f32.xlu0 %v2818
  %v2820 = vpop.xlane.xlu0 %2819
  %v2821 = vsel %vm2284, %v2699, 0.0
  %2822 = vadd.xlane.f32.xlu0 %v2821
  %v2823 = vpop.xlane.xlu0 %2822
  %v2824 = vsel %vm2284, %v2700, 0.0
  %2825 = vadd.xlane.f32.xlu0 %v2824
  %v2826 = vpop.xlane.xlu0 %2825
  %v2827 = vsel %vm2284, %v2701, 0.0
  %2828 = vadd.xlane.f32.xlu0 %v2827
  %v2829 = vpop.xlane.xlu0 %2828
  %v2830 = vsel %vm2284, %v2702, 0.0
  %2831 = vadd.xlane.f32.xlu0 %v2830
  %v2832 = vpop.xlane.xlu0 %2831
  %v2833 = vsel %vm2284, %v2703, 0.0
  %2834 = vadd.xlane.f32.xlu0 %v2833
  %v2835 = vpop.xlane.xlu0 %2834
  %v2836 = vsel %vm2284, %v2704, 0.0
  %2837 = vadd.xlane.f32.xlu0 %v2836
  %v2838 = vpop.xlane.xlu0 %2837
  %v2839 = vsel %vm2284, %v2705, 0.0
  %2840 = vadd.xlane.f32.xlu0 %v2839
  %v2841 = vpop.xlane.xlu0 %2840
  %v2842 = vsel %vm2284, %v2706, 0.0
  %2843 = vadd.xlane.f32.xlu0 %v2842
  %v2844 = vpop.xlane.xlu0 %2843
  %v2845 = vsel %vm2284, %v2707, 0.0
  %2846 = vadd.xlane.f32.xlu0 %v2845
  %v2847 = vpop.xlane.xlu0 %2846
  %v2848 = vsel %vm2284, %v2708, 0.0
  %2849 = vadd.xlane.f32.xlu0 %v2848
  %v2850 = vpop.xlane.xlu0 %2849
  %v2851 = vsel %vm2284, %v2709, 0.0
  %2852 = vadd.xlane.f32.xlu0 %v2851
  %v2853 = vpop.xlane.xlu0 %2852
  %v2854 = vadd.f32 %v2712, %v2471
  %v2855 = vadd.f32 %v2715, %v2474
  %v2856 = vadd.f32 %v2718, %v2477
  %v2857 = vadd.f32 %v2721, %v2480
  %v2858 = vadd.f32 %v2724, %v2483
  %v2859 = vadd.f32 %v2727, %v2486
  %v2860 = vadd.f32 %v2730, %v2489
  %v2861 = vadd.f32 %v2733, %v2492
  %v2862 = vadd.f32 %v2736, %v2495
  %v2863 = vadd.f32 %v2739, %v2498
  %v2864 = vadd.f32 %v2742, %v2501
  %v2865 = vadd.f32 %v2745, %v2504
  %v2866 = vadd.f32 %v2748, %v2507
  %v2867 = vadd.f32 %v2751, %v2510
  %v2868 = vadd.f32 %v2754, %v2513
  %v2869 = vadd.f32 %v2757, %v2516
  %v2870 = vadd.f32 %v2760, %v2519
  %v2871 = vadd.f32 %v2763, %v2522
  %v2872 = vadd.f32 %v2766, %v2525
  %v2873 = vadd.f32 %v2769, %v2528
  %v2874 = vadd.f32 %v2772, %v2531
  %v2875 = vadd.f32 %v2775, %v2534
  %v2876 = vadd.f32 %v2778, %v2537
  %v2877 = vadd.f32 %v2781, %v2540
  %v2878 = vadd.f32 %v2784, %v2543
  %v2879 = vadd.f32 %v2787, %v2546
  %v2880 = vadd.f32 %v2790, %v2549
  %v2881 = vadd.f32 %v2793, %v2552
  %v2882 = vadd.f32 %v2796, %v2555
  %v2883 = vadd.f32 %v2799, %v2558
  %v2884 = vadd.f32 %v2802, %v2561
  %v2885 = vadd.f32 %v2805, %v2564
  %v2886 = vadd.f32 %v2808, %v2567
  %v2887 = vadd.f32 %v2811, %v2570
  %v2888 = vadd.f32 %v2814, %v2573
  %v2889 = vadd.f32 %v2817, %v2576
  %v2890 = vadd.f32 %v2820, %v2579
  %v2891 = vadd.f32 %v2823, %v2582
  %v2892 = vadd.f32 %v2826, %v2585
  %v2893 = vadd.f32 %v2829, %v2588
  %v2894 = vadd.f32 %v2832, %v2591
  %v2895 = vadd.f32 %v2835, %v2594
  %v2896 = vadd.f32 %v2838, %v2597
  %v2897 = vadd.f32 %v2841, %v2600
  %v2898 = vadd.f32 %v2844, %v2603
  %v2899 = vadd.f32 %v2847, %v2606
  %v2900 = vadd.f32 %v2850, %v2609
  %v2901 = vadd.f32 %v2853, %v2612
  %vm2902 = vcmp.gt.f32.partialorder %v2854, 0.0
  %vm2903 = vcmp.gt.f32.partialorder %v2855, 0.0
  %vm2904 = vcmp.gt.f32.partialorder %v2856, 0.0
  %vm2905 = vcmp.gt.f32.partialorder %v2857, 0.0
  %vm2906 = vcmp.gt.f32.partialorder %v2858, 0.0
  %vm2907 = vcmp.gt.f32.partialorder %v2859, 0.0
  %vm2908 = vcmp.gt.f32.partialorder %v2860, 0.0
  %vm2909 = vcmp.gt.f32.partialorder %v2861, 0.0
  %vm2910 = vcmp.gt.f32.partialorder %v2862, 0.0
  %vm2911 = vcmp.gt.f32.partialorder %v2863, 0.0
  %vm2912 = vcmp.gt.f32.partialorder %v2864, 0.0
  %vm2913 = vcmp.gt.f32.partialorder %v2865, 0.0
  %vm2914 = vcmp.gt.f32.partialorder %v2866, 0.0
  %vm2915 = vcmp.gt.f32.partialorder %v2867, 0.0
  %vm2916 = vcmp.gt.f32.partialorder %v2868, 0.0
  %vm2917 = vcmp.gt.f32.partialorder %v2869, 0.0
  %vm2918 = vcmp.gt.f32.partialorder %v2870, 0.0
  %vm2919 = vcmp.gt.f32.partialorder %v2871, 0.0
  %vm2920 = vcmp.gt.f32.partialorder %v2872, 0.0
  %vm2921 = vcmp.gt.f32.partialorder %v2873, 0.0
  %vm2922 = vcmp.gt.f32.partialorder %v2874, 0.0
  %vm2923 = vcmp.gt.f32.partialorder %v2875, 0.0
  %vm2924 = vcmp.gt.f32.partialorder %v2876, 0.0
  %vm2925 = vcmp.gt.f32.partialorder %v2877, 0.0
  %vm2926 = vcmp.gt.f32.partialorder %v2878, 0.0
  %vm2927 = vcmp.gt.f32.partialorder %v2879, 0.0
  %vm2928 = vcmp.gt.f32.partialorder %v2880, 0.0
  %vm2929 = vcmp.gt.f32.partialorder %v2881, 0.0
  %vm2930 = vcmp.gt.f32.partialorder %v2882, 0.0
  %vm2931 = vcmp.gt.f32.partialorder %v2883, 0.0
  %vm2932 = vcmp.gt.f32.partialorder %v2884, 0.0
  %vm2933 = vcmp.gt.f32.partialorder %v2885, 0.0
  %vm2934 = vcmp.gt.f32.partialorder %v2886, 0.0
  %vm2935 = vcmp.gt.f32.partialorder %v2887, 0.0
  %vm2936 = vcmp.gt.f32.partialorder %v2888, 0.0
  %vm2937 = vcmp.gt.f32.partialorder %v2889, 0.0
  %vm2938 = vcmp.gt.f32.partialorder %v2890, 0.0
  %vm2939 = vcmp.gt.f32.partialorder %v2891, 0.0
  %vm2940 = vcmp.gt.f32.partialorder %v2892, 0.0
  %vm2941 = vcmp.gt.f32.partialorder %v2893, 0.0
  %vm2942 = vcmp.gt.f32.partialorder %v2894, 0.0
  %vm2943 = vcmp.gt.f32.partialorder %v2895, 0.0
  %vm2944 = vcmp.gt.f32.partialorder %v2896, 0.0
  %vm2945 = vcmp.gt.f32.partialorder %v2897, 0.0
  %vm2946 = vcmp.gt.f32.partialorder %v2898, 0.0
  %vm2947 = vcmp.gt.f32.partialorder %v2899, 0.0
  %vm2948 = vcmp.gt.f32.partialorder %v2900, 0.0
  %vm2949 = vcmp.gt.f32.partialorder %v2901, 0.0
  %v2950 = vmul.f32 %v2854, 0.2
  %v2951 = vmul.f32 %v2855, 0.2
  %v2952 = vmul.f32 %v2856, 0.2
  %v2953 = vmul.f32 %v2857, 0.2
  %v2954 = vmul.f32 %v2858, 0.2
  %v2955 = vmul.f32 %v2859, 0.2
  %v2956 = vmul.f32 %v2860, 0.2
  %v2957 = vmul.f32 %v2861, 0.2
  %v2958 = vmul.f32 %v2862, 0.2
  %v2959 = vmul.f32 %v2863, 0.2
  %v2960 = vmul.f32 %v2864, 0.2
  %v2961 = vmul.f32 %v2865, 0.2
  %v2962 = vmul.f32 %v2866, 0.2
  %v2963 = vmul.f32 %v2867, 0.2
  %v2964 = vmul.f32 %v2868, 0.2
  %v2965 = vmul.f32 %v2869, 0.2
  %v2966 = vmul.f32 %v2870, 0.2
  %v2967 = vmul.f32 %v2871, 0.2
  %v2968 = vmul.f32 %v2872, 0.2
  %v2969 = vmul.f32 %v2873, 0.2
  %v2970 = vmul.f32 %v2874, 0.2
  %v2971 = vmul.f32 %v2875, 0.2
  %v2972 = vmul.f32 %v2876, 0.2
  %v2973 = vmul.f32 %v2877, 0.2
  %v2974 = vmul.f32 %v2878, 0.2
  %v2975 = vmul.f32 %v2879, 0.2
  %v2976 = vmul.f32 %v2880, 0.2
  %v2977 = vmul.f32 %v2881, 0.2
  %v2978 = vmul.f32 %v2882, 0.2
  %v2979 = vmul.f32 %v2883, 0.2
  %v2980 = vmul.f32 %v2884, 0.2
  %v2981 = vmul.f32 %v2885, 0.2
  %v2982 = vmul.f32 %v2886, 0.2
  %v2983 = vmul.f32 %v2887, 0.2
  %v2984 = vmul.f32 %v2888, 0.2
  %v2985 = vmul.f32 %v2889, 0.2
  %v2986 = vmul.f32 %v2890, 0.2
  %v2987 = vmul.f32 %v2891, 0.2
  %v2988 = vmul.f32 %v2892, 0.2
  %v2989 = vmul.f32 %v2893, 0.2
  %v2990 = vmul.f32 %v2894, 0.2
  %v2991 = vmul.f32 %v2895, 0.2
  %v2992 = vmul.f32 %v2896, 0.2
  %v2993 = vmul.f32 %v2897, 0.2
  %v2994 = vmul.f32 %v2898, 0.2
  %v2995 = vmul.f32 %v2899, 0.2
  %v2996 = vmul.f32 %v2900, 0.2
  %v2997 = vmul.f32 %v2901, 0.2
  %v2998 = vsel %vm2902, %v2854, %v2950
  %v2999 = vsel %vm2903, %v2855, %v2951
  %v3000 = vsel %vm2904, %v2856, %v2952
  %v3001 = vsel %vm2905, %v2857, %v2953
  %v3002 = vsel %vm2906, %v2858, %v2954
  %v3003 = vsel %vm2907, %v2859, %v2955
  %v3004 = vsel %vm2908, %v2860, %v2956
  %v3005 = vsel %vm2909, %v2861, %v2957
  %v3006 = vsel %vm2910, %v2862, %v2958
  %v3007 = vsel %vm2911, %v2863, %v2959
  %v3008 = vsel %vm2912, %v2864, %v2960
  %v3009 = vsel %vm2913, %v2865, %v2961
  %v3010 = vsel %vm2914, %v2866, %v2962
  %v3011 = vsel %vm2915, %v2867, %v2963
  %v3012 = vsel %vm2916, %v2868, %v2964
  %v3013 = vsel %vm2917, %v2869, %v2965
  %v3014 = vsel %vm2918, %v2870, %v2966
  %v3015 = vsel %vm2919, %v2871, %v2967
  %v3016 = vsel %vm2920, %v2872, %v2968
  %v3017 = vsel %vm2921, %v2873, %v2969
  %v3018 = vsel %vm2922, %v2874, %v2970
  %v3019 = vsel %vm2923, %v2875, %v2971
  %v3020 = vsel %vm2924, %v2876, %v2972
  %v3021 = vsel %vm2925, %v2877, %v2973
  %v3022 = vsel %vm2926, %v2878, %v2974
  %v3023 = vsel %vm2927, %v2879, %v2975
  %v3024 = vsel %vm2928, %v2880, %v2976
  %v3025 = vsel %vm2929, %v2881, %v2977
  %v3026 = vsel %vm2930, %v2882, %v2978
  %v3027 = vsel %vm2931, %v2883, %v2979
  %v3028 = vsel %vm2932, %v2884, %v2980
  %v3029 = vsel %vm2933, %v2885, %v2981
  %v3030 = vsel %vm2934, %v2886, %v2982
  %v3031 = vsel %vm2935, %v2887, %v2983
  %v3032 = vsel %vm2936, %v2888, %v2984
  %v3033 = vsel %vm2937, %v2889, %v2985
  %v3034 = vsel %vm2938, %v2890, %v2986
  %v3035 = vsel %vm2939, %v2891, %v2987
  %v3036 = vsel %vm2940, %v2892, %v2988
  %v3037 = vsel %vm2941, %v2893, %v2989
  %v3038 = vsel %vm2942, %v2894, %v2990
  %v3039 = vsel %vm2943, %v2895, %v2991
  %v3040 = vsel %vm2944, %v2896, %v2992
  %v3041 = vsel %vm2945, %v2897, %v2993
  %v3042 = vsel %vm2946, %v2898, %v2994
  %v3043 = vsel %vm2947, %v2899, %v2995
  %v3044 = vsel %vm2948, %v2900, %v2996
  %v3045 = vsel %vm2949, %v2901, %v2997
  %v3046 = vadd.f32 %v2998, %v73
  %v3047 = vadd.f32 %v2999, %v74
  %v3048 = vadd.f32 %v3000, %v75
  %v3049 = vadd.f32 %v3001, %v76
  %v3050 = vadd.f32 %v3002, %v77
  %v3051 = vadd.f32 %v3003, %v78
  %v3052 = vadd.f32 %v3004, %v79
  %v3053 = vadd.f32 %v3005, %v80
  %v3054 = vadd.f32 %v3006, %v73
  %v3055 = vadd.f32 %v3007, %v74
  %v3056 = vadd.f32 %v3008, %v75
  %v3057 = vadd.f32 %v3009, %v76
  %v3058 = vadd.f32 %v3010, %v77
  %v3059 = vadd.f32 %v3011, %v78
  %v3060 = vadd.f32 %v3012, %v79
  %v3061 = vadd.f32 %v3013, %v80
  %v3062 = vadd.f32 %v3014, %v73
  %v3063 = vadd.f32 %v3015, %v74
  %v3064 = vadd.f32 %v3016, %v75
  %v3065 = vadd.f32 %v3017, %v76
  %v3066 = vadd.f32 %v3018, %v77
  %v3067 = vadd.f32 %v3019, %v78
  %v3068 = vadd.f32 %v3020, %v79
  %v3069 = vadd.f32 %v3021, %v80
  %v3070 = vadd.f32 %v3022, %v73
  %v3071 = vadd.f32 %v3023, %v74
  %v3072 = vadd.f32 %v3024, %v75
  %v3073 = vadd.f32 %v3025, %v76
  %v3074 = vadd.f32 %v3026, %v77
  %v3075 = vadd.f32 %v3027, %v78
  %v3076 = vadd.f32 %v3028, %v79
  %v3077 = vadd.f32 %v3029, %v80
  %v3078 = vadd.f32 %v3030, %v73
  %v3079 = vadd.f32 %v3031, %v74
  %v3080 = vadd.f32 %v3032, %v75
  %v3081 = vadd.f32 %v3033, %v76
  %v3082 = vadd.f32 %v3034, %v77
  %v3083 = vadd.f32 %v3035, %v78
  %v3084 = vadd.f32 %v3036, %v79
  %v3085 = vadd.f32 %v3037, %v80
  %v3086 = vadd.f32 %v3038, %v73
  %v3087 = vadd.f32 %v3039, %v74
  %v3088 = vadd.f32 %v3040, %v75
  %v3089 = vadd.f32 %v3041, %v76
  %v3090 = vadd.f32 %v3042, %v77
  %v3091 = vadd.f32 %v3043, %v78
  %v3092 = vadd.f32 %v3044, %v79
  %v3093 = vadd.f32 %v3045, %v80
  %v3094 = vsel %vm1150, %v3046, -inf
  %3095 = vmax.xlane.f32.xlu0 %v3094
  %v3096 = vpop.xlane.xlu0 %3095
  %v3097 = vsel %vm1150, %v3047, -inf
  %3098 = vmax.xlane.f32.xlu0 %v3097
  %v3099 = vpop.xlane.xlu0 %3098
  %v3100 = vsel %vm1150, %v3048, -inf
  %3101 = vmax.xlane.f32.xlu0 %v3100
  %v3102 = vpop.xlane.xlu0 %3101
  %v3103 = vsel %vm1150, %v3049, -inf
  %3104 = vmax.xlane.f32.xlu0 %v3103
  %v3105 = vpop.xlane.xlu0 %3104
  %v3106 = vsel %vm1150, %v3050, -inf
  %3107 = vmax.xlane.f32.xlu0 %v3106
  %v3108 = vpop.xlane.xlu0 %3107
  %v3109 = vsel %vm1150, %v3051, -inf
  %3110 = vmax.xlane.f32.xlu0 %v3109
  %v3111 = vpop.xlane.xlu0 %3110
  %v3112 = vsel %vm1150, %v3052, -inf
  %3113 = vmax.xlane.f32.xlu0 %v3112
  %v3114 = vpop.xlane.xlu0 %3113
  %v3115 = vsel %vm1150, %v3053, -inf
  %3116 = vmax.xlane.f32.xlu0 %v3115
  %v3117 = vpop.xlane.xlu0 %3116
  %v3118 = vsel %vm1150, %v3054, -inf
  %3119 = vmax.xlane.f32.xlu0 %v3118
  %v3120 = vpop.xlane.xlu0 %3119
  %v3121 = vsel %vm1150, %v3055, -inf
  %3122 = vmax.xlane.f32.xlu0 %v3121
  %v3123 = vpop.xlane.xlu0 %3122
  %v3124 = vsel %vm1150, %v3056, -inf
  %3125 = vmax.xlane.f32.xlu0 %v3124
  %v3126 = vpop.xlane.xlu0 %3125
  %v3127 = vsel %vm1150, %v3057, -inf
  %3128 = vmax.xlane.f32.xlu0 %v3127
  %v3129 = vpop.xlane.xlu0 %3128
  %v3130 = vsel %vm1150, %v3058, -inf
  %3131 = vmax.xlane.f32.xlu0 %v3130
  %v3132 = vpop.xlane.xlu0 %3131
  %v3133 = vsel %vm1150, %v3059, -inf
  %3134 = vmax.xlane.f32.xlu0 %v3133
  %v3135 = vpop.xlane.xlu0 %3134
  %v3136 = vsel %vm1150, %v3060, -inf
  %3137 = vmax.xlane.f32.xlu0 %v3136
  %v3138 = vpop.xlane.xlu0 %3137
  %v3139 = vsel %vm1150, %v3061, -inf
  %3140 = vmax.xlane.f32.xlu0 %v3139
  %v3141 = vpop.xlane.xlu0 %3140
  %v3142 = vsel %vm1150, %v3062, -inf
  %3143 = vmax.xlane.f32.xlu0 %v3142
  %v3144 = vpop.xlane.xlu0 %3143
  %v3145 = vsel %vm1150, %v3063, -inf
  %3146 = vmax.xlane.f32.xlu0 %v3145
  %v3147 = vpop.xlane.xlu0 %3146
  %v3148 = vsel %vm1150, %v3064, -inf
  %3149 = vmax.xlane.f32.xlu0 %v3148
  %v3150 = vpop.xlane.xlu0 %3149
  %v3151 = vsel %vm1150, %v3065, -inf
  %3152 = vmax.xlane.f32.xlu0 %v3151
  %v3153 = vpop.xlane.xlu0 %3152
  %v3154 = vsel %vm1150, %v3066, -inf
  %3155 = vmax.xlane.f32.xlu0 %v3154
  %v3156 = vpop.xlane.xlu0 %3155
  %v3157 = vsel %vm1150, %v3067, -inf
  %3158 = vmax.xlane.f32.xlu0 %v3157
  %v3159 = vpop.xlane.xlu0 %3158
  %v3160 = vsel %vm1150, %v3068, -inf
  %3161 = vmax.xlane.f32.xlu0 %v3160
  %v3162 = vpop.xlane.xlu0 %3161
  %v3163 = vsel %vm1150, %v3069, -inf
  %3164 = vmax.xlane.f32.xlu0 %v3163
  %v3165 = vpop.xlane.xlu0 %3164
  %v3166 = vsel %vm1150, %v3070, -inf
  %3167 = vmax.xlane.f32.xlu0 %v3166
  %v3168 = vpop.xlane.xlu0 %3167
  %v3169 = vsel %vm1150, %v3071, -inf
  %3170 = vmax.xlane.f32.xlu0 %v3169
  %v3171 = vpop.xlane.xlu0 %3170
  %v3172 = vsel %vm1150, %v3072, -inf
  %3173 = vmax.xlane.f32.xlu0 %v3172
  %v3174 = vpop.xlane.xlu0 %3173
  %v3175 = vsel %vm1150, %v3073, -inf
  %3176 = vmax.xlane.f32.xlu0 %v3175
  %v3177 = vpop.xlane.xlu0 %3176
  %v3178 = vsel %vm1150, %v3074, -inf
  %3179 = vmax.xlane.f32.xlu0 %v3178
  %v3180 = vpop.xlane.xlu0 %3179
  %v3181 = vsel %vm1150, %v3075, -inf
  %3182 = vmax.xlane.f32.xlu0 %v3181
  %v3183 = vpop.xlane.xlu0 %3182
  %v3184 = vsel %vm1150, %v3076, -inf
  %3185 = vmax.xlane.f32.xlu0 %v3184
  %v3186 = vpop.xlane.xlu0 %3185
  %v3187 = vsel %vm1150, %v3077, -inf
  %3188 = vmax.xlane.f32.xlu0 %v3187
  %v3189 = vpop.xlane.xlu0 %3188
  %v3190 = vsel %vm1150, %v3078, -inf
  %3191 = vmax.xlane.f32.xlu0 %v3190
  %v3192 = vpop.xlane.xlu0 %3191
  %v3193 = vsel %vm1150, %v3079, -inf
  %3194 = vmax.xlane.f32.xlu0 %v3193
  %v3195 = vpop.xlane.xlu0 %3194
  %v3196 = vsel %vm1150, %v3080, -inf
  %3197 = vmax.xlane.f32.xlu0 %v3196
  %v3198 = vpop.xlane.xlu0 %3197
  %v3199 = vsel %vm1150, %v3081, -inf
  %3200 = vmax.xlane.f32.xlu0 %v3199
  %v3201 = vpop.xlane.xlu0 %3200
  %v3202 = vsel %vm1150, %v3082, -inf
  %3203 = vmax.xlane.f32.xlu0 %v3202
  %v3204 = vpop.xlane.xlu0 %3203
  %v3205 = vsel %vm1150, %v3083, -inf
  %3206 = vmax.xlane.f32.xlu0 %v3205
  %v3207 = vpop.xlane.xlu0 %3206
  %v3208 = vsel %vm1150, %v3084, -inf
  %3209 = vmax.xlane.f32.xlu0 %v3208
  %v3210 = vpop.xlane.xlu0 %3209
  %v3211 = vsel %vm1150, %v3085, -inf
  %3212 = vmax.xlane.f32.xlu0 %v3211
  %v3213 = vpop.xlane.xlu0 %3212
  %v3214 = vsel %vm1150, %v3086, -inf
  %3215 = vmax.xlane.f32.xlu0 %v3214
  %v3216 = vpop.xlane.xlu0 %3215
  %v3217 = vsel %vm1150, %v3087, -inf
  %3218 = vmax.xlane.f32.xlu0 %v3217
  %v3219 = vpop.xlane.xlu0 %3218
  %v3220 = vsel %vm1150, %v3088, -inf
  %3221 = vmax.xlane.f32.xlu0 %v3220
  %v3222 = vpop.xlane.xlu0 %3221
  %v3223 = vsel %vm1150, %v3089, -inf
  %3224 = vmax.xlane.f32.xlu0 %v3223
  %v3225 = vpop.xlane.xlu0 %3224
  %v3226 = vsel %vm1150, %v3090, -inf
  %3227 = vmax.xlane.f32.xlu0 %v3226
  %v3228 = vpop.xlane.xlu0 %3227
  %v3229 = vsel %vm1150, %v3091, -inf
  %3230 = vmax.xlane.f32.xlu0 %v3229
  %v3231 = vpop.xlane.xlu0 %3230
  %v3232 = vsel %vm1150, %v3092, -inf
  %3233 = vmax.xlane.f32.xlu0 %v3232
  %v3234 = vpop.xlane.xlu0 %3233
  %v3235 = vsel %vm1150, %v3093, -inf
  %3236 = vmax.xlane.f32.xlu0 %v3235
  %v3237 = vpop.xlane.xlu0 %3236
  %v3238 = vsub.f32 %v3046, %v3096
  %v3239 = vsub.f32 %v3047, %v3099
  %v3240 = vsub.f32 %v3048, %v3102
  %v3241 = vsub.f32 %v3049, %v3105
  %v3242 = vsub.f32 %v3050, %v3108
  %v3243 = vsub.f32 %v3051, %v3111
  %v3244 = vsub.f32 %v3052, %v3114
  %v3245 = vsub.f32 %v3053, %v3117
  %v3246 = vsub.f32 %v3054, %v3120
  %v3247 = vsub.f32 %v3055, %v3123
  %v3248 = vsub.f32 %v3056, %v3126
  %v3249 = vsub.f32 %v3057, %v3129
  %v3250 = vsub.f32 %v3058, %v3132
  %v3251 = vsub.f32 %v3059, %v3135
  %v3252 = vsub.f32 %v3060, %v3138
  %v3253 = vsub.f32 %v3061, %v3141
  %v3254 = vsub.f32 %v3062, %v3144
  %v3255 = vsub.f32 %v3063, %v3147
  %v3256 = vsub.f32 %v3064, %v3150
  %v3257 = vsub.f32 %v3065, %v3153
  %v3258 = vsub.f32 %v3066, %v3156
  %v3259 = vsub.f32 %v3067, %v3159
  %v3260 = vsub.f32 %v3068, %v3162
  %v3261 = vsub.f32 %v3069, %v3165
  %v3262 = vsub.f32 %v3070, %v3168
  %v3263 = vsub.f32 %v3071, %v3171
  %v3264 = vsub.f32 %v3072, %v3174
  %v3265 = vsub.f32 %v3073, %v3177
  %v3266 = vsub.f32 %v3074, %v3180
  %v3267 = vsub.f32 %v3075, %v3183
  %v3268 = vsub.f32 %v3076, %v3186
  %v3269 = vsub.f32 %v3077, %v3189
  %v3270 = vsub.f32 %v3078, %v3192
  %v3271 = vsub.f32 %v3079, %v3195
  %v3272 = vsub.f32 %v3080, %v3198
  %v3273 = vsub.f32 %v3081, %v3201
  %v3274 = vsub.f32 %v3082, %v3204
  %v3275 = vsub.f32 %v3083, %v3207
  %v3276 = vsub.f32 %v3084, %v3210
  %v3277 = vsub.f32 %v3085, %v3213
  %v3278 = vsub.f32 %v3086, %v3216
  %v3279 = vsub.f32 %v3087, %v3219
  %v3280 = vsub.f32 %v3088, %v3222
  %v3281 = vsub.f32 %v3089, %v3225
  %v3282 = vsub.f32 %v3090, %v3228
  %v3283 = vsub.f32 %v3091, %v3231
  %v3284 = vsub.f32 %v3092, %v3234
  %v3285 = vsub.f32 %v3093, %v3237
  %v3286 = vmul.f32 %v3238, 1.442695
  %v3287 = vpow.pop %v3286
  %v3288 = vmul.f32 %v3239, 1.442695
  %v3289 = vpow.pop %v3288
  %v3290 = vmul.f32 %v3240, 1.442695
  %v3291 = vpow.pop %v3290
  %v3292 = vmul.f32 %v3241, 1.442695
  %v3293 = vpow.pop %v3292
  %v3294 = vmul.f32 %v3242, 1.442695
  %v3295 = vpow.pop %v3294
  %v3296 = vmul.f32 %v3243, 1.442695
  %v3297 = vpow.pop %v3296
  %v3298 = vmul.f32 %v3244, 1.442695
  %v3299 = vpow.pop %v3298
  %v3300 = vmul.f32 %v3245, 1.442695
  %v3301 = vpow.pop %v3300
  %v3302 = vmul.f32 %v3246, 1.442695
  %v3303 = vpow.pop %v3302
  %v3304 = vmul.f32 %v3247, 1.442695
  %v3305 = vpow.pop %v3304
  %v3306 = vmul.f32 %v3248, 1.442695
  %v3307 = vpow.pop %v3306
  %v3308 = vmul.f32 %v3249, 1.442695
  %v3309 = vpow.pop %v3308
  %v3310 = vmul.f32 %v3250, 1.442695
  %v3311 = vpow.pop %v3310
  %v3312 = vmul.f32 %v3251, 1.442695
  %v3313 = vpow.pop %v3312
  %v3314 = vmul.f32 %v3252, 1.442695
  %v3315 = vpow.pop %v3314
  %v3316 = vmul.f32 %v3253, 1.442695
  %v3317 = vpow.pop %v3316
  %v3318 = vmul.f32 %v3254, 1.442695
  %v3319 = vpow.pop %v3318
  %v3320 = vmul.f32 %v3255, 1.442695
  %v3321 = vpow.pop %v3320
  %v3322 = vmul.f32 %v3256, 1.442695
  %v3323 = vpow.pop %v3322
  %v3324 = vmul.f32 %v3257, 1.442695
  %v3325 = vpow.pop %v3324
  %v3326 = vmul.f32 %v3258, 1.442695
  %v3327 = vpow.pop %v3326
  %v3328 = vmul.f32 %v3259, 1.442695
  %v3329 = vpow.pop %v3328
  %v3330 = vmul.f32 %v3260, 1.442695
  %v3331 = vpow.pop %v3330
  %v3332 = vmul.f32 %v3261, 1.442695
  %v3333 = vpow.pop %v3332
  %v3334 = vmul.f32 %v3262, 1.442695
  %v3335 = vpow.pop %v3334
  %v3336 = vmul.f32 %v3263, 1.442695
  %v3337 = vpow.pop %v3336
  %v3338 = vmul.f32 %v3264, 1.442695
  %v3339 = vpow.pop %v3338
  %v3340 = vmul.f32 %v3265, 1.442695
  %v3341 = vpow.pop %v3340
  %v3342 = vmul.f32 %v3266, 1.442695
  %v3343 = vpow.pop %v3342
  %v3344 = vmul.f32 %v3267, 1.442695
  %v3345 = vpow.pop %v3344
  %v3346 = vmul.f32 %v3268, 1.442695
  %v3347 = vpow.pop %v3346
  %v3348 = vmul.f32 %v3269, 1.442695
  %v3349 = vpow.pop %v3348
  %v3350 = vmul.f32 %v3270, 1.442695
  %v3351 = vpow.pop %v3350
  %v3352 = vmul.f32 %v3271, 1.442695
  %v3353 = vpow.pop %v3352
  %v3354 = vmul.f32 %v3272, 1.442695
  %v3355 = vpow.pop %v3354
  %v3356 = vmul.f32 %v3273, 1.442695
  %v3357 = vpow.pop %v3356
  %v3358 = vmul.f32 %v3274, 1.442695
  %v3359 = vpow.pop %v3358
  %v3360 = vmul.f32 %v3275, 1.442695
  %v3361 = vpow.pop %v3360
  %v3362 = vmul.f32 %v3276, 1.442695
  %v3363 = vpow.pop %v3362
  %v3364 = vmul.f32 %v3277, 1.442695
  %v3365 = vpow.pop %v3364
  %v3366 = vmul.f32 %v3278, 1.442695
  %v3367 = vpow.pop %v3366
  %v3368 = vmul.f32 %v3279, 1.442695
  %v3369 = vpow.pop %v3368
  %v3370 = vmul.f32 %v3280, 1.442695
  %v3371 = vpow.pop %v3370
  %v3372 = vmul.f32 %v3281, 1.442695
  %v3373 = vpow.pop %v3372
  %v3374 = vmul.f32 %v3282, 1.442695
  %v3375 = vpow.pop %v3374
  %v3376 = vmul.f32 %v3283, 1.442695
  %v3377 = vpow.pop %v3376
  %v3378 = vmul.f32 %v3284, 1.442695
  %v3379 = vpow.pop %v3378
  %v3380 = vmul.f32 %v3285, 1.442695
  %v3381 = vpow.pop %v3380
  %v3382 = vsel %vm1150, %v3287, 0.0
  %3383 = vadd.xlane.f32.xlu0 %v3382
  %v3384 = vpop.xlane.xlu0 %3383
  %v3385 = vsel %vm1150, %v3289, 0.0
  %3386 = vadd.xlane.f32.xlu0 %v3385
  %v3387 = vpop.xlane.xlu0 %3386
  %v3388 = vsel %vm1150, %v3291, 0.0
  %3389 = vadd.xlane.f32.xlu0 %v3388
  %v3390 = vpop.xlane.xlu0 %3389
  %v3391 = vsel %vm1150, %v3293, 0.0
  %3392 = vadd.xlane.f32.xlu0 %v3391
  %v3393 = vpop.xlane.xlu0 %3392
  %v3394 = vsel %vm1150, %v3295, 0.0
  %3395 = vadd.xlane.f32.xlu0 %v3394
  %v3396 = vpop.xlane.xlu0 %3395
  %v3397 = vsel %vm1150, %v3297, 0.0
  %3398 = vadd.xlane.f32.xlu0 %v3397
  %v3399 = vpop.xlane.xlu0 %3398
  %v3400 = vsel %vm1150, %v3299, 0.0
  %3401 = vadd.xlane.f32.xlu0 %v3400
  %v3402 = vpop.xlane.xlu0 %3401
  %v3403 = vsel %vm1150, %v3301, 0.0
  %3404 = vadd.xlane.f32.xlu0 %v3403
  %v3405 = vpop.xlane.xlu0 %3404
  %v3406 = vsel %vm1150, %v3303, 0.0
  %3407 = vadd.xlane.f32.xlu0 %v3406
  %v3408 = vpop.xlane.xlu0 %3407
  %v3409 = vsel %vm1150, %v3305, 0.0
  %3410 = vadd.xlane.f32.xlu0 %v3409
  %v3411 = vpop.xlane.xlu0 %3410
  %v3412 = vsel %vm1150, %v3307, 0.0
  %3413 = vadd.xlane.f32.xlu0 %v3412
  %v3414 = vpop.xlane.xlu0 %3413
  %v3415 = vsel %vm1150, %v3309, 0.0
  %3416 = vadd.xlane.f32.xlu0 %v3415
  %v3417 = vpop.xlane.xlu0 %3416
  %v3418 = vsel %vm1150, %v3311, 0.0
  %3419 = vadd.xlane.f32.xlu0 %v3418
  %v3420 = vpop.xlane.xlu0 %3419
  %v3421 = vsel %vm1150, %v3313, 0.0
  %3422 = vadd.xlane.f32.xlu0 %v3421
  %v3423 = vpop.xlane.xlu0 %3422
  %v3424 = vsel %vm1150, %v3315, 0.0
  %3425 = vadd.xlane.f32.xlu0 %v3424
  %v3426 = vpop.xlane.xlu0 %3425
  %v3427 = vsel %vm1150, %v3317, 0.0
  %3428 = vadd.xlane.f32.xlu0 %v3427
  %v3429 = vpop.xlane.xlu0 %3428
  %v3430 = vsel %vm1150, %v3319, 0.0
  %3431 = vadd.xlane.f32.xlu0 %v3430
  %v3432 = vpop.xlane.xlu0 %3431
  %v3433 = vsel %vm1150, %v3321, 0.0
  %3434 = vadd.xlane.f32.xlu0 %v3433
  %v3435 = vpop.xlane.xlu0 %3434
  %v3436 = vsel %vm1150, %v3323, 0.0
  %3437 = vadd.xlane.f32.xlu0 %v3436
  %v3438 = vpop.xlane.xlu0 %3437
  %v3439 = vsel %vm1150, %v3325, 0.0
  %3440 = vadd.xlane.f32.xlu0 %v3439
  %v3441 = vpop.xlane.xlu0 %3440
  %v3442 = vsel %vm1150, %v3327, 0.0
  %3443 = vadd.xlane.f32.xlu0 %v3442
  %v3444 = vpop.xlane.xlu0 %3443
  %v3445 = vsel %vm1150, %v3329, 0.0
  %3446 = vadd.xlane.f32.xlu0 %v3445
  %v3447 = vpop.xlane.xlu0 %3446
  %v3448 = vsel %vm1150, %v3331, 0.0
  %3449 = vadd.xlane.f32.xlu0 %v3448
  %v3450 = vpop.xlane.xlu0 %3449
  %v3451 = vsel %vm1150, %v3333, 0.0
  %3452 = vadd.xlane.f32.xlu0 %v3451
  %v3453 = vpop.xlane.xlu0 %3452
  %v3454 = vsel %vm1150, %v3335, 0.0
  %3455 = vadd.xlane.f32.xlu0 %v3454
  %v3456 = vpop.xlane.xlu0 %3455
  %v3457 = vsel %vm1150, %v3337, 0.0
  %3458 = vadd.xlane.f32.xlu0 %v3457
  %v3459 = vpop.xlane.xlu0 %3458
  %v3460 = vsel %vm1150, %v3339, 0.0
  %3461 = vadd.xlane.f32.xlu0 %v3460
  %v3462 = vpop.xlane.xlu0 %3461
  %v3463 = vsel %vm1150, %v3341, 0.0
  %3464 = vadd.xlane.f32.xlu0 %v3463
  %v3465 = vpop.xlane.xlu0 %3464
  %v3466 = vsel %vm1150, %v3343, 0.0
  %3467 = vadd.xlane.f32.xlu0 %v3466
  %v3468 = vpop.xlane.xlu0 %3467
  %v3469 = vsel %vm1150, %v3345, 0.0
  %3470 = vadd.xlane.f32.xlu0 %v3469
  %v3471 = vpop.xlane.xlu0 %3470
  %v3472 = vsel %vm1150, %v3347, 0.0
  %3473 = vadd.xlane.f32.xlu0 %v3472
  %v3474 = vpop.xlane.xlu0 %3473
  %v3475 = vsel %vm1150, %v3349, 0.0
  %3476 = vadd.xlane.f32.xlu0 %v3475
  %v3477 = vpop.xlane.xlu0 %3476
  %v3478 = vsel %vm1150, %v3351, 0.0
  %3479 = vadd.xlane.f32.xlu0 %v3478
  %v3480 = vpop.xlane.xlu0 %3479
  %v3481 = vsel %vm1150, %v3353, 0.0
  %3482 = vadd.xlane.f32.xlu0 %v3481
  %v3483 = vpop.xlane.xlu0 %3482
  %v3484 = vsel %vm1150, %v3355, 0.0
  %3485 = vadd.xlane.f32.xlu0 %v3484
  %v3486 = vpop.xlane.xlu0 %3485
  %v3487 = vsel %vm1150, %v3357, 0.0
  %3488 = vadd.xlane.f32.xlu0 %v3487
  %v3489 = vpop.xlane.xlu0 %3488
  %v3490 = vsel %vm1150, %v3359, 0.0
  %3491 = vadd.xlane.f32.xlu0 %v3490
  %v3492 = vpop.xlane.xlu0 %3491
  %v3493 = vsel %vm1150, %v3361, 0.0
  %3494 = vadd.xlane.f32.xlu0 %v3493
  %v3495 = vpop.xlane.xlu0 %3494
  %v3496 = vsel %vm1150, %v3363, 0.0
  %3497 = vadd.xlane.f32.xlu0 %v3496
  %v3498 = vpop.xlane.xlu0 %3497
  %v3499 = vsel %vm1150, %v3365, 0.0
  %3500 = vadd.xlane.f32.xlu0 %v3499
  %v3501 = vpop.xlane.xlu0 %3500
  %v3502 = vsel %vm1150, %v3367, 0.0
  %3503 = vadd.xlane.f32.xlu0 %v3502
  %v3504 = vpop.xlane.xlu0 %3503
  %v3505 = vsel %vm1150, %v3369, 0.0
  %3506 = vadd.xlane.f32.xlu0 %v3505
  %v3507 = vpop.xlane.xlu0 %3506
  %v3508 = vsel %vm1150, %v3371, 0.0
  %3509 = vadd.xlane.f32.xlu0 %v3508
  %v3510 = vpop.xlane.xlu0 %3509
  %v3511 = vsel %vm1150, %v3373, 0.0
  %3512 = vadd.xlane.f32.xlu0 %v3511
  %v3513 = vpop.xlane.xlu0 %3512
  %v3514 = vsel %vm1150, %v3375, 0.0
  %3515 = vadd.xlane.f32.xlu0 %v3514
  %v3516 = vpop.xlane.xlu0 %3515
  %v3517 = vsel %vm1150, %v3377, 0.0
  %3518 = vadd.xlane.f32.xlu0 %v3517
  %v3519 = vpop.xlane.xlu0 %3518
  %v3520 = vsel %vm1150, %v3379, 0.0
  %3521 = vadd.xlane.f32.xlu0 %v3520
  %v3522 = vpop.xlane.xlu0 %3521
  %v3523 = vsel %vm1150, %v3381, 0.0
  %3524 = vadd.xlane.f32.xlu0 %v3523
  %v3525 = vpop.xlane.xlu0 %3524
  %v3526 = vrcp.pop %v3384
  %v3527 = vrcp.pop %v3387
  %v3528 = vrcp.pop %v3390
  %v3529 = vrcp.pop %v3393
  %v3530 = vrcp.pop %v3396
  %v3531 = vrcp.pop %v3399
  %v3532 = vrcp.pop %v3402
  %v3533 = vrcp.pop %v3405
  %v3534 = vrcp.pop %v3408
  %v3535 = vrcp.pop %v3411
  %v3536 = vrcp.pop %v3414
  %v3537 = vrcp.pop %v3417
  %v3538 = vrcp.pop %v3420
  %v3539 = vrcp.pop %v3423
  %v3540 = vrcp.pop %v3426
  %v3541 = vrcp.pop %v3429
  %v3542 = vrcp.pop %v3432
  %v3543 = vrcp.pop %v3435
  %v3544 = vrcp.pop %v3438
  %v3545 = vrcp.pop %v3441
  %v3546 = vrcp.pop %v3444
  %v3547 = vrcp.pop %v3447
  %v3548 = vrcp.pop %v3450
  %v3549 = vrcp.pop %v3453
  %v3550 = vrcp.pop %v3456
  %v3551 = vrcp.pop %v3459
  %v3552 = vrcp.pop %v3462
  %v3553 = vrcp.pop %v3465
  %v3554 = vrcp.pop %v3468
  %v3555 = vrcp.pop %v3471
  %v3556 = vrcp.pop %v3474
  %v3557 = vrcp.pop %v3477
  %v3558 = vrcp.pop %v3480
  %v3559 = vrcp.pop %v3483
  %v3560 = vrcp.pop %v3486
  %v3561 = vrcp.pop %v3489
  %v3562 = vrcp.pop %v3492
  %v3563 = vrcp.pop %v3495
  %v3564 = vrcp.pop %v3498
  %v3565 = vrcp.pop %v3501
  %v3566 = vrcp.pop %v3504
  %v3567 = vrcp.pop %v3507
  %v3568 = vrcp.pop %v3510
  %v3569 = vrcp.pop %v3513
  %v3570 = vrcp.pop %v3516
  %v3571 = vrcp.pop %v3519
  %v3572 = vrcp.pop %v3522
  %v3573 = vrcp.pop %v3525
  %v3574 = vmul.f32 %v3287, %v3526
  %v3575 = vmul.f32 %v3289, %v3527
  %v3576 = vmul.f32 %v3291, %v3528
  %v3577 = vmul.f32 %v3293, %v3529
  %v3578 = vmul.f32 %v3295, %v3530
  %v3579 = vmul.f32 %v3297, %v3531
  %v3580 = vmul.f32 %v3299, %v3532
  %v3581 = vmul.f32 %v3301, %v3533
  %v3582 = vmul.f32 %v3303, %v3534
  %v3583 = vmul.f32 %v3305, %v3535
  %v3584 = vmul.f32 %v3307, %v3536
  %v3585 = vmul.f32 %v3309, %v3537
  %v3586 = vmul.f32 %v3311, %v3538
  %v3587 = vmul.f32 %v3313, %v3539
  %v3588 = vmul.f32 %v3315, %v3540
  %v3589 = vmul.f32 %v3317, %v3541
  %v3590 = vmul.f32 %v3319, %v3542
  %v3591 = vmul.f32 %v3321, %v3543
  %v3592 = vmul.f32 %v3323, %v3544
  %v3593 = vmul.f32 %v3325, %v3545
  %v3594 = vmul.f32 %v3327, %v3546
  %v3595 = vmul.f32 %v3329, %v3547
  %v3596 = vmul.f32 %v3331, %v3548
  %v3597 = vmul.f32 %v3333, %v3549
  %v3598 = vmul.f32 %v3335, %v3550
  %v3599 = vmul.f32 %v3337, %v3551
  %v3600 = vmul.f32 %v3339, %v3552
  %v3601 = vmul.f32 %v3341, %v3553
  %v3602 = vmul.f32 %v3343, %v3554
  %v3603 = vmul.f32 %v3345, %v3555
  %v3604 = vmul.f32 %v3347, %v3556
  %v3605 = vmul.f32 %v3349, %v3557
  %v3606 = vmul.f32 %v3351, %v3558
  %v3607 = vmul.f32 %v3353, %v3559
  %v3608 = vmul.f32 %v3355, %v3560
  %v3609 = vmul.f32 %v3357, %v3561
  %v3610 = vmul.f32 %v3359, %v3562
  %v3611 = vmul.f32 %v3361, %v3563
  %v3612 = vmul.f32 %v3363, %v3564
  %v3613 = vmul.f32 %v3365, %v3565
  %v3614 = vmul.f32 %v3367, %v3566
  %v3615 = vmul.f32 %v3369, %v3567
  %v3616 = vmul.f32 %v3371, %v3568
  %v3617 = vmul.f32 %v3373, %v3569
  %v3618 = vmul.f32 %v3375, %v3570
  %v3619 = vmul.f32 %v3377, %v3571
  %v3620 = vmul.f32 %v3379, %v3572
  %v3621 = vmul.f32 %v3381, %v3573
  %v3622 = vpack.c.bf16 %v3575, %v3574
  %v3623 = vpack.c.bf16 %v3577, %v3576
  %v3624 = vpack.c.bf16 %v3579, %v3578
  %v3625 = vpack.c.bf16 %v3581, %v3580
  %v3626 = vpack.c.bf16 %v3583, %v3582
  %v3627 = vpack.c.bf16 %v3585, %v3584
  %v3628 = vpack.c.bf16 %v3587, %v3586
  %v3629 = vpack.c.bf16 %v3589, %v3588
  %v3630 = vpack.c.bf16 %v3591, %v3590
  %v3631 = vpack.c.bf16 %v3593, %v3592
  %v3632 = vpack.c.bf16 %v3595, %v3594
  %v3633 = vpack.c.bf16 %v3597, %v3596
  %v3634 = vpack.c.bf16 %v3599, %v3598
  %v3635 = vpack.c.bf16 %v3601, %v3600
  %v3636 = vpack.c.bf16 %v3603, %v3602
  %v3637 = vpack.c.bf16 %v3605, %v3604
  %v3638 = vpack.c.bf16 %v3607, %v3606
  %v3639 = vpack.c.bf16 %v3609, %v3608
  %v3640 = vpack.c.bf16 %v3611, %v3610
  %v3641 = vpack.c.bf16 %v3613, %v3612
  %v3642 = vpack.c.bf16 %v3615, %v3614
  %v3643 = vpack.c.bf16 %v3617, %v3616
  %v3644 = vpack.c.bf16 %v3619, %v3618
  %v3645 = vpack.c.bf16 %v3621, %v3620
  %v3646 = vpack.c.bf16 %v2216, %v2213
  %v3647 = vpack.c.bf16 %v2222, %v2219
  %v3648 = vpack.c.bf16 %v2228, %v2225
  %v3649 = vpack.c.bf16 %v2234, %v2231
  %v3651 = vsel %vm1150, %v3622, 0
  %v3654 = vsel %vm1150, %v3623, 0
  %v3657 = vsel %vm1150, %v3624, 0
  %v3660 = vsel %vm1150, %v3625, 0
  %v3663 = vsel %vm1150, %v3626, 0
  %v3666 = vsel %vm1150, %v3627, 0
  %v3669 = vsel %vm1150, %v3628, 0
  %v3672 = vsel %vm1150, %v3629, 0
  %v3675 = vsel %vm1150, %v3630, 0
  %v3678 = vsel %vm1150, %v3631, 0
  %v3681 = vsel %vm1150, %v3632, 0
  %v3684 = vsel %vm1150, %v3633, 0
  %v3687 = vsel %vm1150, %v3634, 0
  %v3690 = vsel %vm1150, %v3635, 0
  %v3693 = vsel %vm1150, %v3636, 0
  %v3696 = vsel %vm1150, %v3637, 0
  %v3699 = vsel %vm1150, %v3638, 0
  %v3702 = vsel %vm1150, %v3639, 0
  %v3705 = vsel %vm1150, %v3640, 0
  %v3708 = vsel %vm1150, %v3641, 0
  %v3711 = vsel %vm1150, %v3642, 0
  %v3714 = vsel %vm1150, %v3643, 0
  %v3717 = vsel %vm1150, %v3644, 0
  %v3720 = vsel %vm1150, %v3645, 0
  %3722 = vmatpush.bf16.msra.mxu0 0
  %3723 = vmatpush.bf16.msra.mxu0 0
  %3724 = vmatpush.bf16.msra.mxu0 0
  %3725 = vmatpush.bf16.msra.mxu0 0
  %3726 = vmatpush.bf16.msra.mxu0 %v3649
  %3727 = vmatpush.bf16.msra.mxu0 %v3648
  %3728 = vmatpush.bf16.msra.mxu0 %v3647
  %3729 = vmatpush.bf16.msra.mxu0 %v3646
  %3730 = vmatmul.bf16.gmra.mxu0 %v3651
  %v3731 = vpop.f32.mrf.mxu0
  %v3732 = vadd.f32 0.0, %v3731
  %v3733 = vpop.f32.mrf.mxu0
  %v3734 = vadd.f32 0.0, %v3733
  %3735 = vmatmul.bf16.gmra.mxu0 %v3654
  %v3736 = vpop.f32.mrf.mxu0
  %v3737 = vadd.f32 0.0, %v3736
  %v3738 = vpop.f32.mrf.mxu0
  %v3739 = vadd.f32 0.0, %v3738
  %3740 = vmatmul.bf16.gmra.mxu0 %v3657
  %v3741 = vpop.f32.mrf.mxu0
  %v3742 = vadd.f32 0.0, %v3741
  %v3743 = vpop.f32.mrf.mxu0
  %v3744 = vadd.f32 0.0, %v3743
  %3745 = vmatmul.bf16.gmra.mxu0 %v3660
  %v3746 = vpop.f32.mrf.mxu0
  %v3747 = vadd.f32 0.0, %v3746
  %v3748 = vpop.f32.mrf.mxu0
  %v3749 = vadd.f32 0.0, %v3748
  %3750 = vmatmul.bf16.gmra.mxu0 %v3663
  %v3751 = vpop.f32.mrf.mxu0
  %v3752 = vadd.f32 0.0, %v3751
  %v3753 = vpop.f32.mrf.mxu0
  %v3754 = vadd.f32 0.0, %v3753
  %3755 = vmatmul.bf16.gmra.mxu0 %v3666
  %v3756 = vpop.f32.mrf.mxu0
  %v3757 = vadd.f32 0.0, %v3756
  %v3758 = vpop.f32.mrf.mxu0
  %v3759 = vadd.f32 0.0, %v3758
  %3760 = vmatmul.bf16.gmra.mxu0 %v3669
  %v3761 = vpop.f32.mrf.mxu0
  %v3762 = vadd.f32 0.0, %v3761
  %v3763 = vpop.f32.mrf.mxu0
  %v3764 = vadd.f32 0.0, %v3763
  %3765 = vmatmul.bf16.gmra.mxu0 %v3672
  %v3766 = vpop.f32.mrf.mxu0
  %v3767 = vadd.f32 0.0, %v3766
  %v3768 = vpop.f32.mrf.mxu0
  %v3769 = vadd.f32 0.0, %v3768
  %3770 = vmatmul.bf16.gmra.mxu0 %v3675
  %v3771 = vpop.f32.mrf.mxu0
  %v3772 = vadd.f32 0.0, %v3771
  %v3773 = vpop.f32.mrf.mxu0
  %v3774 = vadd.f32 0.0, %v3773
  %3775 = vmatmul.bf16.gmra.mxu0 %v3678
  %v3776 = vpop.f32.mrf.mxu0
  %v3777 = vadd.f32 0.0, %v3776
  %v3778 = vpop.f32.mrf.mxu0
  %v3779 = vadd.f32 0.0, %v3778
  %3780 = vmatmul.bf16.gmra.mxu0 %v3681
  %v3781 = vpop.f32.mrf.mxu0
  %v3782 = vadd.f32 0.0, %v3781
  %v3783 = vpop.f32.mrf.mxu0
  %v3784 = vadd.f32 0.0, %v3783
  %3785 = vmatmul.bf16.gmra.mxu0 %v3684
  %v3786 = vpop.f32.mrf.mxu0
  %v3787 = vadd.f32 0.0, %v3786
  %v3788 = vpop.f32.mrf.mxu0
  %v3789 = vadd.f32 0.0, %v3788
  %3790 = vmatmul.bf16.gmra.mxu0 %v3687
  %v3791 = vpop.f32.mrf.mxu0
  %v3792 = vadd.f32 0.0, %v3791
  %v3793 = vpop.f32.mrf.mxu0
  %v3794 = vadd.f32 0.0, %v3793
  %3795 = vmatmul.bf16.gmra.mxu0 %v3690
  %v3796 = vpop.f32.mrf.mxu0
  %v3797 = vadd.f32 0.0, %v3796
  %v3798 = vpop.f32.mrf.mxu0
  %v3799 = vadd.f32 0.0, %v3798
  %3800 = vmatmul.bf16.gmra.mxu0 %v3693
  %v3801 = vpop.f32.mrf.mxu0
  %v3802 = vadd.f32 0.0, %v3801
  %v3803 = vpop.f32.mrf.mxu0
  %v3804 = vadd.f32 0.0, %v3803
  %3805 = vmatmul.bf16.gmra.mxu0 %v3696
  %v3806 = vpop.f32.mrf.mxu0
  %v3807 = vadd.f32 0.0, %v3806
  %v3808 = vpop.f32.mrf.mxu0
  %v3809 = vadd.f32 0.0, %v3808
  %3810 = vmatmul.bf16.gmra.mxu0 %v3699
  %v3811 = vpop.f32.mrf.mxu0
  %v3812 = vadd.f32 0.0, %v3811
  %v3813 = vpop.f32.mrf.mxu0
  %v3814 = vadd.f32 0.0, %v3813
  %3815 = vmatmul.bf16.gmra.mxu0 %v3702
  %v3816 = vpop.f32.mrf.mxu0
  %v3817 = vadd.f32 0.0, %v3816
  %v3818 = vpop.f32.mrf.mxu0
  %v3819 = vadd.f32 0.0, %v3818
  %3820 = vmatmul.bf16.gmra.mxu0 %v3705
  %v3821 = vpop.f32.mrf.mxu0
  %v3822 = vadd.f32 0.0, %v3821
  %v3823 = vpop.f32.mrf.mxu0
  %v3824 = vadd.f32 0.0, %v3823
  %3825 = vmatmul.bf16.gmra.mxu0 %v3708
  %v3826 = vpop.f32.mrf.mxu0
  %v3827 = vadd.f32 0.0, %v3826
  %v3828 = vpop.f32.mrf.mxu0
  %v3829 = vadd.f32 0.0, %v3828
  %3830 = vmatmul.bf16.gmra.mxu0 %v3711
  %v3831 = vpop.f32.mrf.mxu0
  %v3832 = vadd.f32 0.0, %v3831
  %v3833 = vpop.f32.mrf.mxu0
  %v3834 = vadd.f32 0.0, %v3833
  %3835 = vmatmul.bf16.gmra.mxu0 %v3714
  %v3836 = vpop.f32.mrf.mxu0
  %v3837 = vadd.f32 0.0, %v3836
  %v3838 = vpop.f32.mrf.mxu0
  %v3839 = vadd.f32 0.0, %v3838
  %3840 = vmatmul.bf16.gmra.mxu0 %v3717
  %v3841 = vpop.f32.mrf.mxu0
  %v3842 = vadd.f32 0.0, %v3841
  %v3843 = vpop.f32.mrf.mxu0
  %v3844 = vadd.f32 0.0, %v3843
  %3845 = vmatmul.bf16.gmra.mxu0 %v3720
  %v3846 = vpop.f32.mrf.mxu0
  %v3847 = vadd.f32 0.0, %v3846
  %v3848 = vpop.f32.mrf.mxu0
  %v3849 = vadd.f32 0.0, %v3848
  %3850 = vdwg.mxu0
  %v3851 = vld [vmem:[%s10] sm:$0x3f]
  %v3852 = vperm.slane %v3851, 0
  %v3853 = vmul.f32 %v3732, %v3852
  %v3854 = vmul.f32 %v3734, %v3852
  %v3855 = vmul.f32 %v3737, %v3852
  %v3856 = vmul.f32 %v3739, %v3852
  %v3857 = vmul.f32 %v3742, %v3852
  %v3858 = vmul.f32 %v3744, %v3852
  %v3859 = vmul.f32 %v3747, %v3852
  %v3860 = vmul.f32 %v3749, %v3852
  %v3861 = vperm.slane %v3851, 1
  %v3862 = vmul.f32 %v3752, %v3861
  %v3863 = vmul.f32 %v3754, %v3861
  %v3864 = vmul.f32 %v3757, %v3861
  %v3865 = vmul.f32 %v3759, %v3861
  %v3866 = vmul.f32 %v3762, %v3861
  %v3867 = vmul.f32 %v3764, %v3861
  %v3868 = vmul.f32 %v3767, %v3861
  %v3869 = vmul.f32 %v3769, %v3861
  %v3870 = vadd.f32 %v3853, %v3862
  %v3871 = vadd.f32 %v3854, %v3863
  %v3872 = vadd.f32 %v3855, %v3864
  %v3873 = vadd.f32 %v3856, %v3865
  %v3874 = vadd.f32 %v3857, %v3866
  %v3875 = vadd.f32 %v3858, %v3867
  %v3876 = vadd.f32 %v3859, %v3868
  %v3877 = vadd.f32 %v3860, %v3869
  %v3878 = vperm.slane %v3851, 2
  %v3879 = vmul.f32 %v3772, %v3878
  %v3880 = vmul.f32 %v3774, %v3878
  %v3881 = vmul.f32 %v3777, %v3878
  %v3882 = vmul.f32 %v3779, %v3878
  %v3883 = vmul.f32 %v3782, %v3878
  %v3884 = vmul.f32 %v3784, %v3878
  %v3885 = vmul.f32 %v3787, %v3878
  %v3886 = vmul.f32 %v3789, %v3878
  %v3887 = vadd.f32 %v3870, %v3879
  %v3888 = vadd.f32 %v3871, %v3880
  %v3889 = vadd.f32 %v3872, %v3881
  %v3890 = vadd.f32 %v3873, %v3882
  %v3891 = vadd.f32 %v3874, %v3883
  %v3892 = vadd.f32 %v3875, %v3884
  %v3893 = vadd.f32 %v3876, %v3885
  %v3894 = vadd.f32 %v3877, %v3886
  %v3895 = vperm.slane %v3851, 3
  %v3896 = vmul.f32 %v3792, %v3895
  %v3897 = vmul.f32 %v3794, %v3895
  %v3898 = vmul.f32 %v3797, %v3895
  %v3899 = vmul.f32 %v3799, %v3895
  %v3900 = vmul.f32 %v3802, %v3895
  %v3901 = vmul.f32 %v3804, %v3895
  %v3902 = vmul.f32 %v3807, %v3895
  %v3903 = vmul.f32 %v3809, %v3895
  %v3904 = vadd.f32 %v3887, %v3896
  %v3905 = vadd.f32 %v3888, %v3897
  %v3906 = vadd.f32 %v3889, %v3898
  %v3907 = vadd.f32 %v3890, %v3899
  %v3908 = vadd.f32 %v3891, %v3900
  %v3909 = vadd.f32 %v3892, %v3901
  %v3910 = vadd.f32 %v3893, %v3902
  %v3911 = vadd.f32 %v3894, %v3903
  %v3912 = vperm.slane %v3851, 4
  %v3913 = vmul.f32 %v3812, %v3912
  %v3914 = vmul.f32 %v3814, %v3912
  %v3915 = vmul.f32 %v3817, %v3912
  %v3916 = vmul.f32 %v3819, %v3912
  %v3917 = vmul.f32 %v3822, %v3912
  %v3918 = vmul.f32 %v3824, %v3912
  %v3919 = vmul.f32 %v3827, %v3912
  %v3920 = vmul.f32 %v3829, %v3912
  %v3921 = vadd.f32 %v3904, %v3913
  %v3922 = vadd.f32 %v3905, %v3914
  %v3923 = vadd.f32 %v3906, %v3915
  %v3924 = vadd.f32 %v3907, %v3916
  %v3925 = vadd.f32 %v3908, %v3917
  %v3926 = vadd.f32 %v3909, %v3918
  %v3927 = vadd.f32 %v3910, %v3919
  %v3928 = vadd.f32 %v3911, %v3920
  %v3929 = vperm.slane %v3851, 5
  %v3930 = vmul.f32 %v3832, %v3929
  %v3931 = vmul.f32 %v3834, %v3929
  %v3932 = vmul.f32 %v3837, %v3929
  %v3933 = vmul.f32 %v3839, %v3929
  %v3934 = vmul.f32 %v3842, %v3929
  %v3935 = vmul.f32 %v3844, %v3929
  %v3936 = vmul.f32 %v3847, %v3929
  %v3937 = vmul.f32 %v3849, %v3929
  %v3938 = vadd.f32 %v3921, %v3930
  %v3939 = vadd.f32 %v3922, %v3931
  %v3940 = vadd.f32 %v3923, %v3932
  %v3941 = vadd.f32 %v3924, %v3933
  %v3942 = vadd.f32 %v3925, %v3934
  %v3943 = vadd.f32 %v3926, %v3935
  %v3944 = vadd.f32 %v3927, %v3936
  %v3945 = vadd.f32 %v3928, %v3937
  %v3946 = vld [vmem:[%s11] sm:$0x1]
  %v3948 = vperm.slane %v3946, 0
  %v3950 = vadd.f32 %v3938, %v3948
  %v3951 = vadd.f32 %v3939, %v3948
  %v3952 = vadd.f32 %v3940, %v3948
  %v3953 = vadd.f32 %v3941, %v3948
  %v3954 = vadd.f32 %v3942, %v3948
  %v3955 = vadd.f32 %v3943, %v3948
  %v3956 = vadd.f32 %v3944, %v3948
  %v3957 = vadd.f32 %v3945, %v3948
  %v3958 = vmax.f32 %v3950, 0.0
  %v3959 = vmax.f32 %v3951, 0.0
  %v3960 = vmax.f32 %v3952, 0.0
  %v3961 = vmax.f32 %v3953, 0.0
  %v3962 = vmax.f32 %v3954, 0.0
  %v3963 = vmax.f32 %v3955, 0.0
  %v3964 = vmax.f32 %v3956, 0.0
  %v3965 = vmax.f32 %v3957, 0.0
  %v3966 = vld [vmem:[%s12] sm:$0xff]
  %v3967 = vld [vmem:[%s12 + $0x8] sm:$0xff]
  %v3968 = vld [vmem:[%s12 + $0x10] sm:$0xff]
  %v3969 = vld [vmem:[%s12 + $0x18] sm:$0xff]
  %v3970 = vld [vmem:[%s12 + $0x20] sm:$0xff]
  %v3971 = vld [vmem:[%s12 + $0x28] sm:$0xff]
  %v3973 = vsel %vm2284, %v3958, 0
  %v3976 = vsel %vm2284, %v3959, 0
  %v3979 = vsel %vm2284, %v3960, 0
  %v3982 = vsel %vm2284, %v3961, 0
  %v3985 = vsel %vm2284, %v3962, 0
  %v3988 = vsel %vm2284, %v3963, 0
  %v3991 = vsel %vm2284, %v3964, 0
  %v3994 = vsel %vm2284, %v3965, 0
  %3996 = vmatpush.msra.mxu0 0.0
  %3997 = vmatpush.msra.mxu0 0.0
  %3998 = vmatpush.msra.mxu0 0.0
  %3999 = vmatpush.msra.mxu0 0.0
  %4000 = vmatpush.msra.mxu0 0.0
  %4001 = vmatpush.msra.mxu0 0.0
  %4002 = vmatpush.msra.mxu0 0.0
  %4003 = vmatpush.msra.mxu0 0.0
  %4004 = vmatpush.msra.mxu0 0.0
  %4005 = vmatpush.msra.mxu0 0.0
  %4006 = vmatpush.msra.mxu0 %v3971
  %4007 = vmatpush.msra.mxu0 %v3970
  %4008 = vmatpush.msra.mxu0 %v3969
  %4009 = vmatpush.msra.mxu0 %v3968
  %4010 = vmatpush.msra.mxu0 %v3967
  %4011 = vmatpush.msra.mxu0 %v3966
  %4012 = vmatmul.f32.gmra.mxu0 %v3973
  %v4013 = vpop.f32.mrf.mxu0
  %v4014 = vadd.f32 0.0, %v4013
  %4015 = vmatmul.f32.gmra.mxu0 %v3976
  %v4016 = vpop.f32.mrf.mxu0
  %v4017 = vadd.f32 0.0, %v4016
  %4018 = vmatmul.f32.gmra.mxu0 %v3979
  %v4019 = vpop.f32.mrf.mxu0
  %v4020 = vadd.f32 0.0, %v4019
  %4021 = vmatmul.f32.gmra.mxu0 %v3982
  %v4022 = vpop.f32.mrf.mxu0
  %v4023 = vadd.f32 0.0, %v4022
  %4024 = vmatmul.f32.gmra.mxu0 %v3985
  %v4025 = vpop.f32.mrf.mxu0
  %v4026 = vadd.f32 0.0, %v4025
  %4027 = vmatmul.f32.gmra.mxu0 %v3988
  %v4028 = vpop.f32.mrf.mxu0
  %v4029 = vadd.f32 0.0, %v4028
  %4030 = vmatmul.f32.gmra.mxu0 %v3991
  %v4031 = vpop.f32.mrf.mxu0
  %v4032 = vadd.f32 0.0, %v4031
  %4033 = vmatmul.f32.gmra.mxu0 %v3994
  %v4034 = vpop.f32.mrf.mxu0
  %v4035 = vadd.f32 0.0, %v4034
  %4036 = vdwg.mxu0
  %v4037 = vld [vmem:[%s13] sm:$0xff]
  %v4038 = vld [vmem:[%s13 + $0x8] sm:$0xff]
  %v4039 = vld [vmem:[%s13 + $0x10] sm:$0xff]
  %v4040 = vld [vmem:[%s13 + $0x18] sm:$0xff]
  %v4041 = vld [vmem:[%s13 + $0x20] sm:$0xff]
  %v4042 = vld [vmem:[%s13 + $0x28] sm:$0xff]
  %v4043 = vld [vmem:[%s13 + $0x30] sm:$0xff]
  %v4044 = vld [vmem:[%s13 + $0x38] sm:$0xff]
  %v4045 = vld [vmem:[%s13 + $0x40] sm:$0xff]
  %v4046 = vld [vmem:[%s13 + $0x48] sm:$0xff]
  %v4047 = vld [vmem:[%s13 + $0x50] sm:$0xff]
  %v4048 = vld [vmem:[%s13 + $0x58] sm:$0xff]
  %v4049 = vld [vmem:[%s13 + $0x60] sm:$0xff]
  %v4050 = vld [vmem:[%s13 + $0x68] sm:$0xff]
  %v4051 = vld [vmem:[%s13 + $0x70] sm:$0xff]
  %v4052 = vld [vmem:[%s13 + $0x78] sm:$0xff]
  %v4053 = vld [vmem:[%s13 + $0x80] sm:$0xff]
  %v4054 = vld [vmem:[%s13 + $0x88] sm:$0xff]
  %v4055 = vld [vmem:[%s13 + $0x90] sm:$0xff]
  %v4056 = vld [vmem:[%s13 + $0x98] sm:$0xff]
  %v4057 = vld [vmem:[%s13 + $0xa0] sm:$0xff]
  %v4058 = vld [vmem:[%s13 + $0xa8] sm:$0xff]
  %v4059 = vld [vmem:[%s13 + $0xb0] sm:$0xff]
  %v4060 = vld [vmem:[%s13 + $0xb8] sm:$0xff]
  %v4061 = vld [vmem:[%s13 + $0xc0] sm:$0xff]
  %v4062 = vld [vmem:[%s13 + $0xc8] sm:$0xff]
  %v4063 = vld [vmem:[%s13 + $0xd0] sm:$0xff]
  %v4064 = vld [vmem:[%s13 + $0xd8] sm:$0xff]
  %v4065 = vld [vmem:[%s13 + $0xe0] sm:$0xff]
  %v4066 = vld [vmem:[%s13 + $0xe8] sm:$0xff]
  %v4067 = vld [vmem:[%s13 + $0xf0] sm:$0xff]
  %v4068 = vld [vmem:[%s13 + $0xf8] sm:$0xff]
  %v4069 = vld [vmem:[%s13 + $0x100] sm:$0xff]
  %v4070 = vld [vmem:[%s13 + $0x108] sm:$0xff]
  %v4071 = vld [vmem:[%s13 + $0x110] sm:$0xff]
  %v4072 = vld [vmem:[%s13 + $0x118] sm:$0xff]
  %v4073 = vld [vmem:[%s13 + $0x120] sm:$0xff]
  %v4074 = vld [vmem:[%s13 + $0x128] sm:$0xff]
  %v4075 = vld [vmem:[%s13 + $0x130] sm:$0xff]
  %v4076 = vld [vmem:[%s13 + $0x138] sm:$0xff]
  %v4077 = vld [vmem:[%s13 + $0x140] sm:$0xff]
  %v4078 = vld [vmem:[%s13 + $0x148] sm:$0xff]
  %v4079 = vld [vmem:[%s13 + $0x150] sm:$0xff]
  %v4080 = vld [vmem:[%s13 + $0x158] sm:$0xff]
  %v4081 = vld [vmem:[%s13 + $0x160] sm:$0xff]
  %v4082 = vld [vmem:[%s13 + $0x168] sm:$0xff]
  %v4083 = vld [vmem:[%s13 + $0x170] sm:$0xff]
  %v4084 = vld [vmem:[%s13 + $0x178] sm:$0xff]
  %vm4085 = vcmask 244736
  %v4087 = vsel %vm4085, %v4037, 0
  %v4090 = vsel %vm4085, %v4038, 0
  %v4093 = vsel %vm4085, %v4039, 0
  %v4096 = vsel %vm4085, %v4040, 0
  %v4099 = vsel %vm4085, %v4041, 0
  %v4102 = vsel %vm4085, %v4042, 0
  %v4105 = vsel %vm4085, %v4043, 0
  %v4108 = vsel %vm4085, %v4044, 0
  %v4111 = vsel %vm4085, %v4045, 0
  %v4114 = vsel %vm4085, %v4046, 0
  %v4117 = vsel %vm4085, %v4047, 0
  %v4120 = vsel %vm4085, %v4048, 0
  %v4123 = vsel %vm4085, %v4049, 0
  %v4126 = vsel %vm4085, %v4050, 0
  %v4129 = vsel %vm4085, %v4051, 0
  %v4132 = vsel %vm4085, %v4052, 0
  %v4135 = vsel %vm4085, %v4053, 0
  %v4138 = vsel %vm4085, %v4054, 0
  %v4141 = vsel %vm4085, %v4055, 0
  %v4144 = vsel %vm4085, %v4056, 0
  %v4147 = vsel %vm4085, %v4057, 0
  %v4150 = vsel %vm4085, %v4058, 0
  %v4153 = vsel %vm4085, %v4059, 0
  %v4156 = vsel %vm4085, %v4060, 0
  %v4159 = vsel %vm4085, %v4061, 0
  %v4162 = vsel %vm4085, %v4062, 0
  %v4165 = vsel %vm4085, %v4063, 0
  %v4168 = vsel %vm4085, %v4064, 0
  %v4171 = vsel %vm4085, %v4065, 0
  %v4174 = vsel %vm4085, %v4066, 0
  %v4177 = vsel %vm4085, %v4067, 0
  %v4180 = vsel %vm4085, %v4068, 0
  %v4183 = vsel %vm4085, %v4069, 0
  %v4186 = vsel %vm4085, %v4070, 0
  %v4189 = vsel %vm4085, %v4071, 0
  %v4192 = vsel %vm4085, %v4072, 0
  %v4195 = vsel %vm4085, %v4073, 0
  %v4198 = vsel %vm4085, %v4074, 0
  %v4201 = vsel %vm4085, %v4075, 0
  %v4204 = vsel %vm4085, %v4076, 0
  %v4207 = vsel %vm4085, %v4077, 0
  %v4210 = vsel %vm4085, %v4078, 0
  %v4213 = vsel %vm4085, %v4079, 0
  %v4216 = vsel %vm4085, %v4080, 0
  %v4219 = vsel %vm4085, %v4081, 0
  %v4222 = vsel %vm4085, %v4082, 0
  %v4225 = vsel %vm4085, %v4083, 0
  %v4228 = vsel %vm4085, %v4084, 0
  %v4231 = vsel %vm4085, %v4014, 0
  %v4234 = vsel %vm4085, %v4017, 0
  %v4237 = vsel %vm4085, %v4020, 0
  %v4240 = vsel %vm4085, %v4023, 0
  %v4243 = vsel %vm4085, %v4026, 0
  %v4246 = vsel %vm4085, %v4029, 0
  %v4249 = vsel %vm4085, %v4032, 0
  %v4252 = vsel %vm4085, %v4035, 0
  %4254 = vmatpush.xpose.msra.mxu0 0.0
  %4255 = vmatpush.xpose.msra.mxu0 0.0
  %4256 = vmatpush.xpose.msra.mxu0 0.0
  %4257 = vmatpush.xpose.msra.mxu0 0.0
  %4258 = vmatpush.xpose.msra.mxu0 0.0
  %4259 = vmatpush.xpose.msra.mxu0 0.0
  %4260 = vmatpush.xpose.msra.mxu0 0.0
  %4261 = vmatpush.xpose.msra.mxu0 0.0
  %4262 = vmatpush.xpose.msra.mxu0 %v4252
  %4263 = vmatpush.xpose.msra.mxu0 %v4249
  %4264 = vmatpush.xpose.msra.mxu0 %v4246
  %4265 = vmatpush.xpose.msra.mxu0 %v4243
  %4266 = vmatpush.xpose.msra.mxu0 %v4240
  %4267 = vmatpush.xpose.msra.mxu0 %v4237
  %4268 = vmatpush.xpose.msra.mxu0 %v4234
  %4269 = vmatpush.xpose.msra.mxu0 %v4231
  %4270 = vmatmul.f32.gmra.mxu0 %v4087
  %v4271 = vpop.f32.mrf.mxu0
  %v4272 = vadd.f32 0.0, %v4271
  %4273 = vmatmul.f32.gmra.mxu0 %v4090
  %v4274 = vpop.f32.mrf.mxu0
  %v4275 = vadd.f32 0.0, %v4274
  %4276 = vmatmul.f32.gmra.mxu0 %v4093
  %v4277 = vpop.f32.mrf.mxu0
  %v4278 = vadd.f32 0.0, %v4277
  %4279 = vmatmul.f32.gmra.mxu0 %v4096
  %v4280 = vpop.f32.mrf.mxu0
  %v4281 = vadd.f32 0.0, %v4280
  %4282 = vmatmul.f32.gmra.mxu0 %v4099
  %v4283 = vpop.f32.mrf.mxu0
  %v4284 = vadd.f32 0.0, %v4283
  %4285 = vmatmul.f32.gmra.mxu0 %v4102
  %v4286 = vpop.f32.mrf.mxu0
  %v4287 = vadd.f32 0.0, %v4286
  %4288 = vmatmul.f32.gmra.mxu0 %v4105
  %v4289 = vpop.f32.mrf.mxu0
  %v4290 = vadd.f32 0.0, %v4289
  %4291 = vmatmul.f32.gmra.mxu0 %v4108
  %v4292 = vpop.f32.mrf.mxu0
  %v4293 = vadd.f32 0.0, %v4292
  %4294 = vmatmul.f32.gmra.mxu0 %v4111
  %v4295 = vpop.f32.mrf.mxu0
  %v4296 = vadd.f32 0.0, %v4295
  %4297 = vmatmul.f32.gmra.mxu0 %v4114
  %v4298 = vpop.f32.mrf.mxu0
  %v4299 = vadd.f32 0.0, %v4298
  %4300 = vmatmul.f32.gmra.mxu0 %v4117
  %v4301 = vpop.f32.mrf.mxu0
  %v4302 = vadd.f32 0.0, %v4301
  %4303 = vmatmul.f32.gmra.mxu0 %v4120
  %v4304 = vpop.f32.mrf.mxu0
  %v4305 = vadd.f32 0.0, %v4304
  %4306 = vmatmul.f32.gmra.mxu0 %v4123
  %v4307 = vpop.f32.mrf.mxu0
  %v4308 = vadd.f32 0.0, %v4307
  %4309 = vmatmul.f32.gmra.mxu0 %v4126
  %v4310 = vpop.f32.mrf.mxu0
  %v4311 = vadd.f32 0.0, %v4310
  %4312 = vmatmul.f32.gmra.mxu0 %v4129
  %v4313 = vpop.f32.mrf.mxu0
  %v4314 = vadd.f32 0.0, %v4313
  %4315 = vmatmul.f32.gmra.mxu0 %v4132
  %v4316 = vpop.f32.mrf.mxu0
  %v4317 = vadd.f32 0.0, %v4316
  %4318 = vmatmul.f32.gmra.mxu0 %v4135
  %v4319 = vpop.f32.mrf.mxu0
  %v4320 = vadd.f32 0.0, %v4319
  %4321 = vmatmul.f32.gmra.mxu0 %v4138
  %v4322 = vpop.f32.mrf.mxu0
  %v4323 = vadd.f32 0.0, %v4322
  %4324 = vmatmul.f32.gmra.mxu0 %v4141
  %v4325 = vpop.f32.mrf.mxu0
  %v4326 = vadd.f32 0.0, %v4325
  %4327 = vmatmul.f32.gmra.mxu0 %v4144
  %v4328 = vpop.f32.mrf.mxu0
  %v4329 = vadd.f32 0.0, %v4328
  %4330 = vmatmul.f32.gmra.mxu0 %v4147
  %v4331 = vpop.f32.mrf.mxu0
  %v4332 = vadd.f32 0.0, %v4331
  %4333 = vmatmul.f32.gmra.mxu0 %v4150
  %v4334 = vpop.f32.mrf.mxu0
  %v4335 = vadd.f32 0.0, %v4334
  %4336 = vmatmul.f32.gmra.mxu0 %v4153
  %v4337 = vpop.f32.mrf.mxu0
  %v4338 = vadd.f32 0.0, %v4337
  %4339 = vmatmul.f32.gmra.mxu0 %v4156
  %v4340 = vpop.f32.mrf.mxu0
  %v4341 = vadd.f32 0.0, %v4340
  %4342 = vmatmul.f32.gmra.mxu0 %v4159
  %v4343 = vpop.f32.mrf.mxu0
  %v4344 = vadd.f32 0.0, %v4343
  %4345 = vmatmul.f32.gmra.mxu0 %v4162
  %v4346 = vpop.f32.mrf.mxu0
  %v4347 = vadd.f32 0.0, %v4346
  %4348 = vmatmul.f32.gmra.mxu0 %v4165
  %v4349 = vpop.f32.mrf.mxu0
  %v4350 = vadd.f32 0.0, %v4349
  %4351 = vmatmul.f32.gmra.mxu0 %v4168
  %v4352 = vpop.f32.mrf.mxu0
  %v4353 = vadd.f32 0.0, %v4352
  %4354 = vmatmul.f32.gmra.mxu0 %v4171
  %v4355 = vpop.f32.mrf.mxu0
  %v4356 = vadd.f32 0.0, %v4355
  %4357 = vmatmul.f32.gmra.mxu0 %v4174
  %v4358 = vpop.f32.mrf.mxu0
  %v4359 = vadd.f32 0.0, %v4358
  %4360 = vmatmul.f32.gmra.mxu0 %v4177
  %v4361 = vpop.f32.mrf.mxu0
  %v4362 = vadd.f32 0.0, %v4361
  %4363 = vmatmul.f32.gmra.mxu0 %v4180
  %v4364 = vpop.f32.mrf.mxu0
  %v4365 = vadd.f32 0.0, %v4364
  %4366 = vmatmul.f32.gmra.mxu0 %v4183
  %v4367 = vpop.f32.mrf.mxu0
  %v4368 = vadd.f32 0.0, %v4367
  %4369 = vmatmul.f32.gmra.mxu0 %v4186
  %v4370 = vpop.f32.mrf.mxu0
  %v4371 = vadd.f32 0.0, %v4370
  %4372 = vmatmul.f32.gmra.mxu0 %v4189
  %v4373 = vpop.f32.mrf.mxu0
  %v4374 = vadd.f32 0.0, %v4373
  %4375 = vmatmul.f32.gmra.mxu0 %v4192
  %v4376 = vpop.f32.mrf.mxu0
  %v4377 = vadd.f32 0.0, %v4376
  %4378 = vmatmul.f32.gmra.mxu0 %v4195
  %v4379 = vpop.f32.mrf.mxu0
  %v4380 = vadd.f32 0.0, %v4379
  %4381 = vmatmul.f32.gmra.mxu0 %v4198
  %v4382 = vpop.f32.mrf.mxu0
  %v4383 = vadd.f32 0.0, %v4382
  %4384 = vmatmul.f32.gmra.mxu0 %v4201
  %v4385 = vpop.f32.mrf.mxu0
  %v4386 = vadd.f32 0.0, %v4385
  %4387 = vmatmul.f32.gmra.mxu0 %v4204
  %v4388 = vpop.f32.mrf.mxu0
  %v4389 = vadd.f32 0.0, %v4388
  %4390 = vmatmul.f32.gmra.mxu0 %v4207
  %v4391 = vpop.f32.mrf.mxu0
  %v4392 = vadd.f32 0.0, %v4391
  %4393 = vmatmul.f32.gmra.mxu0 %v4210
  %v4394 = vpop.f32.mrf.mxu0
  %v4395 = vadd.f32 0.0, %v4394
  %4396 = vmatmul.f32.gmra.mxu0 %v4213
  %v4397 = vpop.f32.mrf.mxu0
  %v4398 = vadd.f32 0.0, %v4397
  %4399 = vmatmul.f32.gmra.mxu0 %v4216
  %v4400 = vpop.f32.mrf.mxu0
  %v4401 = vadd.f32 0.0, %v4400
  %4402 = vmatmul.f32.gmra.mxu0 %v4219
  %v4403 = vpop.f32.mrf.mxu0
  %v4404 = vadd.f32 0.0, %v4403
  %4405 = vmatmul.f32.gmra.mxu0 %v4222
  %v4406 = vpop.f32.mrf.mxu0
  %v4407 = vadd.f32 0.0, %v4406
  %4408 = vmatmul.f32.gmra.mxu0 %v4225
  %v4409 = vpop.f32.mrf.mxu0
  %v4410 = vadd.f32 0.0, %v4409
  %4411 = vmatmul.f32.gmra.mxu0 %v4228
  %v4412 = vpop.f32.mrf.mxu0
  %v4413 = vadd.f32 0.0, %v4412
  %4414 = vdwg.mxu0
  %v4415 = vld [vmem:[%s14] sm:$0xff]
  %v4416 = vld [vmem:[%s14 + $0x8] sm:$0xff]
  %v4417 = vld [vmem:[%s14 + $0x10] sm:$0xff]
  %v4418 = vld [vmem:[%s14 + $0x18] sm:$0xff]
  %v4419 = vld [vmem:[%s14 + $0x20] sm:$0xff]
  %v4420 = vld [vmem:[%s14 + $0x28] sm:$0xff]
  %v4421 = vld [vmem:[%s14 + $0x30] sm:$0xff]
  %v4422 = vld [vmem:[%s14 + $0x38] sm:$0xff]
  %v4423 = vld [vmem:[%s14 + $0x40] sm:$0xff]
  %v4424 = vld [vmem:[%s14 + $0x48] sm:$0xff]
  %v4425 = vld [vmem:[%s14 + $0x50] sm:$0xff]
  %v4426 = vld [vmem:[%s14 + $0x58] sm:$0xff]
  %v4427 = vld [vmem:[%s14 + $0x60] sm:$0xff]
  %v4428 = vld [vmem:[%s14 + $0x68] sm:$0xff]
  %v4429 = vld [vmem:[%s14 + $0x70] sm:$0xff]
  %v4430 = vld [vmem:[%s14 + $0x78] sm:$0xff]
  %v4431 = vld [vmem:[%s14 + $0x80] sm:$0xff]
  %v4432 = vld [vmem:[%s14 + $0x88] sm:$0xff]
  %v4433 = vld [vmem:[%s14 + $0x90] sm:$0xff]
  %v4434 = vld [vmem:[%s14 + $0x98] sm:$0xff]
  %v4435 = vld [vmem:[%s14 + $0xa0] sm:$0xff]
  %v4436 = vld [vmem:[%s14 + $0xa8] sm:$0xff]
  %v4437 = vld [vmem:[%s14 + $0xb0] sm:$0xff]
  %v4438 = vld [vmem:[%s14 + $0xb8] sm:$0xff]
  %v4439 = vld [vmem:[%s14 + $0xc0] sm:$0xff]
  %v4440 = vld [vmem:[%s14 + $0xc8] sm:$0xff]
  %v4441 = vld [vmem:[%s14 + $0xd0] sm:$0xff]
  %v4442 = vld [vmem:[%s14 + $0xd8] sm:$0xff]
  %v4443 = vld [vmem:[%s14 + $0xe0] sm:$0xff]
  %v4444 = vld [vmem:[%s14 + $0xe8] sm:$0xff]
  %v4445 = vld [vmem:[%s14 + $0xf0] sm:$0xff]
  %v4446 = vld [vmem:[%s14 + $0xf8] sm:$0xff]
  %v4447 = vld [vmem:[%s14 + $0x100] sm:$0xff]
  %v4448 = vld [vmem:[%s14 + $0x108] sm:$0xff]
  %v4449 = vld [vmem:[%s14 + $0x110] sm:$0xff]
  %v4450 = vld [vmem:[%s14 + $0x118] sm:$0xff]
  %v4451 = vld [vmem:[%s14 + $0x120] sm:$0xff]
  %v4452 = vld [vmem:[%s14 + $0x128] sm:$0xff]
  %v4453 = vld [vmem:[%s14 + $0x130] sm:$0xff]
  %v4454 = vld [vmem:[%s14 + $0x138] sm:$0xff]
  %v4455 = vld [vmem:[%s14 + $0x140] sm:$0xff]
  %v4456 = vld [vmem:[%s14 + $0x148] sm:$0xff]
  %v4457 = vld [vmem:[%s14 + $0x150] sm:$0xff]
  %v4458 = vld [vmem:[%s14 + $0x158] sm:$0xff]
  %v4459 = vld [vmem:[%s14 + $0x160] sm:$0xff]
  %v4460 = vld [vmem:[%s14 + $0x168] sm:$0xff]
  %v4461 = vld [vmem:[%s14 + $0x170] sm:$0xff]
  %v4462 = vld [vmem:[%s14 + $0x178] sm:$0xff]
  %v4463 = vmul.f32 %v4014, %v4415
  %v4464 = vmul.f32 %v4017, %v4416
  %v4465 = vmul.f32 %v4020, %v4417
  %v4466 = vmul.f32 %v4023, %v4418
  %v4467 = vmul.f32 %v4026, %v4419
  %v4468 = vmul.f32 %v4029, %v4420
  %v4469 = vmul.f32 %v4032, %v4421
  %v4470 = vmul.f32 %v4035, %v4422
  %v4471 = vmul.f32 %v4014, %v4423
  %v4472 = vmul.f32 %v4017, %v4424
  %v4473 = vmul.f32 %v4020, %v4425
  %v4474 = vmul.f32 %v4023, %v4426
  %v4475 = vmul.f32 %v4026, %v4427
  %v4476 = vmul.f32 %v4029, %v4428
  %v4477 = vmul.f32 %v4032, %v4429
  %v4478 = vmul.f32 %v4035, %v4430
  %v4479 = vmul.f32 %v4014, %v4431
  %v4480 = vmul.f32 %v4017, %v4432
  %v4481 = vmul.f32 %v4020, %v4433
  %v4482 = vmul.f32 %v4023, %v4434
  %v4483 = vmul.f32 %v4026, %v4435
  %v4484 = vmul.f32 %v4029, %v4436
  %v4485 = vmul.f32 %v4032, %v4437
  %v4486 = vmul.f32 %v4035, %v4438
  %v4487 = vmul.f32 %v4014, %v4439
  %v4488 = vmul.f32 %v4017, %v4440
  %v4489 = vmul.f32 %v4020, %v4441
  %v4490 = vmul.f32 %v4023, %v4442
  %v4491 = vmul.f32 %v4026, %v4443
  %v4492 = vmul.f32 %v4029, %v4444
  %v4493 = vmul.f32 %v4032, %v4445
  %v4494 = vmul.f32 %v4035, %v4446
  %v4495 = vmul.f32 %v4014, %v4447
  %v4496 = vmul.f32 %v4017, %v4448
  %v4497 = vmul.f32 %v4020, %v4449
  %v4498 = vmul.f32 %v4023, %v4450
  %v4499 = vmul.f32 %v4026, %v4451
  %v4500 = vmul.f32 %v4029, %v4452
  %v4501 = vmul.f32 %v4032, %v4453
  %v4502 = vmul.f32 %v4035, %v4454
  %v4503 = vmul.f32 %v4014, %v4455
  %v4504 = vmul.f32 %v4017, %v4456
  %v4505 = vmul.f32 %v4020, %v4457
  %v4506 = vmul.f32 %v4023, %v4458
  %v4507 = vmul.f32 %v4026, %v4459
  %v4508 = vmul.f32 %v4029, %v4460
  %v4509 = vmul.f32 %v4032, %v4461
  %v4510 = vmul.f32 %v4035, %v4462
  %v4511 = vsel %vm4085, %v4463, 0.0
  %4512 = vadd.xlane.f32.xlu0 %v4511
  %v4513 = vpop.xlane.xlu0 %4512
  %v4514 = vsel %vm4085, %v4464, 0.0
  %4515 = vadd.xlane.f32.xlu0 %v4514
  %v4516 = vpop.xlane.xlu0 %4515
  %v4517 = vsel %vm4085, %v4465, 0.0
  %4518 = vadd.xlane.f32.xlu0 %v4517
  %v4519 = vpop.xlane.xlu0 %4518
  %v4520 = vsel %vm4085, %v4466, 0.0
  %4521 = vadd.xlane.f32.xlu0 %v4520
  %v4522 = vpop.xlane.xlu0 %4521
  %v4523 = vsel %vm4085, %v4467, 0.0
  %4524 = vadd.xlane.f32.xlu0 %v4523
  %v4525 = vpop.xlane.xlu0 %4524
  %v4526 = vsel %vm4085, %v4468, 0.0
  %4527 = vadd.xlane.f32.xlu0 %v4526
  %v4528 = vpop.xlane.xlu0 %4527
  %v4529 = vsel %vm4085, %v4469, 0.0
  %4530 = vadd.xlane.f32.xlu0 %v4529
  %v4531 = vpop.xlane.xlu0 %4530
  %v4532 = vsel %vm4085, %v4470, 0.0
  %4533 = vadd.xlane.f32.xlu0 %v4532
  %v4534 = vpop.xlane.xlu0 %4533
  %v4535 = vsel %vm4085, %v4471, 0.0
  %4536 = vadd.xlane.f32.xlu0 %v4535
  %v4537 = vpop.xlane.xlu0 %4536
  %v4538 = vsel %vm4085, %v4472, 0.0
  %4539 = vadd.xlane.f32.xlu0 %v4538
  %v4540 = vpop.xlane.xlu0 %4539
  %v4541 = vsel %vm4085, %v4473, 0.0
  %4542 = vadd.xlane.f32.xlu0 %v4541
  %v4543 = vpop.xlane.xlu0 %4542
  %v4544 = vsel %vm4085, %v4474, 0.0
  %4545 = vadd.xlane.f32.xlu0 %v4544
  %v4546 = vpop.xlane.xlu0 %4545
  %v4547 = vsel %vm4085, %v4475, 0.0
  %4548 = vadd.xlane.f32.xlu0 %v4547
  %v4549 = vpop.xlane.xlu0 %4548
  %v4550 = vsel %vm4085, %v4476, 0.0
  %4551 = vadd.xlane.f32.xlu0 %v4550
  %v4552 = vpop.xlane.xlu0 %4551
  %v4553 = vsel %vm4085, %v4477, 0.0
  %4554 = vadd.xlane.f32.xlu0 %v4553
  %v4555 = vpop.xlane.xlu0 %4554
  %v4556 = vsel %vm4085, %v4478, 0.0
  %4557 = vadd.xlane.f32.xlu0 %v4556
  %v4558 = vpop.xlane.xlu0 %4557
  %v4559 = vsel %vm4085, %v4479, 0.0
  %4560 = vadd.xlane.f32.xlu0 %v4559
  %v4561 = vpop.xlane.xlu0 %4560
  %v4562 = vsel %vm4085, %v4480, 0.0
  %4563 = vadd.xlane.f32.xlu0 %v4562
  %v4564 = vpop.xlane.xlu0 %4563
  %v4565 = vsel %vm4085, %v4481, 0.0
  %4566 = vadd.xlane.f32.xlu0 %v4565
  %v4567 = vpop.xlane.xlu0 %4566
  %v4568 = vsel %vm4085, %v4482, 0.0
  %4569 = vadd.xlane.f32.xlu0 %v4568
  %v4570 = vpop.xlane.xlu0 %4569
  %v4571 = vsel %vm4085, %v4483, 0.0
  %4572 = vadd.xlane.f32.xlu0 %v4571
  %v4573 = vpop.xlane.xlu0 %4572
  %v4574 = vsel %vm4085, %v4484, 0.0
  %4575 = vadd.xlane.f32.xlu0 %v4574
  %v4576 = vpop.xlane.xlu0 %4575
  %v4577 = vsel %vm4085, %v4485, 0.0
  %4578 = vadd.xlane.f32.xlu0 %v4577
  %v4579 = vpop.xlane.xlu0 %4578
  %v4580 = vsel %vm4085, %v4486, 0.0
  %4581 = vadd.xlane.f32.xlu0 %v4580
  %v4582 = vpop.xlane.xlu0 %4581
  %v4583 = vsel %vm4085, %v4487, 0.0
  %4584 = vadd.xlane.f32.xlu0 %v4583
  %v4585 = vpop.xlane.xlu0 %4584
  %v4586 = vsel %vm4085, %v4488, 0.0
  %4587 = vadd.xlane.f32.xlu0 %v4586
  %v4588 = vpop.xlane.xlu0 %4587
  %v4589 = vsel %vm4085, %v4489, 0.0
  %4590 = vadd.xlane.f32.xlu0 %v4589
  %v4591 = vpop.xlane.xlu0 %4590
  %v4592 = vsel %vm4085, %v4490, 0.0
  %4593 = vadd.xlane.f32.xlu0 %v4592
  %v4594 = vpop.xlane.xlu0 %4593
  %v4595 = vsel %vm4085, %v4491, 0.0
  %4596 = vadd.xlane.f32.xlu0 %v4595
  %v4597 = vpop.xlane.xlu0 %4596
  %v4598 = vsel %vm4085, %v4492, 0.0
  %4599 = vadd.xlane.f32.xlu0 %v4598
  %v4600 = vpop.xlane.xlu0 %4599
  %v4601 = vsel %vm4085, %v4493, 0.0
  %4602 = vadd.xlane.f32.xlu0 %v4601
  %v4603 = vpop.xlane.xlu0 %4602
  %v4604 = vsel %vm4085, %v4494, 0.0
  %4605 = vadd.xlane.f32.xlu0 %v4604
  %v4606 = vpop.xlane.xlu0 %4605
  %v4607 = vsel %vm4085, %v4495, 0.0
  %4608 = vadd.xlane.f32.xlu0 %v4607
  %v4609 = vpop.xlane.xlu0 %4608
  %v4610 = vsel %vm4085, %v4496, 0.0
  %4611 = vadd.xlane.f32.xlu0 %v4610
  %v4612 = vpop.xlane.xlu0 %4611
  %v4613 = vsel %vm4085, %v4497, 0.0
  %4614 = vadd.xlane.f32.xlu0 %v4613
  %v4615 = vpop.xlane.xlu0 %4614
  %v4616 = vsel %vm4085, %v4498, 0.0
  %4617 = vadd.xlane.f32.xlu0 %v4616
  %v4618 = vpop.xlane.xlu0 %4617
  %v4619 = vsel %vm4085, %v4499, 0.0
  %4620 = vadd.xlane.f32.xlu0 %v4619
  %v4621 = vpop.xlane.xlu0 %4620
  %v4622 = vsel %vm4085, %v4500, 0.0
  %4623 = vadd.xlane.f32.xlu0 %v4622
  %v4624 = vpop.xlane.xlu0 %4623
  %v4625 = vsel %vm4085, %v4501, 0.0
  %4626 = vadd.xlane.f32.xlu0 %v4625
  %v4627 = vpop.xlane.xlu0 %4626
  %v4628 = vsel %vm4085, %v4502, 0.0
  %4629 = vadd.xlane.f32.xlu0 %v4628
  %v4630 = vpop.xlane.xlu0 %4629
  %v4631 = vsel %vm4085, %v4503, 0.0
  %4632 = vadd.xlane.f32.xlu0 %v4631
  %v4633 = vpop.xlane.xlu0 %4632
  %v4634 = vsel %vm4085, %v4504, 0.0
  %4635 = vadd.xlane.f32.xlu0 %v4634
  %v4636 = vpop.xlane.xlu0 %4635
  %v4637 = vsel %vm4085, %v4505, 0.0
  %4638 = vadd.xlane.f32.xlu0 %v4637
  %v4639 = vpop.xlane.xlu0 %4638
  %v4640 = vsel %vm4085, %v4506, 0.0
  %4641 = vadd.xlane.f32.xlu0 %v4640
  %v4642 = vpop.xlane.xlu0 %4641
  %v4643 = vsel %vm4085, %v4507, 0.0
  %4644 = vadd.xlane.f32.xlu0 %v4643
  %v4645 = vpop.xlane.xlu0 %4644
  %v4646 = vsel %vm4085, %v4508, 0.0
  %4647 = vadd.xlane.f32.xlu0 %v4646
  %v4648 = vpop.xlane.xlu0 %4647
  %v4649 = vsel %vm4085, %v4509, 0.0
  %4650 = vadd.xlane.f32.xlu0 %v4649
  %v4651 = vpop.xlane.xlu0 %4650
  %v4652 = vsel %vm4085, %v4510, 0.0
  %4653 = vadd.xlane.f32.xlu0 %v4652
  %v4654 = vpop.xlane.xlu0 %4653
  %v4655 = vadd.f32 %v4513, %v4272
  %v4656 = vadd.f32 %v4516, %v4275
  %v4657 = vadd.f32 %v4519, %v4278
  %v4658 = vadd.f32 %v4522, %v4281
  %v4659 = vadd.f32 %v4525, %v4284
  %v4660 = vadd.f32 %v4528, %v4287
  %v4661 = vadd.f32 %v4531, %v4290
  %v4662 = vadd.f32 %v4534, %v4293
  %v4663 = vadd.f32 %v4537, %v4296
  %v4664 = vadd.f32 %v4540, %v4299
  %v4665 = vadd.f32 %v4543, %v4302
  %v4666 = vadd.f32 %v4546, %v4305
  %v4667 = vadd.f32 %v4549, %v4308
  %v4668 = vadd.f32 %v4552, %v4311
  %v4669 = vadd.f32 %v4555, %v4314
  %v4670 = vadd.f32 %v4558, %v4317
  %v4671 = vadd.f32 %v4561, %v4320
  %v4672 = vadd.f32 %v4564, %v4323
  %v4673 = vadd.f32 %v4567, %v4326
  %v4674 = vadd.f32 %v4570, %v4329
  %v4675 = vadd.f32 %v4573, %v4332
  %v4676 = vadd.f32 %v4576, %v4335
  %v4677 = vadd.f32 %v4579, %v4338
  %v4678 = vadd.f32 %v4582, %v4341
  %v4679 = vadd.f32 %v4585, %v4344
  %v4680 = vadd.f32 %v4588, %v4347
  %v4681 = vadd.f32 %v4591, %v4350
  %v4682 = vadd.f32 %v4594, %v4353
  %v4683 = vadd.f32 %v4597, %v4356
  %v4684 = vadd.f32 %v4600, %v4359
  %v4685 = vadd.f32 %v4603, %v4362
  %v4686 = vadd.f32 %v4606, %v4365
  %v4687 = vadd.f32 %v4609, %v4368
  %v4688 = vadd.f32 %v4612, %v4371
  %v4689 = vadd.f32 %v4615, %v4374
  %v4690 = vadd.f32 %v4618, %v4377
  %v4691 = vadd.f32 %v4621, %v4380
  %v4692 = vadd.f32 %v4624, %v4383
  %v4693 = vadd.f32 %v4627, %v4386
  %v4694 = vadd.f32 %v4630, %v4389
  %v4695 = vadd.f32 %v4633, %v4392
  %v4696 = vadd.f32 %v4636, %v4395
  %v4697 = vadd.f32 %v4639, %v4398
  %v4698 = vadd.f32 %v4642, %v4401
  %v4699 = vadd.f32 %v4645, %v4404
  %v4700 = vadd.f32 %v4648, %v4407
  %v4701 = vadd.f32 %v4651, %v4410
  %v4702 = vadd.f32 %v4654, %v4413
  %vm4703 = vcmp.gt.f32.partialorder %v4655, 0.0
  %vm4704 = vcmp.gt.f32.partialorder %v4656, 0.0
  %vm4705 = vcmp.gt.f32.partialorder %v4657, 0.0
  %vm4706 = vcmp.gt.f32.partialorder %v4658, 0.0
  %vm4707 = vcmp.gt.f32.partialorder %v4659, 0.0
  %vm4708 = vcmp.gt.f32.partialorder %v4660, 0.0
  %vm4709 = vcmp.gt.f32.partialorder %v4661, 0.0
  %vm4710 = vcmp.gt.f32.partialorder %v4662, 0.0
  %vm4711 = vcmp.gt.f32.partialorder %v4663, 0.0
  %vm4712 = vcmp.gt.f32.partialorder %v4664, 0.0
  %vm4713 = vcmp.gt.f32.partialorder %v4665, 0.0
  %vm4714 = vcmp.gt.f32.partialorder %v4666, 0.0
  %vm4715 = vcmp.gt.f32.partialorder %v4667, 0.0
  %vm4716 = vcmp.gt.f32.partialorder %v4668, 0.0
  %vm4717 = vcmp.gt.f32.partialorder %v4669, 0.0
  %vm4718 = vcmp.gt.f32.partialorder %v4670, 0.0
  %vm4719 = vcmp.gt.f32.partialorder %v4671, 0.0
  %vm4720 = vcmp.gt.f32.partialorder %v4672, 0.0
  %vm4721 = vcmp.gt.f32.partialorder %v4673, 0.0
  %vm4722 = vcmp.gt.f32.partialorder %v4674, 0.0
  %vm4723 = vcmp.gt.f32.partialorder %v4675, 0.0
  %vm4724 = vcmp.gt.f32.partialorder %v4676, 0.0
  %vm4725 = vcmp.gt.f32.partialorder %v4677, 0.0
  %vm4726 = vcmp.gt.f32.partialorder %v4678, 0.0
  %vm4727 = vcmp.gt.f32.partialorder %v4679, 0.0
  %vm4728 = vcmp.gt.f32.partialorder %v4680, 0.0
  %vm4729 = vcmp.gt.f32.partialorder %v4681, 0.0
  %vm4730 = vcmp.gt.f32.partialorder %v4682, 0.0
  %vm4731 = vcmp.gt.f32.partialorder %v4683, 0.0
  %vm4732 = vcmp.gt.f32.partialorder %v4684, 0.0
  %vm4733 = vcmp.gt.f32.partialorder %v4685, 0.0
  %vm4734 = vcmp.gt.f32.partialorder %v4686, 0.0
  %vm4735 = vcmp.gt.f32.partialorder %v4687, 0.0
  %vm4736 = vcmp.gt.f32.partialorder %v4688, 0.0
  %vm4737 = vcmp.gt.f32.partialorder %v4689, 0.0
  %vm4738 = vcmp.gt.f32.partialorder %v4690, 0.0
  %vm4739 = vcmp.gt.f32.partialorder %v4691, 0.0
  %vm4740 = vcmp.gt.f32.partialorder %v4692, 0.0
  %vm4741 = vcmp.gt.f32.partialorder %v4693, 0.0
  %vm4742 = vcmp.gt.f32.partialorder %v4694, 0.0
  %vm4743 = vcmp.gt.f32.partialorder %v4695, 0.0
  %vm4744 = vcmp.gt.f32.partialorder %v4696, 0.0
  %vm4745 = vcmp.gt.f32.partialorder %v4697, 0.0
  %vm4746 = vcmp.gt.f32.partialorder %v4698, 0.0
  %vm4747 = vcmp.gt.f32.partialorder %v4699, 0.0
  %vm4748 = vcmp.gt.f32.partialorder %v4700, 0.0
  %vm4749 = vcmp.gt.f32.partialorder %v4701, 0.0
  %vm4750 = vcmp.gt.f32.partialorder %v4702, 0.0
  %v4751 = vmul.f32 %v4655, 0.2
  %v4752 = vmul.f32 %v4656, 0.2
  %v4753 = vmul.f32 %v4657, 0.2
  %v4754 = vmul.f32 %v4658, 0.2
  %v4755 = vmul.f32 %v4659, 0.2
  %v4756 = vmul.f32 %v4660, 0.2
  %v4757 = vmul.f32 %v4661, 0.2
  %v4758 = vmul.f32 %v4662, 0.2
  %v4759 = vmul.f32 %v4663, 0.2
  %v4760 = vmul.f32 %v4664, 0.2
  %v4761 = vmul.f32 %v4665, 0.2
  %v4762 = vmul.f32 %v4666, 0.2
  %v4763 = vmul.f32 %v4667, 0.2
  %v4764 = vmul.f32 %v4668, 0.2
  %v4765 = vmul.f32 %v4669, 0.2
  %v4766 = vmul.f32 %v4670, 0.2
  %v4767 = vmul.f32 %v4671, 0.2
  %v4768 = vmul.f32 %v4672, 0.2
  %v4769 = vmul.f32 %v4673, 0.2
  %v4770 = vmul.f32 %v4674, 0.2
  %v4771 = vmul.f32 %v4675, 0.2
  %v4772 = vmul.f32 %v4676, 0.2
  %v4773 = vmul.f32 %v4677, 0.2
  %v4774 = vmul.f32 %v4678, 0.2
  %v4775 = vmul.f32 %v4679, 0.2
  %v4776 = vmul.f32 %v4680, 0.2
  %v4777 = vmul.f32 %v4681, 0.2
  %v4778 = vmul.f32 %v4682, 0.2
  %v4779 = vmul.f32 %v4683, 0.2
  %v4780 = vmul.f32 %v4684, 0.2
  %v4781 = vmul.f32 %v4685, 0.2
  %v4782 = vmul.f32 %v4686, 0.2
  %v4783 = vmul.f32 %v4687, 0.2
  %v4784 = vmul.f32 %v4688, 0.2
  %v4785 = vmul.f32 %v4689, 0.2
  %v4786 = vmul.f32 %v4690, 0.2
  %v4787 = vmul.f32 %v4691, 0.2
  %v4788 = vmul.f32 %v4692, 0.2
  %v4789 = vmul.f32 %v4693, 0.2
  %v4790 = vmul.f32 %v4694, 0.2
  %v4791 = vmul.f32 %v4695, 0.2
  %v4792 = vmul.f32 %v4696, 0.2
  %v4793 = vmul.f32 %v4697, 0.2
  %v4794 = vmul.f32 %v4698, 0.2
  %v4795 = vmul.f32 %v4699, 0.2
  %v4796 = vmul.f32 %v4700, 0.2
  %v4797 = vmul.f32 %v4701, 0.2
  %v4798 = vmul.f32 %v4702, 0.2
  %v4799 = vsel %vm4703, %v4655, %v4751
  %v4800 = vsel %vm4704, %v4656, %v4752
  %v4801 = vsel %vm4705, %v4657, %v4753
  %v4802 = vsel %vm4706, %v4658, %v4754
  %v4803 = vsel %vm4707, %v4659, %v4755
  %v4804 = vsel %vm4708, %v4660, %v4756
  %v4805 = vsel %vm4709, %v4661, %v4757
  %v4806 = vsel %vm4710, %v4662, %v4758
  %v4807 = vsel %vm4711, %v4663, %v4759
  %v4808 = vsel %vm4712, %v4664, %v4760
  %v4809 = vsel %vm4713, %v4665, %v4761
  %v4810 = vsel %vm4714, %v4666, %v4762
  %v4811 = vsel %vm4715, %v4667, %v4763
  %v4812 = vsel %vm4716, %v4668, %v4764
  %v4813 = vsel %vm4717, %v4669, %v4765
  %v4814 = vsel %vm4718, %v4670, %v4766
  %v4815 = vsel %vm4719, %v4671, %v4767
  %v4816 = vsel %vm4720, %v4672, %v4768
  %v4817 = vsel %vm4721, %v4673, %v4769
  %v4818 = vsel %vm4722, %v4674, %v4770
  %v4819 = vsel %vm4723, %v4675, %v4771
  %v4820 = vsel %vm4724, %v4676, %v4772
  %v4821 = vsel %vm4725, %v4677, %v4773
  %v4822 = vsel %vm4726, %v4678, %v4774
  %v4823 = vsel %vm4727, %v4679, %v4775
  %v4824 = vsel %vm4728, %v4680, %v4776
  %v4825 = vsel %vm4729, %v4681, %v4777
  %v4826 = vsel %vm4730, %v4682, %v4778
  %v4827 = vsel %vm4731, %v4683, %v4779
  %v4828 = vsel %vm4732, %v4684, %v4780
  %v4829 = vsel %vm4733, %v4685, %v4781
  %v4830 = vsel %vm4734, %v4686, %v4782
  %v4831 = vsel %vm4735, %v4687, %v4783
  %v4832 = vsel %vm4736, %v4688, %v4784
  %v4833 = vsel %vm4737, %v4689, %v4785
  %v4834 = vsel %vm4738, %v4690, %v4786
  %v4835 = vsel %vm4739, %v4691, %v4787
  %v4836 = vsel %vm4740, %v4692, %v4788
  %v4837 = vsel %vm4741, %v4693, %v4789
  %v4838 = vsel %vm4742, %v4694, %v4790
  %v4839 = vsel %vm4743, %v4695, %v4791
  %v4840 = vsel %vm4744, %v4696, %v4792
  %v4841 = vsel %vm4745, %v4697, %v4793
  %v4842 = vsel %vm4746, %v4698, %v4794
  %v4843 = vsel %vm4747, %v4699, %v4795
  %v4844 = vsel %vm4748, %v4700, %v4796
  %v4845 = vsel %vm4749, %v4701, %v4797
  %v4846 = vsel %vm4750, %v4702, %v4798
  %v4847 = vadd.f32 %v4799, %v73
  %v4848 = vadd.f32 %v4800, %v74
  %v4849 = vadd.f32 %v4801, %v75
  %v4850 = vadd.f32 %v4802, %v76
  %v4851 = vadd.f32 %v4803, %v77
  %v4852 = vadd.f32 %v4804, %v78
  %v4853 = vadd.f32 %v4805, %v79
  %v4854 = vadd.f32 %v4806, %v80
  %v4855 = vadd.f32 %v4807, %v73
  %v4856 = vadd.f32 %v4808, %v74
  %v4857 = vadd.f32 %v4809, %v75
  %v4858 = vadd.f32 %v4810, %v76
  %v4859 = vadd.f32 %v4811, %v77
  %v4860 = vadd.f32 %v4812, %v78
  %v4861 = vadd.f32 %v4813, %v79
  %v4862 = vadd.f32 %v4814, %v80
  %v4863 = vadd.f32 %v4815, %v73
  %v4864 = vadd.f32 %v4816, %v74
  %v4865 = vadd.f32 %v4817, %v75
  %v4866 = vadd.f32 %v4818, %v76
  %v4867 = vadd.f32 %v4819, %v77
  %v4868 = vadd.f32 %v4820, %v78
  %v4869 = vadd.f32 %v4821, %v79
  %v4870 = vadd.f32 %v4822, %v80
  %v4871 = vadd.f32 %v4823, %v73
  %v4872 = vadd.f32 %v4824, %v74
  %v4873 = vadd.f32 %v4825, %v75
  %v4874 = vadd.f32 %v4826, %v76
  %v4875 = vadd.f32 %v4827, %v77
  %v4876 = vadd.f32 %v4828, %v78
  %v4877 = vadd.f32 %v4829, %v79
  %v4878 = vadd.f32 %v4830, %v80
  %v4879 = vadd.f32 %v4831, %v73
  %v4880 = vadd.f32 %v4832, %v74
  %v4881 = vadd.f32 %v4833, %v75
  %v4882 = vadd.f32 %v4834, %v76
  %v4883 = vadd.f32 %v4835, %v77
  %v4884 = vadd.f32 %v4836, %v78
  %v4885 = vadd.f32 %v4837, %v79
  %v4886 = vadd.f32 %v4838, %v80
  %v4887 = vadd.f32 %v4839, %v73
  %v4888 = vadd.f32 %v4840, %v74
  %v4889 = vadd.f32 %v4841, %v75
  %v4890 = vadd.f32 %v4842, %v76
  %v4891 = vadd.f32 %v4843, %v77
  %v4892 = vadd.f32 %v4844, %v78
  %v4893 = vadd.f32 %v4845, %v79
  %v4894 = vadd.f32 %v4846, %v80
  %v4895 = vsel %vm1150, %v4847, -inf
  %4896 = vmax.xlane.f32.xlu0 %v4895
  %v4897 = vpop.xlane.xlu0 %4896
  %v4898 = vsel %vm1150, %v4848, -inf
  %4899 = vmax.xlane.f32.xlu0 %v4898
  %v4900 = vpop.xlane.xlu0 %4899
  %v4901 = vsel %vm1150, %v4849, -inf
  %4902 = vmax.xlane.f32.xlu0 %v4901
  %v4903 = vpop.xlane.xlu0 %4902
  %v4904 = vsel %vm1150, %v4850, -inf
  %4905 = vmax.xlane.f32.xlu0 %v4904
  %v4906 = vpop.xlane.xlu0 %4905
  %v4907 = vsel %vm1150, %v4851, -inf
  %4908 = vmax.xlane.f32.xlu0 %v4907
  %v4909 = vpop.xlane.xlu0 %4908
  %v4910 = vsel %vm1150, %v4852, -inf
  %4911 = vmax.xlane.f32.xlu0 %v4910
  %v4912 = vpop.xlane.xlu0 %4911
  %v4913 = vsel %vm1150, %v4853, -inf
  %4914 = vmax.xlane.f32.xlu0 %v4913
  %v4915 = vpop.xlane.xlu0 %4914
  %v4916 = vsel %vm1150, %v4854, -inf
  %4917 = vmax.xlane.f32.xlu0 %v4916
  %v4918 = vpop.xlane.xlu0 %4917
  %v4919 = vsel %vm1150, %v4855, -inf
  %4920 = vmax.xlane.f32.xlu0 %v4919
  %v4921 = vpop.xlane.xlu0 %4920
  %v4922 = vsel %vm1150, %v4856, -inf
  %4923 = vmax.xlane.f32.xlu0 %v4922
  %v4924 = vpop.xlane.xlu0 %4923
  %v4925 = vsel %vm1150, %v4857, -inf
  %4926 = vmax.xlane.f32.xlu0 %v4925
  %v4927 = vpop.xlane.xlu0 %4926
  %v4928 = vsel %vm1150, %v4858, -inf
  %4929 = vmax.xlane.f32.xlu0 %v4928
  %v4930 = vpop.xlane.xlu0 %4929
  %v4931 = vsel %vm1150, %v4859, -inf
  %4932 = vmax.xlane.f32.xlu0 %v4931
  %v4933 = vpop.xlane.xlu0 %4932
  %v4934 = vsel %vm1150, %v4860, -inf
  %4935 = vmax.xlane.f32.xlu0 %v4934
  %v4936 = vpop.xlane.xlu0 %4935
  %v4937 = vsel %vm1150, %v4861, -inf
  %4938 = vmax.xlane.f32.xlu0 %v4937
  %v4939 = vpop.xlane.xlu0 %4938
  %v4940 = vsel %vm1150, %v4862, -inf
  %4941 = vmax.xlane.f32.xlu0 %v4940
  %v4942 = vpop.xlane.xlu0 %4941
  %v4943 = vsel %vm1150, %v4863, -inf
  %4944 = vmax.xlane.f32.xlu0 %v4943
  %v4945 = vpop.xlane.xlu0 %4944
  %v4946 = vsel %vm1150, %v4864, -inf
  %4947 = vmax.xlane.f32.xlu0 %v4946
  %v4948 = vpop.xlane.xlu0 %4947
  %v4949 = vsel %vm1150, %v4865, -inf
  %4950 = vmax.xlane.f32.xlu0 %v4949
  %v4951 = vpop.xlane.xlu0 %4950
  %v4952 = vsel %vm1150, %v4866, -inf
  %4953 = vmax.xlane.f32.xlu0 %v4952
  %v4954 = vpop.xlane.xlu0 %4953
  %v4955 = vsel %vm1150, %v4867, -inf
  %4956 = vmax.xlane.f32.xlu0 %v4955
  %v4957 = vpop.xlane.xlu0 %4956
  %v4958 = vsel %vm1150, %v4868, -inf
  %4959 = vmax.xlane.f32.xlu0 %v4958
  %v4960 = vpop.xlane.xlu0 %4959
  %v4961 = vsel %vm1150, %v4869, -inf
  %4962 = vmax.xlane.f32.xlu0 %v4961
  %v4963 = vpop.xlane.xlu0 %4962
  %v4964 = vsel %vm1150, %v4870, -inf
  %4965 = vmax.xlane.f32.xlu0 %v4964
  %v4966 = vpop.xlane.xlu0 %4965
  %v4967 = vsel %vm1150, %v4871, -inf
  %4968 = vmax.xlane.f32.xlu0 %v4967
  %v4969 = vpop.xlane.xlu0 %4968
  %v4970 = vsel %vm1150, %v4872, -inf
  %4971 = vmax.xlane.f32.xlu0 %v4970
  %v4972 = vpop.xlane.xlu0 %4971
  %v4973 = vsel %vm1150, %v4873, -inf
  %4974 = vmax.xlane.f32.xlu0 %v4973
  %v4975 = vpop.xlane.xlu0 %4974
  %v4976 = vsel %vm1150, %v4874, -inf
  %4977 = vmax.xlane.f32.xlu0 %v4976
  %v4978 = vpop.xlane.xlu0 %4977
  %v4979 = vsel %vm1150, %v4875, -inf
  %4980 = vmax.xlane.f32.xlu0 %v4979
  %v4981 = vpop.xlane.xlu0 %4980
  %v4982 = vsel %vm1150, %v4876, -inf
  %4983 = vmax.xlane.f32.xlu0 %v4982
  %v4984 = vpop.xlane.xlu0 %4983
  %v4985 = vsel %vm1150, %v4877, -inf
  %4986 = vmax.xlane.f32.xlu0 %v4985
  %v4987 = vpop.xlane.xlu0 %4986
  %v4988 = vsel %vm1150, %v4878, -inf
  %4989 = vmax.xlane.f32.xlu0 %v4988
  %v4990 = vpop.xlane.xlu0 %4989
  %v4991 = vsel %vm1150, %v4879, -inf
  %4992 = vmax.xlane.f32.xlu0 %v4991
  %v4993 = vpop.xlane.xlu0 %4992
  %v4994 = vsel %vm1150, %v4880, -inf
  %4995 = vmax.xlane.f32.xlu0 %v4994
  %v4996 = vpop.xlane.xlu0 %4995
  %v4997 = vsel %vm1150, %v4881, -inf
  %4998 = vmax.xlane.f32.xlu0 %v4997
  %v4999 = vpop.xlane.xlu0 %4998
  %v5000 = vsel %vm1150, %v4882, -inf
  %5001 = vmax.xlane.f32.xlu0 %v5000
  %v5002 = vpop.xlane.xlu0 %5001
  %v5003 = vsel %vm1150, %v4883, -inf
  %5004 = vmax.xlane.f32.xlu0 %v5003
  %v5005 = vpop.xlane.xlu0 %5004
  %v5006 = vsel %vm1150, %v4884, -inf
  %5007 = vmax.xlane.f32.xlu0 %v5006
  %v5008 = vpop.xlane.xlu0 %5007
  %v5009 = vsel %vm1150, %v4885, -inf
  %5010 = vmax.xlane.f32.xlu0 %v5009
  %v5011 = vpop.xlane.xlu0 %5010
  %v5012 = vsel %vm1150, %v4886, -inf
  %5013 = vmax.xlane.f32.xlu0 %v5012
  %v5014 = vpop.xlane.xlu0 %5013
  %v5015 = vsel %vm1150, %v4887, -inf
  %5016 = vmax.xlane.f32.xlu0 %v5015
  %v5017 = vpop.xlane.xlu0 %5016
  %v5018 = vsel %vm1150, %v4888, -inf
  %5019 = vmax.xlane.f32.xlu0 %v5018
  %v5020 = vpop.xlane.xlu0 %5019
  %v5021 = vsel %vm1150, %v4889, -inf
  %5022 = vmax.xlane.f32.xlu0 %v5021
  %v5023 = vpop.xlane.xlu0 %5022
  %v5024 = vsel %vm1150, %v4890, -inf
  %5025 = vmax.xlane.f32.xlu0 %v5024
  %v5026 = vpop.xlane.xlu0 %5025
  %v5027 = vsel %vm1150, %v4891, -inf
  %5028 = vmax.xlane.f32.xlu0 %v5027
  %v5029 = vpop.xlane.xlu0 %5028
  %v5030 = vsel %vm1150, %v4892, -inf
  %5031 = vmax.xlane.f32.xlu0 %v5030
  %v5032 = vpop.xlane.xlu0 %5031
  %v5033 = vsel %vm1150, %v4893, -inf
  %5034 = vmax.xlane.f32.xlu0 %v5033
  %v5035 = vpop.xlane.xlu0 %5034
  %v5036 = vsel %vm1150, %v4894, -inf
  %5037 = vmax.xlane.f32.xlu0 %v5036
  %v5038 = vpop.xlane.xlu0 %5037
  %v5039 = vsub.f32 %v4847, %v4897
  %v5040 = vsub.f32 %v4848, %v4900
  %v5041 = vsub.f32 %v4849, %v4903
  %v5042 = vsub.f32 %v4850, %v4906
  %v5043 = vsub.f32 %v4851, %v4909
  %v5044 = vsub.f32 %v4852, %v4912
  %v5045 = vsub.f32 %v4853, %v4915
  %v5046 = vsub.f32 %v4854, %v4918
  %v5047 = vsub.f32 %v4855, %v4921
  %v5048 = vsub.f32 %v4856, %v4924
  %v5049 = vsub.f32 %v4857, %v4927
  %v5050 = vsub.f32 %v4858, %v4930
  %v5051 = vsub.f32 %v4859, %v4933
  %v5052 = vsub.f32 %v4860, %v4936
  %v5053 = vsub.f32 %v4861, %v4939
  %v5054 = vsub.f32 %v4862, %v4942
  %v5055 = vsub.f32 %v4863, %v4945
  %v5056 = vsub.f32 %v4864, %v4948
  %v5057 = vsub.f32 %v4865, %v4951
  %v5058 = vsub.f32 %v4866, %v4954
  %v5059 = vsub.f32 %v4867, %v4957
  %v5060 = vsub.f32 %v4868, %v4960
  %v5061 = vsub.f32 %v4869, %v4963
  %v5062 = vsub.f32 %v4870, %v4966
  %v5063 = vsub.f32 %v4871, %v4969
  %v5064 = vsub.f32 %v4872, %v4972
  %v5065 = vsub.f32 %v4873, %v4975
  %v5066 = vsub.f32 %v4874, %v4978
  %v5067 = vsub.f32 %v4875, %v4981
  %v5068 = vsub.f32 %v4876, %v4984
  %v5069 = vsub.f32 %v4877, %v4987
  %v5070 = vsub.f32 %v4878, %v4990
  %v5071 = vsub.f32 %v4879, %v4993
  %v5072 = vsub.f32 %v4880, %v4996
  %v5073 = vsub.f32 %v4881, %v4999
  %v5074 = vsub.f32 %v4882, %v5002
  %v5075 = vsub.f32 %v4883, %v5005
  %v5076 = vsub.f32 %v4884, %v5008
  %v5077 = vsub.f32 %v4885, %v5011
  %v5078 = vsub.f32 %v4886, %v5014
  %v5079 = vsub.f32 %v4887, %v5017
  %v5080 = vsub.f32 %v4888, %v5020
  %v5081 = vsub.f32 %v4889, %v5023
  %v5082 = vsub.f32 %v4890, %v5026
  %v5083 = vsub.f32 %v4891, %v5029
  %v5084 = vsub.f32 %v4892, %v5032
  %v5085 = vsub.f32 %v4893, %v5035
  %v5086 = vsub.f32 %v4894, %v5038
  %v5087 = vmul.f32 %v5039, 1.442695
  %v5088 = vpow.pop %v5087
  %v5089 = vmul.f32 %v5040, 1.442695
  %v5090 = vpow.pop %v5089
  %v5091 = vmul.f32 %v5041, 1.442695
  %v5092 = vpow.pop %v5091
  %v5093 = vmul.f32 %v5042, 1.442695
  %v5094 = vpow.pop %v5093
  %v5095 = vmul.f32 %v5043, 1.442695
  %v5096 = vpow.pop %v5095
  %v5097 = vmul.f32 %v5044, 1.442695
  %v5098 = vpow.pop %v5097
  %v5099 = vmul.f32 %v5045, 1.442695
  %v5100 = vpow.pop %v5099
  %v5101 = vmul.f32 %v5046, 1.442695
  %v5102 = vpow.pop %v5101
  %v5103 = vmul.f32 %v5047, 1.442695
  %v5104 = vpow.pop %v5103
  %v5105 = vmul.f32 %v5048, 1.442695
  %v5106 = vpow.pop %v5105
  %v5107 = vmul.f32 %v5049, 1.442695
  %v5108 = vpow.pop %v5107
  %v5109 = vmul.f32 %v5050, 1.442695
  %v5110 = vpow.pop %v5109
  %v5111 = vmul.f32 %v5051, 1.442695
  %v5112 = vpow.pop %v5111
  %v5113 = vmul.f32 %v5052, 1.442695
  %v5114 = vpow.pop %v5113
  %v5115 = vmul.f32 %v5053, 1.442695
  %v5116 = vpow.pop %v5115
  %v5117 = vmul.f32 %v5054, 1.442695
  %v5118 = vpow.pop %v5117
  %v5119 = vmul.f32 %v5055, 1.442695
  %v5120 = vpow.pop %v5119
  %v5121 = vmul.f32 %v5056, 1.442695
  %v5122 = vpow.pop %v5121
  %v5123 = vmul.f32 %v5057, 1.442695
  %v5124 = vpow.pop %v5123
  %v5125 = vmul.f32 %v5058, 1.442695
  %v5126 = vpow.pop %v5125
  %v5127 = vmul.f32 %v5059, 1.442695
  %v5128 = vpow.pop %v5127
  %v5129 = vmul.f32 %v5060, 1.442695
  %v5130 = vpow.pop %v5129
  %v5131 = vmul.f32 %v5061, 1.442695
  %v5132 = vpow.pop %v5131
  %v5133 = vmul.f32 %v5062, 1.442695
  %v5134 = vpow.pop %v5133
  %v5135 = vmul.f32 %v5063, 1.442695
  %v5136 = vpow.pop %v5135
  %v5137 = vmul.f32 %v5064, 1.442695
  %v5138 = vpow.pop %v5137
  %v5139 = vmul.f32 %v5065, 1.442695
  %v5140 = vpow.pop %v5139
  %v5141 = vmul.f32 %v5066, 1.442695
  %v5142 = vpow.pop %v5141
  %v5143 = vmul.f32 %v5067, 1.442695
  %v5144 = vpow.pop %v5143
  %v5145 = vmul.f32 %v5068, 1.442695
  %v5146 = vpow.pop %v5145
  %v5147 = vmul.f32 %v5069, 1.442695
  %v5148 = vpow.pop %v5147
  %v5149 = vmul.f32 %v5070, 1.442695
  %v5150 = vpow.pop %v5149
  %v5151 = vmul.f32 %v5071, 1.442695
  %v5152 = vpow.pop %v5151
  %v5153 = vmul.f32 %v5072, 1.442695
  %v5154 = vpow.pop %v5153
  %v5155 = vmul.f32 %v5073, 1.442695
  %v5156 = vpow.pop %v5155
  %v5157 = vmul.f32 %v5074, 1.442695
  %v5158 = vpow.pop %v5157
  %v5159 = vmul.f32 %v5075, 1.442695
  %v5160 = vpow.pop %v5159
  %v5161 = vmul.f32 %v5076, 1.442695
  %v5162 = vpow.pop %v5161
  %v5163 = vmul.f32 %v5077, 1.442695
  %v5164 = vpow.pop %v5163
  %v5165 = vmul.f32 %v5078, 1.442695
  %v5166 = vpow.pop %v5165
  %v5167 = vmul.f32 %v5079, 1.442695
  %v5168 = vpow.pop %v5167
  %v5169 = vmul.f32 %v5080, 1.442695
  %v5170 = vpow.pop %v5169
  %v5171 = vmul.f32 %v5081, 1.442695
  %v5172 = vpow.pop %v5171
  %v5173 = vmul.f32 %v5082, 1.442695
  %v5174 = vpow.pop %v5173
  %v5175 = vmul.f32 %v5083, 1.442695
  %v5176 = vpow.pop %v5175
  %v5177 = vmul.f32 %v5084, 1.442695
  %v5178 = vpow.pop %v5177
  %v5179 = vmul.f32 %v5085, 1.442695
  %v5180 = vpow.pop %v5179
  %v5181 = vmul.f32 %v5086, 1.442695
  %v5182 = vpow.pop %v5181
  %v5183 = vsel %vm1150, %v5088, 0.0
  %5184 = vadd.xlane.f32.xlu0 %v5183
  %v5185 = vpop.xlane.xlu0 %5184
  %v5186 = vsel %vm1150, %v5090, 0.0
  %5187 = vadd.xlane.f32.xlu0 %v5186
  %v5188 = vpop.xlane.xlu0 %5187
  %v5189 = vsel %vm1150, %v5092, 0.0
  %5190 = vadd.xlane.f32.xlu0 %v5189
  %v5191 = vpop.xlane.xlu0 %5190
  %v5192 = vsel %vm1150, %v5094, 0.0
  %5193 = vadd.xlane.f32.xlu0 %v5192
  %v5194 = vpop.xlane.xlu0 %5193
  %v5195 = vsel %vm1150, %v5096, 0.0
  %5196 = vadd.xlane.f32.xlu0 %v5195
  %v5197 = vpop.xlane.xlu0 %5196
  %v5198 = vsel %vm1150, %v5098, 0.0
  %5199 = vadd.xlane.f32.xlu0 %v5198
  %v5200 = vpop.xlane.xlu0 %5199
  %v5201 = vsel %vm1150, %v5100, 0.0
  %5202 = vadd.xlane.f32.xlu0 %v5201
  %v5203 = vpop.xlane.xlu0 %5202
  %v5204 = vsel %vm1150, %v5102, 0.0
  %5205 = vadd.xlane.f32.xlu0 %v5204
  %v5206 = vpop.xlane.xlu0 %5205
  %v5207 = vsel %vm1150, %v5104, 0.0
  %5208 = vadd.xlane.f32.xlu0 %v5207
  %v5209 = vpop.xlane.xlu0 %5208
  %v5210 = vsel %vm1150, %v5106, 0.0
  %5211 = vadd.xlane.f32.xlu0 %v5210
  %v5212 = vpop.xlane.xlu0 %5211
  %v5213 = vsel %vm1150, %v5108, 0.0
  %5214 = vadd.xlane.f32.xlu0 %v5213
  %v5215 = vpop.xlane.xlu0 %5214
  %v5216 = vsel %vm1150, %v5110, 0.0
  %5217 = vadd.xlane.f32.xlu0 %v5216
  %v5218 = vpop.xlane.xlu0 %5217
  %v5219 = vsel %vm1150, %v5112, 0.0
  %5220 = vadd.xlane.f32.xlu0 %v5219
  %v5221 = vpop.xlane.xlu0 %5220
  %v5222 = vsel %vm1150, %v5114, 0.0
  %5223 = vadd.xlane.f32.xlu0 %v5222
  %v5224 = vpop.xlane.xlu0 %5223
  %v5225 = vsel %vm1150, %v5116, 0.0
  %5226 = vadd.xlane.f32.xlu0 %v5225
  %v5227 = vpop.xlane.xlu0 %5226
  %v5228 = vsel %vm1150, %v5118, 0.0
  %5229 = vadd.xlane.f32.xlu0 %v5228
  %v5230 = vpop.xlane.xlu0 %5229
  %v5231 = vsel %vm1150, %v5120, 0.0
  %5232 = vadd.xlane.f32.xlu0 %v5231
  %v5233 = vpop.xlane.xlu0 %5232
  %v5234 = vsel %vm1150, %v5122, 0.0
  %5235 = vadd.xlane.f32.xlu0 %v5234
  %v5236 = vpop.xlane.xlu0 %5235
  %v5237 = vsel %vm1150, %v5124, 0.0
  %5238 = vadd.xlane.f32.xlu0 %v5237
  %v5239 = vpop.xlane.xlu0 %5238
  %v5240 = vsel %vm1150, %v5126, 0.0
  %5241 = vadd.xlane.f32.xlu0 %v5240
  %v5242 = vpop.xlane.xlu0 %5241
  %v5243 = vsel %vm1150, %v5128, 0.0
  %5244 = vadd.xlane.f32.xlu0 %v5243
  %v5245 = vpop.xlane.xlu0 %5244
  %v5246 = vsel %vm1150, %v5130, 0.0
  %5247 = vadd.xlane.f32.xlu0 %v5246
  %v5248 = vpop.xlane.xlu0 %5247
  %v5249 = vsel %vm1150, %v5132, 0.0
  %5250 = vadd.xlane.f32.xlu0 %v5249
  %v5251 = vpop.xlane.xlu0 %5250
  %v5252 = vsel %vm1150, %v5134, 0.0
  %5253 = vadd.xlane.f32.xlu0 %v5252
  %v5254 = vpop.xlane.xlu0 %5253
  %v5255 = vsel %vm1150, %v5136, 0.0
  %5256 = vadd.xlane.f32.xlu0 %v5255
  %v5257 = vpop.xlane.xlu0 %5256
  %v5258 = vsel %vm1150, %v5138, 0.0
  %5259 = vadd.xlane.f32.xlu0 %v5258
  %v5260 = vpop.xlane.xlu0 %5259
  %v5261 = vsel %vm1150, %v5140, 0.0
  %5262 = vadd.xlane.f32.xlu0 %v5261
  %v5263 = vpop.xlane.xlu0 %5262
  %v5264 = vsel %vm1150, %v5142, 0.0
  %5265 = vadd.xlane.f32.xlu0 %v5264
  %v5266 = vpop.xlane.xlu0 %5265
  %v5267 = vsel %vm1150, %v5144, 0.0
  %5268 = vadd.xlane.f32.xlu0 %v5267
  %v5269 = vpop.xlane.xlu0 %5268
  %v5270 = vsel %vm1150, %v5146, 0.0
  %5271 = vadd.xlane.f32.xlu0 %v5270
  %v5272 = vpop.xlane.xlu0 %5271
  %v5273 = vsel %vm1150, %v5148, 0.0
  %5274 = vadd.xlane.f32.xlu0 %v5273
  %v5275 = vpop.xlane.xlu0 %5274
  %v5276 = vsel %vm1150, %v5150, 0.0
  %5277 = vadd.xlane.f32.xlu0 %v5276
  %v5278 = vpop.xlane.xlu0 %5277
  %v5279 = vsel %vm1150, %v5152, 0.0
  %5280 = vadd.xlane.f32.xlu0 %v5279
  %v5281 = vpop.xlane.xlu0 %5280
  %v5282 = vsel %vm1150, %v5154, 0.0
  %5283 = vadd.xlane.f32.xlu0 %v5282
  %v5284 = vpop.xlane.xlu0 %5283
  %v5285 = vsel %vm1150, %v5156, 0.0
  %5286 = vadd.xlane.f32.xlu0 %v5285
  %v5287 = vpop.xlane.xlu0 %5286
  %v5288 = vsel %vm1150, %v5158, 0.0
  %5289 = vadd.xlane.f32.xlu0 %v5288
  %v5290 = vpop.xlane.xlu0 %5289
  %v5291 = vsel %vm1150, %v5160, 0.0
  %5292 = vadd.xlane.f32.xlu0 %v5291
  %v5293 = vpop.xlane.xlu0 %5292
  %v5294 = vsel %vm1150, %v5162, 0.0
  %5295 = vadd.xlane.f32.xlu0 %v5294
  %v5296 = vpop.xlane.xlu0 %5295
  %v5297 = vsel %vm1150, %v5164, 0.0
  %5298 = vadd.xlane.f32.xlu0 %v5297
  %v5299 = vpop.xlane.xlu0 %5298
  %v5300 = vsel %vm1150, %v5166, 0.0
  %5301 = vadd.xlane.f32.xlu0 %v5300
  %v5302 = vpop.xlane.xlu0 %5301
  %v5303 = vsel %vm1150, %v5168, 0.0
  %5304 = vadd.xlane.f32.xlu0 %v5303
  %v5305 = vpop.xlane.xlu0 %5304
  %v5306 = vsel %vm1150, %v5170, 0.0
  %5307 = vadd.xlane.f32.xlu0 %v5306
  %v5308 = vpop.xlane.xlu0 %5307
  %v5309 = vsel %vm1150, %v5172, 0.0
  %5310 = vadd.xlane.f32.xlu0 %v5309
  %v5311 = vpop.xlane.xlu0 %5310
  %v5312 = vsel %vm1150, %v5174, 0.0
  %5313 = vadd.xlane.f32.xlu0 %v5312
  %v5314 = vpop.xlane.xlu0 %5313
  %v5315 = vsel %vm1150, %v5176, 0.0
  %5316 = vadd.xlane.f32.xlu0 %v5315
  %v5317 = vpop.xlane.xlu0 %5316
  %v5318 = vsel %vm1150, %v5178, 0.0
  %5319 = vadd.xlane.f32.xlu0 %v5318
  %v5320 = vpop.xlane.xlu0 %5319
  %v5321 = vsel %vm1150, %v5180, 0.0
  %5322 = vadd.xlane.f32.xlu0 %v5321
  %v5323 = vpop.xlane.xlu0 %5322
  %v5324 = vsel %vm1150, %v5182, 0.0
  %5325 = vadd.xlane.f32.xlu0 %v5324
  %v5326 = vpop.xlane.xlu0 %5325
  %v5327 = vrcp.pop %v5185
  %v5328 = vrcp.pop %v5188
  %v5329 = vrcp.pop %v5191
  %v5330 = vrcp.pop %v5194
  %v5331 = vrcp.pop %v5197
  %v5332 = vrcp.pop %v5200
  %v5333 = vrcp.pop %v5203
  %v5334 = vrcp.pop %v5206
  %v5335 = vrcp.pop %v5209
  %v5336 = vrcp.pop %v5212
  %v5337 = vrcp.pop %v5215
  %v5338 = vrcp.pop %v5218
  %v5339 = vrcp.pop %v5221
  %v5340 = vrcp.pop %v5224
  %v5341 = vrcp.pop %v5227
  %v5342 = vrcp.pop %v5230
  %v5343 = vrcp.pop %v5233
  %v5344 = vrcp.pop %v5236
  %v5345 = vrcp.pop %v5239
  %v5346 = vrcp.pop %v5242
  %v5347 = vrcp.pop %v5245
  %v5348 = vrcp.pop %v5248
  %v5349 = vrcp.pop %v5251
  %v5350 = vrcp.pop %v5254
  %v5351 = vrcp.pop %v5257
  %v5352 = vrcp.pop %v5260
  %v5353 = vrcp.pop %v5263
  %v5354 = vrcp.pop %v5266
  %v5355 = vrcp.pop %v5269
  %v5356 = vrcp.pop %v5272
  %v5357 = vrcp.pop %v5275
  %v5358 = vrcp.pop %v5278
  %v5359 = vrcp.pop %v5281
  %v5360 = vrcp.pop %v5284
  %v5361 = vrcp.pop %v5287
  %v5362 = vrcp.pop %v5290
  %v5363 = vrcp.pop %v5293
  %v5364 = vrcp.pop %v5296
  %v5365 = vrcp.pop %v5299
  %v5366 = vrcp.pop %v5302
  %v5367 = vrcp.pop %v5305
  %v5368 = vrcp.pop %v5308
  %v5369 = vrcp.pop %v5311
  %v5370 = vrcp.pop %v5314
  %v5371 = vrcp.pop %v5317
  %v5372 = vrcp.pop %v5320
  %v5373 = vrcp.pop %v5323
  %v5374 = vrcp.pop %v5326
  %v5375 = vmul.f32 %v5088, %v5327
  %v5376 = vmul.f32 %v5090, %v5328
  %v5377 = vmul.f32 %v5092, %v5329
  %v5378 = vmul.f32 %v5094, %v5330
  %v5379 = vmul.f32 %v5096, %v5331
  %v5380 = vmul.f32 %v5098, %v5332
  %v5381 = vmul.f32 %v5100, %v5333
  %v5382 = vmul.f32 %v5102, %v5334
  %v5383 = vmul.f32 %v5104, %v5335
  %v5384 = vmul.f32 %v5106, %v5336
  %v5385 = vmul.f32 %v5108, %v5337
  %v5386 = vmul.f32 %v5110, %v5338
  %v5387 = vmul.f32 %v5112, %v5339
  %v5388 = vmul.f32 %v5114, %v5340
  %v5389 = vmul.f32 %v5116, %v5341
  %v5390 = vmul.f32 %v5118, %v5342
  %v5391 = vmul.f32 %v5120, %v5343
  %v5392 = vmul.f32 %v5122, %v5344
  %v5393 = vmul.f32 %v5124, %v5345
  %v5394 = vmul.f32 %v5126, %v5346
  %v5395 = vmul.f32 %v5128, %v5347
  %v5396 = vmul.f32 %v5130, %v5348
  %v5397 = vmul.f32 %v5132, %v5349
  %v5398 = vmul.f32 %v5134, %v5350
  %v5399 = vmul.f32 %v5136, %v5351
  %v5400 = vmul.f32 %v5138, %v5352
  %v5401 = vmul.f32 %v5140, %v5353
  %v5402 = vmul.f32 %v5142, %v5354
  %v5403 = vmul.f32 %v5144, %v5355
  %v5404 = vmul.f32 %v5146, %v5356
  %v5405 = vmul.f32 %v5148, %v5357
  %v5406 = vmul.f32 %v5150, %v5358
  %v5407 = vmul.f32 %v5152, %v5359
  %v5408 = vmul.f32 %v5154, %v5360
  %v5409 = vmul.f32 %v5156, %v5361
  %v5410 = vmul.f32 %v5158, %v5362
  %v5411 = vmul.f32 %v5160, %v5363
  %v5412 = vmul.f32 %v5162, %v5364
  %v5413 = vmul.f32 %v5164, %v5365
  %v5414 = vmul.f32 %v5166, %v5366
  %v5415 = vmul.f32 %v5168, %v5367
  %v5416 = vmul.f32 %v5170, %v5368
  %v5417 = vmul.f32 %v5172, %v5369
  %v5418 = vmul.f32 %v5174, %v5370
  %v5419 = vmul.f32 %v5176, %v5371
  %v5420 = vmul.f32 %v5178, %v5372
  %v5421 = vmul.f32 %v5180, %v5373
  %v5422 = vmul.f32 %v5182, %v5374
  %v5423 = vpack.c.bf16 %v5376, %v5375
  %v5424 = vpack.c.bf16 %v5378, %v5377
  %v5425 = vpack.c.bf16 %v5380, %v5379
  %v5426 = vpack.c.bf16 %v5382, %v5381
  %v5427 = vpack.c.bf16 %v5384, %v5383
  %v5428 = vpack.c.bf16 %v5386, %v5385
  %v5429 = vpack.c.bf16 %v5388, %v5387
  %v5430 = vpack.c.bf16 %v5390, %v5389
  %v5431 = vpack.c.bf16 %v5392, %v5391
  %v5432 = vpack.c.bf16 %v5394, %v5393
  %v5433 = vpack.c.bf16 %v5396, %v5395
  %v5434 = vpack.c.bf16 %v5398, %v5397
  %v5435 = vpack.c.bf16 %v5400, %v5399
  %v5436 = vpack.c.bf16 %v5402, %v5401
  %v5437 = vpack.c.bf16 %v5404, %v5403
  %v5438 = vpack.c.bf16 %v5406, %v5405
  %v5439 = vpack.c.bf16 %v5408, %v5407
  %v5440 = vpack.c.bf16 %v5410, %v5409
  %v5441 = vpack.c.bf16 %v5412, %v5411
  %v5442 = vpack.c.bf16 %v5414, %v5413
  %v5443 = vpack.c.bf16 %v5416, %v5415
  %v5444 = vpack.c.bf16 %v5418, %v5417
  %v5445 = vpack.c.bf16 %v5420, %v5419
  %v5446 = vpack.c.bf16 %v5422, %v5421
  %v5447 = vpack.c.bf16 %v4017, %v4014
  %v5448 = vpack.c.bf16 %v4023, %v4020
  %v5449 = vpack.c.bf16 %v4029, %v4026
  %v5450 = vpack.c.bf16 %v4035, %v4032
  %v5452 = vsel %vm1150, %v5423, 0
  %v5455 = vsel %vm1150, %v5424, 0
  %v5458 = vsel %vm1150, %v5425, 0
  %v5461 = vsel %vm1150, %v5426, 0
  %v5464 = vsel %vm1150, %v5427, 0
  %v5467 = vsel %vm1150, %v5428, 0
  %v5470 = vsel %vm1150, %v5429, 0
  %v5473 = vsel %vm1150, %v5430, 0
  %v5476 = vsel %vm1150, %v5431, 0
  %v5479 = vsel %vm1150, %v5432, 0
  %v5482 = vsel %vm1150, %v5433, 0
  %v5485 = vsel %vm1150, %v5434, 0
  %v5488 = vsel %vm1150, %v5435, 0
  %v5491 = vsel %vm1150, %v5436, 0
  %v5494 = vsel %vm1150, %v5437, 0
  %v5497 = vsel %vm1150, %v5438, 0
  %v5500 = vsel %vm1150, %v5439, 0
  %v5503 = vsel %vm1150, %v5440, 0
  %v5506 = vsel %vm1150, %v5441, 0
  %v5509 = vsel %vm1150, %v5442, 0
  %v5512 = vsel %vm1150, %v5443, 0
  %v5515 = vsel %vm1150, %v5444, 0
  %v5518 = vsel %vm1150, %v5445, 0
  %v5521 = vsel %vm1150, %v5446, 0
  %5523 = vmatpush.bf16.msra.mxu0 0
  %5524 = vmatpush.bf16.msra.mxu0 0
  %5525 = vmatpush.bf16.msra.mxu0 0
  %5526 = vmatpush.bf16.msra.mxu0 0
  %5527 = vmatpush.bf16.msra.mxu0 %v5450
  %5528 = vmatpush.bf16.msra.mxu0 %v5449
  %5529 = vmatpush.bf16.msra.mxu0 %v5448
  %5530 = vmatpush.bf16.msra.mxu0 %v5447
  %5531 = vmatmul.bf16.gmra.mxu0 %v5452
  %v5532 = vpop.f32.mrf.mxu0
  %v5533 = vadd.f32 0.0, %v5532
  %v5534 = vpop.f32.mrf.mxu0
  %v5535 = vadd.f32 0.0, %v5534
  %5536 = vmatmul.bf16.gmra.mxu0 %v5455
  %v5537 = vpop.f32.mrf.mxu0
  %v5538 = vadd.f32 0.0, %v5537
  %v5539 = vpop.f32.mrf.mxu0
  %v5540 = vadd.f32 0.0, %v5539
  %5541 = vmatmul.bf16.gmra.mxu0 %v5458
  %v5542 = vpop.f32.mrf.mxu0
  %v5543 = vadd.f32 0.0, %v5542
  %v5544 = vpop.f32.mrf.mxu0
  %v5545 = vadd.f32 0.0, %v5544
  %5546 = vmatmul.bf16.gmra.mxu0 %v5461
  %v5547 = vpop.f32.mrf.mxu0
  %v5548 = vadd.f32 0.0, %v5547
  %v5549 = vpop.f32.mrf.mxu0
  %v5550 = vadd.f32 0.0, %v5549
  %5551 = vmatmul.bf16.gmra.mxu0 %v5464
  %v5552 = vpop.f32.mrf.mxu0
  %v5553 = vadd.f32 0.0, %v5552
  %v5554 = vpop.f32.mrf.mxu0
  %v5555 = vadd.f32 0.0, %v5554
  %5556 = vmatmul.bf16.gmra.mxu0 %v5467
  %v5557 = vpop.f32.mrf.mxu0
  %v5558 = vadd.f32 0.0, %v5557
  %v5559 = vpop.f32.mrf.mxu0
  %v5560 = vadd.f32 0.0, %v5559
  %5561 = vmatmul.bf16.gmra.mxu0 %v5470
  %v5562 = vpop.f32.mrf.mxu0
  %v5563 = vadd.f32 0.0, %v5562
  %v5564 = vpop.f32.mrf.mxu0
  %v5565 = vadd.f32 0.0, %v5564
  %5566 = vmatmul.bf16.gmra.mxu0 %v5473
  %v5567 = vpop.f32.mrf.mxu0
  %v5568 = vadd.f32 0.0, %v5567
  %v5569 = vpop.f32.mrf.mxu0
  %v5570 = vadd.f32 0.0, %v5569
  %5571 = vmatmul.bf16.gmra.mxu0 %v5476
  %v5572 = vpop.f32.mrf.mxu0
  %v5573 = vadd.f32 0.0, %v5572
  %v5574 = vpop.f32.mrf.mxu0
  %v5575 = vadd.f32 0.0, %v5574
  %5576 = vmatmul.bf16.gmra.mxu0 %v5479
  %v5577 = vpop.f32.mrf.mxu0
  %v5578 = vadd.f32 0.0, %v5577
  %v5579 = vpop.f32.mrf.mxu0
  %v5580 = vadd.f32 0.0, %v5579
  %5581 = vmatmul.bf16.gmra.mxu0 %v5482
  %v5582 = vpop.f32.mrf.mxu0
  %v5583 = vadd.f32 0.0, %v5582
  %v5584 = vpop.f32.mrf.mxu0
  %v5585 = vadd.f32 0.0, %v5584
  %5586 = vmatmul.bf16.gmra.mxu0 %v5485
  %v5587 = vpop.f32.mrf.mxu0
  %v5588 = vadd.f32 0.0, %v5587
  %v5589 = vpop.f32.mrf.mxu0
  %v5590 = vadd.f32 0.0, %v5589
  %5591 = vmatmul.bf16.gmra.mxu0 %v5488
  %v5592 = vpop.f32.mrf.mxu0
  %v5593 = vadd.f32 0.0, %v5592
  %v5594 = vpop.f32.mrf.mxu0
  %v5595 = vadd.f32 0.0, %v5594
  %5596 = vmatmul.bf16.gmra.mxu0 %v5491
  %v5597 = vpop.f32.mrf.mxu0
  %v5598 = vadd.f32 0.0, %v5597
  %v5599 = vpop.f32.mrf.mxu0
  %v5600 = vadd.f32 0.0, %v5599
  %5601 = vmatmul.bf16.gmra.mxu0 %v5494
  %v5602 = vpop.f32.mrf.mxu0
  %v5603 = vadd.f32 0.0, %v5602
  %v5604 = vpop.f32.mrf.mxu0
  %v5605 = vadd.f32 0.0, %v5604
  %5606 = vmatmul.bf16.gmra.mxu0 %v5497
  %v5607 = vpop.f32.mrf.mxu0
  %v5608 = vadd.f32 0.0, %v5607
  %v5609 = vpop.f32.mrf.mxu0
  %v5610 = vadd.f32 0.0, %v5609
  %5611 = vmatmul.bf16.gmra.mxu0 %v5500
  %v5612 = vpop.f32.mrf.mxu0
  %v5613 = vadd.f32 0.0, %v5612
  %v5614 = vpop.f32.mrf.mxu0
  %v5615 = vadd.f32 0.0, %v5614
  %5616 = vmatmul.bf16.gmra.mxu0 %v5503
  %v5617 = vpop.f32.mrf.mxu0
  %v5618 = vadd.f32 0.0, %v5617
  %v5619 = vpop.f32.mrf.mxu0
  %v5620 = vadd.f32 0.0, %v5619
  %5621 = vmatmul.bf16.gmra.mxu0 %v5506
  %v5622 = vpop.f32.mrf.mxu0
  %v5623 = vadd.f32 0.0, %v5622
  %v5624 = vpop.f32.mrf.mxu0
  %v5625 = vadd.f32 0.0, %v5624
  %5626 = vmatmul.bf16.gmra.mxu0 %v5509
  %v5627 = vpop.f32.mrf.mxu0
  %v5628 = vadd.f32 0.0, %v5627
  %v5629 = vpop.f32.mrf.mxu0
  %v5630 = vadd.f32 0.0, %v5629
  %5631 = vmatmul.bf16.gmra.mxu0 %v5512
  %v5632 = vpop.f32.mrf.mxu0
  %v5633 = vadd.f32 0.0, %v5632
  %v5634 = vpop.f32.mrf.mxu0
  %v5635 = vadd.f32 0.0, %v5634
  %5636 = vmatmul.bf16.gmra.mxu0 %v5515
  %v5637 = vpop.f32.mrf.mxu0
  %v5638 = vadd.f32 0.0, %v5637
  %v5639 = vpop.f32.mrf.mxu0
  %v5640 = vadd.f32 0.0, %v5639
  %5641 = vmatmul.bf16.gmra.mxu0 %v5518
  %v5642 = vpop.f32.mrf.mxu0
  %v5643 = vadd.f32 0.0, %v5642
  %v5644 = vpop.f32.mrf.mxu0
  %v5645 = vadd.f32 0.0, %v5644
  %5646 = vmatmul.bf16.gmra.mxu0 %v5521
  %v5647 = vpop.f32.mrf.mxu0
  %v5648 = vadd.f32 0.0, %v5647
  %v5649 = vpop.f32.mrf.mxu0
  %v5650 = vadd.f32 0.0, %v5649
  %5651 = vdwg.mxu0
  %v5652 = vld [vmem:[%s15] sm:$0x3f]
  %v5653 = vperm.slane %v5652, 0
  %v5654 = vmul.f32 %v5533, %v5653
  %v5655 = vmul.f32 %v5535, %v5653
  %v5656 = vmul.f32 %v5538, %v5653
  %v5657 = vmul.f32 %v5540, %v5653
  %v5658 = vmul.f32 %v5543, %v5653
  %v5659 = vmul.f32 %v5545, %v5653
  %v5660 = vmul.f32 %v5548, %v5653
  %v5661 = vmul.f32 %v5550, %v5653
  %v5662 = vperm.slane %v5652, 1
  %v5663 = vmul.f32 %v5553, %v5662
  %v5664 = vmul.f32 %v5555, %v5662
  %v5665 = vmul.f32 %v5558, %v5662
  %v5666 = vmul.f32 %v5560, %v5662
  %v5667 = vmul.f32 %v5563, %v5662
  %v5668 = vmul.f32 %v5565, %v5662
  %v5669 = vmul.f32 %v5568, %v5662
  %v5670 = vmul.f32 %v5570, %v5662
  %v5671 = vadd.f32 %v5654, %v5663
  %v5672 = vadd.f32 %v5655, %v5664
  %v5673 = vadd.f32 %v5656, %v5665
  %v5674 = vadd.f32 %v5657, %v5666
  %v5675 = vadd.f32 %v5658, %v5667
  %v5676 = vadd.f32 %v5659, %v5668
  %v5677 = vadd.f32 %v5660, %v5669
  %v5678 = vadd.f32 %v5661, %v5670
  %v5679 = vperm.slane %v5652, 2
  %v5680 = vmul.f32 %v5573, %v5679
  %v5681 = vmul.f32 %v5575, %v5679
  %v5682 = vmul.f32 %v5578, %v5679
  %v5683 = vmul.f32 %v5580, %v5679
  %v5684 = vmul.f32 %v5583, %v5679
  %v5685 = vmul.f32 %v5585, %v5679
  %v5686 = vmul.f32 %v5588, %v5679
  %v5687 = vmul.f32 %v5590, %v5679
  %v5688 = vadd.f32 %v5671, %v5680
  %v5689 = vadd.f32 %v5672, %v5681
  %v5690 = vadd.f32 %v5673, %v5682
  %v5691 = vadd.f32 %v5674, %v5683
  %v5692 = vadd.f32 %v5675, %v5684
  %v5693 = vadd.f32 %v5676, %v5685
  %v5694 = vadd.f32 %v5677, %v5686
  %v5695 = vadd.f32 %v5678, %v5687
  %v5696 = vperm.slane %v5652, 3
  %v5697 = vmul.f32 %v5593, %v5696
  %v5698 = vmul.f32 %v5595, %v5696
  %v5699 = vmul.f32 %v5598, %v5696
  %v5700 = vmul.f32 %v5600, %v5696
  %v5701 = vmul.f32 %v5603, %v5696
  %v5702 = vmul.f32 %v5605, %v5696
  %v5703 = vmul.f32 %v5608, %v5696
  %v5704 = vmul.f32 %v5610, %v5696
  %v5705 = vadd.f32 %v5688, %v5697
  %v5706 = vadd.f32 %v5689, %v5698
  %v5707 = vadd.f32 %v5690, %v5699
  %v5708 = vadd.f32 %v5691, %v5700
  %v5709 = vadd.f32 %v5692, %v5701
  %v5710 = vadd.f32 %v5693, %v5702
  %v5711 = vadd.f32 %v5694, %v5703
  %v5712 = vadd.f32 %v5695, %v5704
  %v5713 = vperm.slane %v5652, 4
  %v5714 = vmul.f32 %v5613, %v5713
  %v5715 = vmul.f32 %v5615, %v5713
  %v5716 = vmul.f32 %v5618, %v5713
  %v5717 = vmul.f32 %v5620, %v5713
  %v5718 = vmul.f32 %v5623, %v5713
  %v5719 = vmul.f32 %v5625, %v5713
  %v5720 = vmul.f32 %v5628, %v5713
  %v5721 = vmul.f32 %v5630, %v5713
  %v5722 = vadd.f32 %v5705, %v5714
  %v5723 = vadd.f32 %v5706, %v5715
  %v5724 = vadd.f32 %v5707, %v5716
  %v5725 = vadd.f32 %v5708, %v5717
  %v5726 = vadd.f32 %v5709, %v5718
  %v5727 = vadd.f32 %v5710, %v5719
  %v5728 = vadd.f32 %v5711, %v5720
  %v5729 = vadd.f32 %v5712, %v5721
  %v5730 = vperm.slane %v5652, 5
  %v5731 = vmul.f32 %v5633, %v5730
  %v5732 = vmul.f32 %v5635, %v5730
  %v5733 = vmul.f32 %v5638, %v5730
  %v5734 = vmul.f32 %v5640, %v5730
  %v5735 = vmul.f32 %v5643, %v5730
  %v5736 = vmul.f32 %v5645, %v5730
  %v5737 = vmul.f32 %v5648, %v5730
  %v5738 = vmul.f32 %v5650, %v5730
  %v5739 = vadd.f32 %v5722, %v5731
  %v5740 = vadd.f32 %v5723, %v5732
  %v5741 = vadd.f32 %v5724, %v5733
  %v5742 = vadd.f32 %v5725, %v5734
  %v5743 = vadd.f32 %v5726, %v5735
  %v5744 = vadd.f32 %v5727, %v5736
  %v5745 = vadd.f32 %v5728, %v5737
  %v5746 = vadd.f32 %v5729, %v5738
  %v5747 = vld [vmem:[%s16] sm:$0x1]
  %v5749 = vperm.slane %v5747, 0
  %v5751 = vadd.f32 %v5739, %v5749
  %v5752 = vadd.f32 %v5740, %v5749
  %v5753 = vadd.f32 %v5741, %v5749
  %v5754 = vadd.f32 %v5742, %v5749
  %v5755 = vadd.f32 %v5743, %v5749
  %v5756 = vadd.f32 %v5744, %v5749
  %v5757 = vadd.f32 %v5745, %v5749
  %v5758 = vadd.f32 %v5746, %v5749
  %5759 = vst.msk [vmem:[%s17] sm:$0xff] %vm4085, %v5751
  %5760 = vst.msk [vmem:[%s17 + $0x8] sm:$0xff] %vm4085, %v5752
  %5761 = vst.msk [vmem:[%s17 + $0x10] sm:$0xff] %vm4085, %v5753
  %5762 = vst.msk [vmem:[%s17 + $0x18] sm:$0xff] %vm4085, %v5754
  %5763 = vst.msk [vmem:[%s17 + $0x20] sm:$0xff] %vm4085, %v5755
  %5764 = vst.msk [vmem:[%s17 + $0x28] sm:$0xff] %vm4085, %v5756
  %5765 = vst.msk [vmem:[%s17 + $0x30] sm:$0xff] %vm4085, %v5757
  %5766 = vst.msk [vmem:[%s17 + $0x38] sm:$0xff] %vm4085, %v5758
  // Predicated region
  $region70: #{gat_forward.1} parent=0 // pred_check
    _
  $region71: #{gat_forward.1} parent=0 // pred_check_branch
    %5768 = sbr.rel (0) target = $region73
  $region72: #{gat_forward.1} parent=0 // pred_region
    _
  $region73: #{gat_forward.1} parent=0 // pred_fallthru
    _
  // Predicated region
  $region74: #{gat_forward.1} parent=0 // pred_check
    _
  $region75: #{gat_forward.1} parent=0 // pred_check_branch
    %5770 = sbr.rel (0) target = $region77
  $region76: #{gat_forward.1} parent=0 // pred_region
    _
  $region77: #{gat_forward.1} parent=0 // pred_fallthru
    _

</llo_original>
